<compile_context>
chip_gen: v5e
topology: v5e:2x2
jax: 0.10.0
libtpu: 0.0.40
codegen_flags: <defaults>
</compile_context>

<pallas_src>
import functools
import math

import jax
import jax.numpy as jnp
from jax import lax
from jax.experimental import pallas as pl
from jax.experimental.pallas import tpu as pltpu

MASK_NEG = -1e30          # large-negative instead of -inf: exp() underflows to exactly 0
LN_EPS = 1e-5             # torch LayerNorm default
VMEM_LIMIT = 48 * 1024 * 1024   # safe on v7x (64 MiB/TC); each pallas_call's working set is small


def _pick_tile(n, target, mult):
    """Largest multiple of `mult` that divides n and is <= target (falls back to full n)."""
    t = (min(target, n) // mult) * mult
    while t >= mult:
        if n % t == 0:
            return t
        t -= mult
    return n


def _layernorm(v, w, b):
    """f32 LayerNorm over the last dim (torch semantics, biased variance)."""
    mu = jnp.mean(v, axis=-1, keepdims=True)
    var = jnp.mean((v - mu) ** 2, axis=-1, keepdims=True)
    return (v - mu) * lax.rsqrt(var + LN_EPS) * w + b


def _resident(arr, n_grid):
    """Weight stays VMEM-resident across the whole grid (constant block index).
    Note: with the layer split into three pallas_calls the double-buffered residency of each
    call's weights fits comfortably under 48 MiB even at E=1024, so no pl.Buffered(1) needed."""
    zeros = (0,) * arr.ndim
    if n_grid == 2:
        return pl.BlockSpec(arr.shape, lambda b, t: zeros)
    return pl.BlockSpec(arr.shape, lambda b, qt, kt: zeros)


# ----------------------------------------------------------------------------
# Kernels
# ----------------------------------------------------------------------------
def qkv_kernel(x_ref, ln1w_ref, ln1b_ref,
               wq_ref, bq_ref, wk_ref, bk_ref, wv_ref, bv_ref,
               q_ref, k_ref, v_ref, *, num_heads, scale):
    """LN1 + Q/K/V projection for one (batch, row-tile); head-major bf16 outputs.
    Computed ONCE per row -> no per-query-tile K/V recomputation downstream."""
    x = x_ref[...].astype(jnp.float32)                                   # (TS, E)
    xn = _layernorm(x, ln1w_ref[...], ln1b_ref[...]).astype(jnp.bfloat16)
    for h in range(num_heads):            # static unroll; heads indexed on the major axis
        q = jnp.dot(xn, wq_ref[h], preferred_element_type=jnp.float32) + bq_ref[h]
        k = jnp.dot(xn, wk_ref[h], preferred_element_type=jnp.float32) + bk_ref[h]
        v = jnp.dot(xn, wv_ref[h], preferred_element_type=jnp.float32) + bv_ref[h]
        q_ref[h] = (q * scale).astype(jnp.bfloat16)       # pre-scale q by 1/sqrt(hd)
        k_ref[h] = k.astype(jnp.bfloat16)
        v_ref[h] = v.astype(jnp.bfloat16)


def attention_kernel(q_ref, k_ref, v_ref, bias_ref, xres_ref, wo_ref, bo_ref,
                     out_ref, m_sc, l_sc, acc_sc, *, res_pos_length):
    """Flash-style attention for one (batch, q-tile) accumulated over KV tiles (grid axis 2),
    with fused per-head output projection + residual add at the finalize step."""
    kv = pl.program_id(2)
    H, TQ, _ = q_ref.shape
    TK = k_ref.shape[1]

    @pl.when(kv == 0)
    def _():
        m_sc[...] = jnp.full(m_sc.shape, -jnp.inf, jnp.float32)
        l_sc[...] = jnp.zeros(l_sc.shape, jnp.float32)
        acc_sc[...] = jnp.zeros(acc_sc.shape, jnp.float32)

    # Skip compute for KV tiles that are entirely masked: fully in the future (causal)
    # or fully past the relative-position window.  (DMAs still stream; compute is skipped.)
    q_lo = pl.program_id(1) * TQ
    k_lo = kv * TK
    not_all_future = k_lo <= q_lo + (TQ - 1)
    in_window = (k_lo + (TK - 1)) >= (q_lo - (res_pos_length - 1))

    @pl.when(jnp.logical_and(not_all_future, in_window))
    def _():
        s = jnp.einsum('hqd,hkd->hqk', q_ref[...], k_ref[...],
                       preferred_element_type=jnp.float32)               # (H, TQ, TK)
        s = s + bias_ref[...].astype(jnp.float32)
        m_prev = m_sc[...]
        m_new = jnp.maximum(m_prev, jnp.max(s, axis=-1, keepdims=True))
        alpha = jnp.exp(m_prev - m_new)
        p = jnp.exp(s - m_new)
        l_sc[...] = alpha * l_sc[...] + jnp.sum(p, axis=-1, keepdims=True)
        acc_sc[...] = alpha * acc_sc[...] + jnp.einsum(
            'hqk,hkd->hqd', p.astype(jnp.bfloat16), v_ref[...],
            preferred_element_type=jnp.float32)
        m_sc[...] = m_new

    @pl.when(kv == pl.num_programs(2) - 1)
    def _():
        ctx = (acc_sc[...] / l_sc[...]).astype(jnp.bfloat16)             # (H, TQ, hd)
        attn = bo_ref[...]                                               # (1, E) f32
        for h in range(H):   # per-head (TQ,hd)@(hd,E), accumulated in f32 -> no (H,TQ,E) temp
            attn = attn + jnp.dot(ctx[h], wo_ref[h], preferred_element_type=jnp.float32)
        out_ref[...] = (xres_ref[...].astype(jnp.float32) + attn).astype(jnp.bfloat16)


def mlp_kernel(x_ref, ln2w_ref, ln2b_ref, w1_ref, b1_ref, w2_ref, b2_ref, out_ref):
    """LN2 + 2-layer MLP (ReLU) + residual for one (batch, row-tile)."""
    x = x_ref[...].astype(jnp.float32)                                   # (TS, E)
    xn = _layernorm(x, ln2w_ref[...], ln2b_ref[...]).astype(jnp.bfloat16)
    h = jnp.dot(xn, w1_ref[...], preferred_element_type=jnp.float32) + b1_ref[...]
    h = jnp.maximum(h, 0.0).astype(jnp.bfloat16)
    y = jnp.dot(h, w2_ref[...], preferred_element_type=jnp.float32) + b2_ref[...]
    out_ref[...] = (x + y).astype(jnp.bfloat16)


def final_linear_kernel(x_ref, w_ref, b_ref, out_ref):
    """(row-tile, E) bf16 @ (E, vocab-tile) bf16 -> f32 logits + bias."""
    y = jnp.dot(x_ref[...], w_ref[...], preferred_element_type=jnp.float32)
    out_ref[...] = y + b_ref[...]


# ----------------------------------------------------------------------------
# Wrappers (pallas_call plumbing)
# ----------------------------------------------------------------------------
def qkv_projection(x, lp, num_heads, *, seq_tile=256):
    B, S, E = x.shape
    H = num_heads
    hd = E // H
    TS = _pick_tile(S, seq_tile, 8)
    grid = (B, S // TS)

    weights = (lp['ln1w'], lp['ln1b'],
               lp['wq'], lp['bq'], lp['wk'], lp['bk'], lp['wv'], lp['bv'])
    qkv_spec = pl.BlockSpec((None, H, TS, hd), lambda b, t: (b, 0, t, 0))
    out_shape = jax.ShapeDtypeStruct((B, H, S, hd), jnp.bfloat16)

    cost = pl.CostEstimate(
        flops=int(6 * B * S * E * E),
        transcendentals=int(B * S),
        bytes_accessed=int(B * S * E * 2 + 3 * E * E * 2 + 3 * B * S * E * 2))

    return pl.pallas_call(
        functools.partial(qkv_kernel, num_heads=H, scale=1.0 / math.sqrt(hd)),
        out_shape=(out_shape, out_shape, out_shape),
        grid=grid,
        in_specs=[pl.BlockSpec((None, TS, E), lambda b, t: (b, t, 0))]
                 + [_resident(w, 2) for w in weights],
        out_specs=(qkv_spec, qkv_spec, qkv_spec),
        compiler_params=pltpu.CompilerParams(
            dimension_semantics=("parallel", "parallel"),
            vmem_limit_bytes=VMEM_LIMIT),
        cost_estimate=cost,
    )(x, *weights)


def attention(x, q, k, v, bias, lp, *, q_tile=128, kv_tile=128):
    B, S, E = x.shape
    H, hd = q.shape[1], q.shape[3]
    L = int(lp['res_pos'].shape[-1])
    TQ = _pick_tile(S, q_tile, 8)
    TK = _pick_tile(S, kv_tile, 128)        # lane-dense bias / score tiles
    grid = (B, S // TQ, S // TK)            # (parallel, parallel, arbitrary/reduction)

    q_spec = pl.BlockSpec((None, H, TQ, hd), lambda b, qt, kt: (b, 0, qt, 0))
    kv_spec = pl.BlockSpec((None, H, TK, hd), lambda b, qt, kt: (b, 0, kt, 0))
    bias_spec = pl.BlockSpec((H, TQ, TK), lambda b, qt, kt: (0, qt, kt))
    xres_spec = pl.BlockSpec((None, TQ, E), lambda b, qt, kt: (b, qt, 0))
    out_spec = pl.BlockSpec((None, TQ, E), lambda b, qt, kt: (b, qt, 0))

    # Traffic as actually scheduled: q/x fetched once per (b, qt); k/v/bias re-streamed per
    # (b, qt, kt); scores/context flops counted over the full grid (skipped tiles overcount a bit).
    cost = pl.CostEstimate(
        flops=int(4 * B * H * S * S * hd + 2 * B * S * E * E),
        transcendentals=int(B * H * S * S),
        bytes_accessed=int(B * S * E * 2
                           + 2 * B * (S // TQ) * S * E * 2
                           + B * H * S * S * 2
                           + 2 * B * S * E * 2
                           + E * E * 2))

    return pl.pallas_call(
        functools.partial(attention_kernel, res_pos_length=L),
        out_shape=jax.ShapeDtypeStruct((B, S, E), jnp.bfloat16),
        grid=grid,
        in_specs=[q_spec, kv_spec, kv_spec, bias_spec, xres_spec,
                  _resident(lp['wo_h'], 3), _resident(lp['bo'], 3)],
        out_specs=out_spec,
        scratch_shapes=[pltpu.VMEM((H, TQ, 1), jnp.float32),     # running max
                        pltpu.VMEM((H, TQ, 1), jnp.float32),     # running sum
                        pltpu.VMEM((H, TQ, hd), jnp.float32)],   # context accumulator
        compiler_params=pltpu.CompilerParams(
            dimension_semantics=("parallel", "parallel", "arbitrary"),
            vmem_limit_bytes=VMEM_LIMIT),
        cost_estimate=cost,
    )(q, k, v, bias, x, lp['wo_h'], lp['bo'])


def mlp_block(x, lp, *, seq_tile=256):
    B, S, E = x.shape
    TS = _pick_tile(S, seq_tile, 8)
    grid = (B, S // TS)
    weights = (lp['ln2w'], lp['ln2b'], lp['w1'], lp['b1'], lp['w2'], lp['b2'])

    cost = pl.CostEstimate(
        flops=int(16 * B * S * E * E),
        transcendentals=int(B * S),
        bytes_accessed=int(2 * B * S * E * 2 + 8 * E * E * 2))

    return pl.pallas_call(
        mlp_kernel,
        out_shape=jax.ShapeDtypeStruct((B, S, E), jnp.bfloat16),
        grid=grid,
        in_specs=[pl.BlockSpec((None, TS, E), lambda b, t: (b, t, 0))]
                 + [_resident(w, 2) for w in weights],
        out_specs=pl.BlockSpec((None, TS, E), lambda b, t: (b, t, 0)),
        compiler_params=pltpu.CompilerParams(
            dimension_semantics=("parallel", "parallel"),
            vmem_limit_bytes=VMEM_LIMIT),
        cost_estimate=cost,
    )(x, *weights)


def final_linear(x, w, b, *, row_tile=256, vocab_tile=512):
    B, S, E = x.shape
    V = w.shape[1]
    x2 = x.reshape(B * S, E)                 # bf16 residual stream streamed directly
    R = B * S
    TR = _pick_tile(R, row_tile, 8)
    TV = _pick_tile(V, vocab_tile, 128)      # lane-dense vocab tiles (<=512 keeps v7x happy)
    grid = (R // TR, V // TV)

    cost = pl.CostEstimate(flops=int(2 * R * E * V), transcendentals=0,
                           bytes_accessed=int(R * E * 2 + E * V * 2 + V * 4 + R * V * 4))

    y = pl.pallas_call(
        final_linear_kernel,
        out_shape=jax.ShapeDtypeStruct((R, V), jnp.float32),
        grid=grid,
        in_specs=[pl.BlockSpec((TR, E), lambda i, j: (i, 0)),
                  pl.BlockSpec((E, TV), lambda i, j: (0, j)),
                  pl.BlockSpec((1, TV), lambda i, j: (0, j))],
        out_specs=pl.BlockSpec((TR, TV), lambda i, j: (i, j)),
        compiler_params=pltpu.CompilerParams(
            dimension_semantics=("parallel", "parallel"),
            vmem_limit_bytes=VMEM_LIMIT),
        cost_estimate=cost,
    )(x2, w, b)
    return y.reshape(B, S, V)


def make_attention_bias(seq_len, res_pos):
    """(H, S, S) bf16 additive bias: MASK_NEG outside the causal window of length
    res_pos_length, learned relative-position value inside."""
    # TODO(synk): generate this bias inside the attention kernel from the small (H, L) table
    # (needs an in-kernel lane-dim gather or a strided-roll Toeplitz expansion); for now it is
    # precomputed per layer in JAX, stored bf16, and streamed as (H, TQ, TK) tiles.
    pos = jnp.arange(seq_len)
    rel = pos[:, None] - pos[None, :]                          # (S, S)
    valid = (rel >= 0) & (rel < res_pos.shape[-1])
    idx = jnp.clip(rel, 0, res_pos.shape[-1] - 1)
    gathered = res_pos[:, idx]                                 # (H, S, S)
    return jnp.where(valid[None, :, :], gathered, MASK_NEG).astype(jnp.bfloat16)


def transformer_forward(tokens, params, num_heads):
    # TODO(synk): embedding lookup (token gather) stays in plain JAX; everything dense is Pallas.
    x = params['emb'][tokens].astype(jnp.bfloat16)             # (B, S, E) bf16 residual stream
    S = tokens.shape[1]
    for lp in params['layers']:
        bias = make_attention_bias(S, lp['res_pos'])           # (H, S, S) bf16, per layer
        q, k, v = qkv_projection(x, lp, num_heads)             # K/V computed once per row
        x = attention(x, q, k, v, bias, lp)                    # flash over KV tiles + out-proj
        x = mlp_block(x, lp)
    return final_linear(x, params['out_w'], params['out_b'])


# ----------------------------------------------------------------------------
# Deterministic parameter init (shapes follow the PyTorch module __init__)
# ----------------------------------------------------------------------------
def init_params(key, vocab, embed_dim, num_heads, num_layers, res_pos_length=512):
    E, H = embed_dim, num_heads
    hd = E // H
    keys = jax.random.split(key, 2 + num_layers)
    params = {
        'emb': 0.05 * jax.random.normal(keys[0], (vocab, E), jnp.float32),
        'out_w': (0.05 * jax.random.normal(keys[1], (E, vocab), jnp.float32)).astype(jnp.bfloat16),
        'out_b': jnp.zeros((1, vocab), jnp.float32),
        'layers': [],
    }

    def head_major(w):   # (E, E) -> (H, E, hd): output columns [h*hd,(h+1)*hd) become head h
        return jnp.transpose(w.reshape(E, H, hd), (1, 0, 2))

    for l in range(num_layers):
        lk = jax.random.split(keys[2 + l], 7)
        wq = 0.05 * jax.random.normal(lk[0], (E, E), jnp.float32)
        wk = 0.05 * jax.random.normal(lk[1], (E, E), jnp.float32)
        wv = 0.05 * jax.random.normal(lk[2], (E, E), jnp.float32)
        wo = 0.05 * jax.random.normal(lk[3], (E, E), jnp.float32)
        params['layers'].append({
            'ln1w': jnp.ones((1, E), jnp.float32),
            'ln1b': jnp.zeros((1, E), jnp.float32),
            'wq': head_major(wq).astype(jnp.bfloat16),          # (H, E, hd)
            'bq': jnp.zeros((H, 1, hd), jnp.float32),
            'wk': head_major(wk).astype(jnp.bfloat16),
            'bk': jnp.zeros((H, 1, hd), jnp.float32),
            'wv': head_major(wv).astype(jnp.bfloat16),
            'bv': jnp.zeros((H, 1, hd), jnp.float32),
            'wo_h': wo.reshape(H, hd, E).astype(jnp.bfloat16),  # rows indexed (head, head_dim)
            'bo': jnp.zeros((1, E), jnp.float32),
            'ln2w': jnp.ones((1, E), jnp.float32),
            'ln2b': jnp.zeros((1, E), jnp.float32),
            'w1': (0.05 * jax.random.normal(lk[4], (E, 4 * E), jnp.float32)).astype(jnp.bfloat16),
            'b1': jnp.zeros((1, 4 * E), jnp.float32),
            'w2': (0.05 * jax.random.normal(lk[5], (4 * E, E), jnp.float32)).astype(jnp.bfloat16),
            'b2': jnp.zeros((1, E), jnp.float32),
            # PyTorch inits _res_pos to zeros; small random values exercise the bias path.
            'res_pos': 0.05 * jax.random.normal(lk[6], (H, res_pos_length), jnp.float32),
        })
    return params


if __name__ == "__main__":
    VOCAB = 128
    EMBED_DIM = 32
    NUM_HEADS = 4
    NUM_LAYERS = 2
    BATCH = 2
    SEQ = 8

    key = jax.random.PRNGKey(0)
    pkey, tkey = jax.random.split(key)
    params = init_params(pkey, VOCAB, EMBED_DIM, NUM_HEADS, NUM_LAYERS)
    tokens = jax.random.randint(tkey, (BATCH, SEQ), 0, VOCAB, dtype=jnp.int32)

    fwd = jax.jit(functools.partial(transformer_forward, num_heads=NUM_HEADS))
    out = fwd(tokens, params)
    jax.block_until_ready(out)
    assert out.shape == (BATCH, SEQ, VOCAB), out.shape
    assert bool(jnp.all(jnp.isfinite(out)))
    print("KERNEL_OK")
</pallas_src>

<mosaic_0001>
module attributes {stable_mosaic.version = 11 : i64} {
  func.func @attention_kernel(%arg0: i32, %arg1: i32, %arg2: i32, %arg3: memref<1x4x8x8xbf16, #tpu.memory_space<vmem>>, %arg4: memref<1x4x8x8xbf16, #tpu.memory_space<vmem>>, %arg5: memref<1x4x8x8xbf16, #tpu.memory_space<vmem>>, %arg6: memref<4x8x8xbf16, #tpu.memory_space<vmem>>, %arg7: memref<1x8x32xbf16, #tpu.memory_space<vmem>>, %arg8: memref<4x8x32xbf16, #tpu.memory_space<vmem>>, %arg9: memref<1x32xf32, #tpu.memory_space<vmem>>, %arg10: memref<1x8x32xbf16, #tpu.memory_space<vmem>>, %arg11: memref<4x8x1xf32, #tpu.memory_space<vmem>>, %arg12: memref<4x8x1xf32, #tpu.memory_space<vmem>>, %arg13: memref<4x8x8xf32, #tpu.memory_space<vmem>>) attributes {dimension_semantics = [#tpu.dimension_semantics<parallel>, #tpu.dimension_semantics<parallel>, #tpu.dimension_semantics<arbitrary>], iteration_bounds = array<i64: 2, 1, 1>, scalar_prefetch = 0 : i64, scratch_operands = 3 : i64, tpu.core_type = #tpu.core_type<tc>, window_params = [{transform_indices = @transform_0, window_bounds = array<i64: 1, 4, 8, 8>}, {transform_indices = @transform_1, window_bounds = array<i64: 1, 4, 8, 8>}, {transform_indices = @transform_2, window_bounds = array<i64: 1, 4, 8, 8>}, {transform_indices = @transform_3, window_bounds = array<i64: 4, 8, 8>}, {transform_indices = @transform_4, window_bounds = array<i64: 1, 8, 32>}, {pipeline_mode = #tpu.pipeline_mode<synchronous>, transform_indices = @transform_5, window_bounds = array<i64: 4, 8, 32>}, {pipeline_mode = #tpu.pipeline_mode<synchronous>, transform_indices = @transform_6, window_bounds = array<i64: 1, 32>}, {transform_indices = @transform_7, window_bounds = array<i64: 1, 8, 32>}]} {
    %c0_i32 = arith.constant 0 : i32
    %0 = arith.cmpi eq, %arg2, %c0_i32 : i32
    %1 = arith.extui %0 : i1 to i32
    %c0_i32_0 = arith.constant 0 : i32
    %2 = arith.cmpi ne, %1, %c0_i32_0 : i32
    scf.if %2 {
      %cst = arith.constant 0xFF800000 : f32
      %16 = vector.broadcast %cst : f32 to vector<4x8x1xf32>
      %c0 = arith.constant 0 : index
      %c0_6 = arith.constant 0 : index
      %c0_7 = arith.constant 0 : index
      %17 = vector.load %arg11[%c0, %c0_6, %c0_7] : memref<4x8x1xf32, #tpu.memory_space<vmem>>, vector<4x8x1xf32>
      tpu.vector_store %arg11[%c0, %c0_6, %c0_7], %16 {strides = array<i32>} : memref<4x8x1xf32, #tpu.memory_space<vmem>>, vector<4x8x1xf32>,
      %cst_8 = arith.constant 0.000000e+00 : f32
      %18 = vector.broadcast %cst_8 : f32 to vector<4x8x1xf32>
      %c0_9 = arith.constant 0 : index
      %c0_10 = arith.constant 0 : index
      %c0_11 = arith.constant 0 : index
      %19 = vector.load %arg12[%c0_9, %c0_10, %c0_11] : memref<4x8x1xf32, #tpu.memory_space<vmem>>, vector<4x8x1xf32>
      tpu.vector_store %arg12[%c0_9, %c0_10, %c0_11], %18 {strides = array<i32>} : memref<4x8x1xf32, #tpu.memory_space<vmem>>, vector<4x8x1xf32>,
      %cst_12 = arith.constant 0.000000e+00 : f32
      %20 = vector.broadcast %cst_12 : f32 to vector<4x8x8xf32>
      %c0_13 = arith.constant 0 : index
      %c0_14 = arith.constant 0 : index
      %c0_15 = arith.constant 0 : index
      %21 = vector.load %arg13[%c0_13, %c0_14, %c0_15] : memref<4x8x8xf32, #tpu.memory_space<vmem>>, vector<4x8x8xf32>
      tpu.vector_store %arg13[%c0_13, %c0_14, %c0_15], %20 {strides = array<i32>} : memref<4x8x8xf32, #tpu.memory_space<vmem>>, vector<4x8x8xf32>,
    } else {
    }
    %c8_i32 = arith.constant 8 : i32
    %3 = arith.muli %arg1, %c8_i32 : i32
    %c8_i32_1 = arith.constant 8 : i32
    %4 = arith.muli %arg2, %c8_i32_1 : i32
    %c7_i32 = arith.constant 7 : i32
    %5 = arith.addi %3, %c7_i32 : i32
    %6 = arith.cmpi sle, %4, %5 : i32
    %c7_i32_2 = arith.constant 7 : i32
    %7 = arith.addi %4, %c7_i32_2 : i32
    %c511_i32 = arith.constant 511 : i32
    %8 = arith.subi %3, %c511_i32 : i32
    %9 = arith.cmpi sge, %7, %8 : i32
    %10 = arith.andi %6, %9 : i1
    %11 = arith.extui %10 : i1 to i32
    %c0_i32_3 = arith.constant 0 : i32
    %12 = arith.cmpi ne, %11, %c0_i32_3 : i32
    scf.if %12 {
      %c0 = arith.constant 0 : index
      %c0_6 = arith.constant 0 : index
      %c0_7 = arith.constant 0 : index
      %c0_8 = arith.constant 0 : index
      %16 = vector.load %arg3[%c0, %c0_6, %c0_7, %c0_8] : memref<1x4x8x8xbf16, #tpu.memory_space<vmem>>, vector<1x4x8x8xbf16>
      %17 = vector.shape_cast %16 : vector<1x4x8x8xbf16> to vector<4x8x8xbf16>
      %c0_9 = arith.constant 0 : index
      %c0_10 = arith.constant 0 : index
      %c0_11 = arith.constant 0 : index
      %c0_12 = arith.constant 0 : index
      %18 = vector.load %arg4[%c0_9, %c0_10, %c0_11, %c0_12] : memref<1x4x8x8xbf16, #tpu.memory_space<vmem>>, vector<1x4x8x8xbf16>
      %19 = vector.shape_cast %18 : vector<1x4x8x8xbf16> to vector<4x8x8xbf16>
      "tpu.trace_start"() <{level = 10 : i32, message = "hqd,hkd->hqk"}> : () -> ()
      %cst = arith.constant dense<0.000000e+00> : vector<4x8x8xf32>
      %20 = tpu.matmul %17, %19, %cst {dimension_numbers = #tpu.dot_dimension_numbers<[2], [2], [1], [1], [0, 0, 0, 1, 1, 1], [0], [0]>} : vector<4x8x8xbf16>, vector<4x8x8xbf16>, vector<4x8x8xf32> -> vector<4x8x8xf32>
      "tpu.trace_stop"() : () -> ()
      %c0_13 = arith.constant 0 : index
      %c0_14 = arith.constant 0 : index
      %c0_15 = arith.constant 0 : index
      %21 = vector.load %arg6[%c0_13, %c0_14, %c0_15] : memref<4x8x8xbf16, #tpu.memory_space<vmem>>, vector<4x8x8xbf16>
      %22 = arith.extf %21 : vector<4x8x8xbf16> to vector<4x8x8xf32>
      %23 = arith.addf %20, %22 : vector<4x8x8xf32>
      %c0_16 = arith.constant 0 : index
      %c0_17 = arith.constant 0 : index
      %c0_18 = arith.constant 0 : index
      %24 = vector.load %arg11[%c0_16, %c0_17, %c0_18] : memref<4x8x1xf32, #tpu.memory_space<vmem>>, vector<4x8x1xf32>
      %cst_19 = arith.constant dense<0xFF800000> : vector<4x8xf32>
      %25 = vector.multi_reduction <maximumf>, %23, %cst_19 [2] : vector<4x8x8xf32> to vector<4x8xf32>
      %26 = vector.shape_cast %25 : vector<4x8xf32> to vector<4x8x1xf32>
      %27 = arith.maximumf %24, %26 : vector<4x8x1xf32>
      %28 = arith.subf %24, %27 : vector<4x8x1xf32>
      %29 = math.exp %28 : vector<4x8x1xf32>
      %30 = vector.broadcast %27 : vector<4x8x1xf32> to vector<4x8x8xf32>
      %31 = arith.subf %23, %30 : vector<4x8x8xf32>
      %32 = math.exp %31 : vector<4x8x8xf32>
      %c0_20 = arith.constant 0 : index
      %c0_21 = arith.constant 0 : index
      %c0_22 = arith.constant 0 : index
      %33 = vector.load %arg12[%c0_20, %c0_21, %c0_22] : memref<4x8x1xf32, #tpu.memory_space<vmem>>, vector<4x8x1xf32>
      %34 = arith.mulf %29, %33 : vector<4x8x1xf32>
      %cst_23 = arith.constant dense<0.000000e+00> : vector<4x8xf32>
      %35 = vector.multi_reduction <add>, %32, %cst_23 [2] : vector<4x8x8xf32> to vector<4x8xf32>
      %36 = vector.shape_cast %35 : vector<4x8xf32> to vector<4x8x1xf32>
      %37 = arith.addf %34, %36 : vector<4x8x1xf32>
      %c0_24 = arith.constant 0 : index
      %c0_25 = arith.constant 0 : index
      %c0_26 = arith.constant 0 : index
      %38 = vector.load %arg12[%c0_24, %c0_25, %c0_26] : memref<4x8x1xf32, #tpu.memory_space<vmem>>, vector<4x8x1xf32>
      tpu.vector_store %arg12[%c0_24, %c0_25, %c0_26], %37 {strides = array<i32>} : memref<4x8x1xf32, #tpu.memory_space<vmem>>, vector<4x8x1xf32>,
      %c0_27 = arith.constant 0 : index
      %c0_28 = arith.constant 0 : index
      %c0_29 = arith.constant 0 : index
      %39 = vector.load %arg13[%c0_27, %c0_28, %c0_29] : memref<4x8x8xf32, #tpu.memory_space<vmem>>, vector<4x8x8xf32>
      %40 = vector.broadcast %29 : vector<4x8x1xf32> to vector<4x8x8xf32>
      %41 = arith.mulf %40, %39 : vector<4x8x8xf32>
      %42 = arith.truncf %32 : vector<4x8x8xf32> to vector<4x8x8xbf16>
      %c0_30 = arith.constant 0 : index
      %c0_31 = arith.constant 0 : index
      %c0_32 = arith.constant 0 : index
      %c0_33 = arith.constant 0 : index
      %43 = vector.load %arg5[%c0_30, %c0_31, %c0_32, %c0_33] : memref<1x4x8x8xbf16, #tpu.memory_space<vmem>>, vector<1x4x8x8xbf16>
      %44 = vector.shape_cast %43 : vector<1x4x8x8xbf16> to vector<4x8x8xbf16>
      "tpu.trace_start"() <{level = 10 : i32, message = "hqk,hkd->hqd"}> : () -> ()
      %cst_34 = arith.constant dense<0.000000e+00> : vector<4x8x8xf32>
      %45 = tpu.matmul %42, %44, %cst_34 {dimension_numbers = #tpu.dot_dimension_numbers<[2], [1], [1], [2], [0, 0, 0, 1, 1, 2], [0], [0]>} : vector<4x8x8xbf16>, vector<4x8x8xbf16>, vector<4x8x8xf32> -> vector<4x8x8xf32>
      "tpu.trace_stop"() : () -> ()
      %46 = arith.addf %41, %45 : vector<4x8x8xf32>
      %c0_35 = arith.constant 0 : index
      %c0_36 = arith.constant 0 : index
      %c0_37 = arith.constant 0 : index
      %47 = vector.load %arg13[%c0_35, %c0_36, %c0_37] : memref<4x8x8xf32, #tpu.memory_space<vmem>>, vector<4x8x8xf32>
      tpu.vector_store %arg13[%c0_35, %c0_36, %c0_37], %46 {strides = array<i32>} : memref<4x8x8xf32, #tpu.memory_space<vmem>>, vector<4x8x8xf32>,
      %c0_38 = arith.constant 0 : index
      %c0_39 = arith.constant 0 : index
      %c0_40 = arith.constant 0 : index
      %48 = vector.load %arg11[%c0_38, %c0_39, %c0_40] : memref<4x8x1xf32, #tpu.memory_space<vmem>>, vector<4x8x1xf32>
      tpu.vector_store %arg11[%c0_38, %c0_39, %c0_40], %27 {strides = array<i32>} : memref<4x8x1xf32, #tpu.memory_space<vmem>>, vector<4x8x1xf32>,
    } else {
    }
    %c0_i32_4 = arith.constant 0 : i32
    %13 = arith.cmpi eq, %arg2, %c0_i32_4 : i32
    %14 = arith.extui %13 : i1 to i32
    %c0_i32_5 = arith.constant 0 : i32
    %15 = arith.cmpi ne, %14, %c0_i32_5 : i32
    scf.if %15 {
      %c0 = arith.constant 0 : index
      %c0_6 = arith.constant 0 : index
      %c0_7 = arith.constant 0 : index
      %16 = vector.load %arg13[%c0, %c0_6, %c0_7] : memref<4x8x8xf32, #tpu.memory_space<vmem>>, vector<4x8x8xf32>
      %c0_8 = arith.constant 0 : index
      %c0_9 = arith.constant 0 : index
      %c0_10 = arith.constant 0 : index
      %17 = vector.load %arg12[%c0_8, %c0_9, %c0_10] : memref<4x8x1xf32, #tpu.memory_space<vmem>>, vector<4x8x1xf32>
      %18 = vector.broadcast %17 : vector<4x8x1xf32> to vector<4x8x8xf32>
      %19 = arith.divf %16, %18 : vector<4x8x8xf32>
      %20 = arith.truncf %19 : vector<4x8x8xf32> to vector<4x8x8xbf16>
      %c0_11 = arith.constant 0 : index
      %c0_12 = arith.constant 0 : index
      %21 = vector.load %arg9[%c0_11, %c0_12] : memref<1x32xf32, #tpu.memory_space<vmem>>, vector<1x32xf32>
      %22 = vector.extract_strided_slice %20 {offsets = [0, 0, 0], sizes = [1, 8, 8], strides = [1, 1, 1]} : vector<4x8x8xbf16> to vector<1x8x8xbf16>
      %23 = vector.shape_cast %22 : vector<1x8x8xbf16> to vector<8x8xbf16>
      %c0_13 = arith.constant 0 : index
      %c0_14 = arith.constant 0 : index
      %c0_15 = arith.constant 0 : index
      %24 = vector.load %arg8[%c0_13, %c0_14, %c0_15] : memref<4x8x32xbf16, #tpu.memory_space<vmem>>, vector<1x8x32xbf16>
      %25 = vector.shape_cast %24 : vector<1x8x32xbf16> to vector<8x32xbf16>
      %cst = arith.constant dense<0.000000e+00> : vector<8x32xf32>
      %26 = tpu.matmul %23, %25, %cst {dimension_numbers = #tpu.dot_dimension_numbers<[1], [0], [0], [1], [0, 0, 1, 1], [], []>} : vector<8x8xbf16>, vector<8x32xbf16>, vector<8x32xf32> -> vector<8x32xf32>
      %27 = vector.broadcast %21 : vector<1x32xf32> to vector<8x32xf32>
      %28 = arith.addf %27, %26 : vector<8x32xf32>
      %29 = vector.extract_strided_slice %20 {offsets = [1, 0, 0], sizes = [1, 8, 8], strides = [1, 1, 1]} : vector<4x8x8xbf16> to vector<1x8x8xbf16>
      %30 = vector.shape_cast %29 : vector<1x8x8xbf16> to vector<8x8xbf16>
      %c1 = arith.constant 1 : index
      %c0_16 = arith.constant 0 : index
      %c0_17 = arith.constant 0 : index
      %31 = vector.load %arg8[%c1, %c0_16, %c0_17] : memref<4x8x32xbf16, #tpu.memory_space<vmem>>, vector<1x8x32xbf16>
      %32 = vector.shape_cast %31 : vector<1x8x32xbf16> to vector<8x32xbf16>
      %cst_18 = arith.constant dense<0.000000e+00> : vector<8x32xf32>
      %33 = tpu.matmul %30, %32, %cst_18 {dimension_numbers = #tpu.dot_dimension_numbers<[1], [0], [0], [1], [0, 0, 1, 1], [], []>} : vector<8x8xbf16>, vector<8x32xbf16>, vector<8x32xf32> -> vector<8x32xf32>
      %34 = arith.addf %28, %33 : vector<8x32xf32>
      %35 = vector.extract_strided_slice %20 {offsets = [2, 0, 0], sizes = [1, 8, 8], strides = [1, 1, 1]} : vector<4x8x8xbf16> to vector<1x8x8xbf16>
      %36 = vector.shape_cast %35 : vector<1x8x8xbf16> to vector<8x8xbf16>
      %c2 = arith.constant 2 : index
      %c0_19 = arith.constant 0 : index
      %c0_20 = arith.constant 0 : index
      %37 = vector.load %arg8[%c2, %c0_19, %c0_20] : memref<4x8x32xbf16, #tpu.memory_space<vmem>>, vector<1x8x32xbf16>
      %38 = vector.shape_cast %37 : vector<1x8x32xbf16> to vector<8x32xbf16>
      %cst_21 = arith.constant dense<0.000000e+00> : vector<8x32xf32>
      %39 = tpu.matmul %36, %38, %cst_21 {dimension_numbers = #tpu.dot_dimension_numbers<[1], [0], [0], [1], [0, 0, 1, 1], [], []>} : vector<8x8xbf16>, vector<8x32xbf16>, vector<8x32xf32> -> vector<8x32xf32>
      %40 = arith.addf %34, %39 : vector<8x32xf32>
      %41 = vector.extract_strided_slice %20 {offsets = [3, 0, 0], sizes = [1, 8, 8], strides = [1, 1, 1]} : vector<4x8x8xbf16> to vector<1x8x8xbf16>
      %42 = vector.shape_cast %41 : vector<1x8x8xbf16> to vector<8x8xbf16>
      %c3 = arith.constant 3 : index
      %c0_22 = arith.constant 0 : index
      %c0_23 = arith.constant 0 : index
      %43 = vector.load %arg8[%c3, %c0_22, %c0_23] : memref<4x8x32xbf16, #tpu.memory_space<vmem>>, vector<1x8x32xbf16>
      %44 = vector.shape_cast %43 : vector<1x8x32xbf16> to vector<8x32xbf16>
      %cst_24 = arith.constant dense<0.000000e+00> : vector<8x32xf32>
      %45 = tpu.matmul %42, %44, %cst_24 {dimension_numbers = #tpu.dot_dimension_numbers<[1], [0], [0], [1], [0, 0, 1, 1], [], []>} : vector<8x8xbf16>, vector<8x32xbf16>, vector<8x32xf32> -> vector<8x32xf32>
      %46 = arith.addf %40, %45 : vector<8x32xf32>
      %c0_25 = arith.constant 0 : index
      %c0_26 = arith.constant 0 : index
      %c0_27 = arith.constant 0 : index
      %47 = vector.load %arg7[%c0_25, %c0_26, %c0_27] : memref<1x8x32xbf16, #tpu.memory_space<vmem>>, vector<1x8x32xbf16>
      %48 = vector.shape_cast %47 : vector<1x8x32xbf16> to vector<8x32xbf16>
      %49 = arith.extf %48 : vector<8x32xbf16> to vector<8x32xf32>
      %50 = arith.addf %49, %46 : vector<8x32xf32>
      %51 = arith.truncf %50 : vector<8x32xf32> to vector<8x32xbf16>
      %c0_28 = arith.constant 0 : index
      %c0_29 = arith.constant 0 : index
      %c0_30 = arith.constant 0 : index
      %52 = vector.load %arg10[%c0_28, %c0_29, %c0_30] : memref<1x8x32xbf16, #tpu.memory_space<vmem>>, vector<1x8x32xbf16>
      %53 = vector.shape_cast %52 : vector<1x8x32xbf16> to vector<8x32xbf16>
      %54 = vector.shape_cast %51 : vector<8x32xbf16> to vector<1x8x32xbf16>
      tpu.vector_store %arg10[%c0_28, %c0_29, %c0_30], %54 {strides = array<i32>} : memref<1x8x32xbf16, #tpu.memory_space<vmem>>, vector<1x8x32xbf16>,
    } else {
    }
    return
  }
  func.func @transform_0(%arg0: i32, %arg1: i32, %arg2: i32) -> (i32, i32, i32, i32) {
    %c0_i32 = arith.constant 0 : i32
    %c0_i32_0 = arith.constant 0 : i32
    %c0_i32_1 = arith.constant 0 : i32
    return %arg0, %c0_i32, %arg1, %c0_i32_0 : i32, i32, i32, i32
  }
  func.func @transform_1(%arg0: i32, %arg1: i32, %arg2: i32) -> (i32, i32, i32, i32) {
    %c0_i32 = arith.constant 0 : i32
    %c0_i32_0 = arith.constant 0 : i32
    %c0_i32_1 = arith.constant 0 : i32
    return %arg0, %c0_i32, %arg2, %c0_i32_0 : i32, i32, i32, i32
  }
  func.func @transform_2(%arg0: i32, %arg1: i32, %arg2: i32) -> (i32, i32, i32, i32) {
    %c0_i32 = arith.constant 0 : i32
    %c0_i32_0 = arith.constant 0 : i32
    %c0_i32_1 = arith.constant 0 : i32
    return %arg0, %c0_i32, %arg2, %c0_i32_0 : i32, i32, i32, i32
  }
  func.func @transform_3(%arg0: i32, %arg1: i32, %arg2: i32) -> (i32, i32, i32) {
    %c0_i32 = arith.constant 0 : i32
    %c0_i32_0 = arith.constant 0 : i32
    return %c0_i32, %arg1, %arg2 : i32, i32, i32
  }
  func.func @transform_4(%arg0: i32, %arg1: i32, %arg2: i32) -> (i32, i32, i32) {
    %c0_i32 = arith.constant 0 : i32
    %c0_i32_0 = arith.constant 0 : i32
    return %arg0, %arg1, %c0_i32 : i32, i32, i32
  }
  func.func @transform_5(%arg0: i32, %arg1: i32, %arg2: i32) -> (i32, i32, i32) {
    %c0_i32 = arith.constant 0 : i32
    %c0_i32_0 = arith.constant 0 : i32
    %c0_i32_1 = arith.constant 0 : i32
    %c0_i32_2 = arith.constant 0 : i32
    return %c0_i32, %c0_i32_0, %c0_i32_1 : i32, i32, i32
  }
  func.func @transform_6(%arg0: i32, %arg1: i32, %arg2: i32) -> (i32, i32) {
    %c0_i32 = arith.constant 0 : i32
    %c0_i32_0 = arith.constant 0 : i32
    %c0_i32_1 = arith.constant 0 : i32
    return %c0_i32, %c0_i32_0 : i32, i32
  }
  func.func @transform_7(%arg0: i32, %arg1: i32, %arg2: i32) -> (i32, i32, i32) {
    %c0_i32 = arith.constant 0 : i32
    %c0_i32_0 = arith.constant 0 : i32
    return %arg0, %arg1, %c0_i32 : i32, i32, i32
  }
}

module attributes {stable_mosaic.version = 11 : i64} {
  func.func @qkv_kernel(%arg0: i32, %arg1: i32, %arg2: memref<1x8x32xbf16, #tpu.memory_space<vmem>>, %arg3: memref<1x32xf32, #tpu.memory_space<vmem>>, %arg4: memref<1x32xf32, #tpu.memory_space<vmem>>, %arg5: memref<4x32x8xbf16, #tpu.memory_space<vmem>>, %arg6: memref<4x1x8xf32, #tpu.memory_space<vmem>>, %arg7: memref<4x32x8xbf16, #tpu.memory_space<vmem>>, %arg8: memref<4x1x8xf32, #tpu.memory_space<vmem>>, %arg9: memref<4x32x8xbf16, #tpu.memory_space<vmem>>, %arg10: memref<4x1x8xf32, #tpu.memory_space<vmem>>, %arg11: memref<1x4x8x8xbf16, #tpu.memory_space<vmem>>, %arg12: memref<1x4x8x8xbf16, #tpu.memory_space<vmem>>, %arg13: memref<1x4x8x8xbf16, #tpu.memory_space<vmem>>) attributes {dimension_semantics = [#tpu.dimension_semantics<parallel>, #tpu.dimension_semantics<parallel>], iteration_bounds = array<i64: 2, 1>, scalar_prefetch = 0 : i64, scratch_operands = 0 : i64, tpu.core_type = #tpu.core_type<tc>, window_params = [{transform_indices = @transform_0, window_bounds = array<i64: 1, 8, 32>}, {pipeline_mode = #tpu.pipeline_mode<synchronous>, transform_indices = @transform_1, window_bounds = array<i64: 1, 32>}, {pipeline_mode = #tpu.pipeline_mode<synchronous>, transform_indices = @transform_2, window_bounds = array<i64: 1, 32>}, {pipeline_mode = #tpu.pipeline_mode<synchronous>, transform_indices = @transform_3, window_bounds = array<i64: 4, 32, 8>}, {pipeline_mode = #tpu.pipeline_mode<synchronous>, transform_indices = @transform_4, window_bounds = array<i64: 4, 1, 8>}, {pipeline_mode = #tpu.pipeline_mode<synchronous>, transform_indices = @transform_5, window_bounds = array<i64: 4, 32, 8>}, {pipeline_mode = #tpu.pipeline_mode<synchronous>, transform_indices = @transform_6, window_bounds = array<i64: 4, 1, 8>}, {pipeline_mode = #tpu.pipeline_mode<synchronous>, transform_indices = @transform_7, window_bounds = array<i64: 4, 32, 8>}, {pipeline_mode = #tpu.pipeline_mode<synchronous>, transform_indices = @transform_8, window_bounds = array<i64: 4, 1, 8>}, {transform_indices = @transform_9, window_bounds = array<i64: 1, 4, 8, 8>}, {transform_indices = @transform_10, window_bounds = array<i64: 1, 4, 8, 8>}, {transform_indices = @transform_11, window_bounds = array<i64: 1, 4, 8, 8>}]} {
    %c0 = arith.constant 0 : index
    %c0_0 = arith.constant 0 : index
    %c0_1 = arith.constant 0 : index
    %0 = vector.load %arg2[%c0, %c0_0, %c0_1] : memref<1x8x32xbf16, #tpu.memory_space<vmem>>, vector<1x8x32xbf16>
    %1 = vector.shape_cast %0 : vector<1x8x32xbf16> to vector<8x32xbf16>
    %2 = arith.extf %1 : vector<8x32xbf16> to vector<8x32xf32>
    %c0_2 = arith.constant 0 : index
    %c0_3 = arith.constant 0 : index
    %3 = vector.load %arg3[%c0_2, %c0_3] : memref<1x32xf32, #tpu.memory_space<vmem>>, vector<1x32xf32>
    %c0_4 = arith.constant 0 : index
    %c0_5 = arith.constant 0 : index
    %4 = vector.load %arg4[%c0_4, %c0_5] : memref<1x32xf32, #tpu.memory_space<vmem>>, vector<1x32xf32>
    %cst = arith.constant dense<0.000000e+00> : vector<8xf32>
    %5 = vector.multi_reduction <add>, %2, %cst [1] : vector<8x32xf32> to vector<8xf32>
    %6 = vector.shape_cast %5 : vector<8xf32> to vector<8x1xf32>
    %cst_6 = arith.constant 3.200000e+01 : f32
    %7 = vector.broadcast %cst_6 : f32 to vector<8x1xf32>
    %8 = arith.divf %6, %7 : vector<8x1xf32>
    %9 = vector.broadcast %8 : vector<8x1xf32> to vector<8x32xf32>
    %10 = arith.subf %2, %9 : vector<8x32xf32>
    %11 = arith.mulf %10, %10 : vector<8x32xf32>
    %cst_7 = arith.constant dense<0.000000e+00> : vector<8xf32>
    %12 = vector.multi_reduction <add>, %11, %cst_7 [1] : vector<8x32xf32> to vector<8xf32>
    %13 = vector.shape_cast %12 : vector<8xf32> to vector<8x1xf32>
    %cst_8 = arith.constant 3.200000e+01 : f32
    %14 = vector.broadcast %cst_8 : f32 to vector<8x1xf32>
    %15 = arith.divf %13, %14 : vector<8x1xf32>
    %16 = vector.broadcast %8 : vector<8x1xf32> to vector<8x32xf32>
    %17 = arith.subf %2, %16 : vector<8x32xf32>
    %cst_9 = arith.constant 9.99999974E-6 : f32
    %18 = vector.broadcast %cst_9 : f32 to vector<8x1xf32>
    %19 = arith.addf %15, %18 : vector<8x1xf32>
    %20 = math.rsqrt %19 : vector<8x1xf32>
    %21 = vector.broadcast %20 : vector<8x1xf32> to vector<8x32xf32>
    %22 = arith.mulf %17, %21 : vector<8x32xf32>
    %23 = vector.broadcast %3 : vector<1x32xf32> to vector<8x32xf32>
    %24 = arith.mulf %22, %23 : vector<8x32xf32>
    %25 = vector.broadcast %4 : vector<1x32xf32> to vector<8x32xf32>
    %26 = arith.addf %24, %25 : vector<8x32xf32>
    %27 = arith.truncf %26 : vector<8x32xf32> to vector<8x32xbf16>
    %c0_10 = arith.constant 0 : index
    %c0_11 = arith.constant 0 : index
    %c0_12 = arith.constant 0 : index
    %28 = vector.load %arg5[%c0_10, %c0_11, %c0_12] : memref<4x32x8xbf16, #tpu.memory_space<vmem>>, vector<1x32x8xbf16>
    %29 = vector.shape_cast %28 : vector<1x32x8xbf16> to vector<32x8xbf16>
    %cst_13 = arith.constant dense<0.000000e+00> : vector<8x8xf32>
    %30 = tpu.matmul %27, %29, %cst_13 {dimension_numbers = #tpu.dot_dimension_numbers<[1], [0], [0], [1], [0, 0, 1, 1], [], []>} : vector<8x32xbf16>, vector<32x8xbf16>, vector<8x8xf32> -> vector<8x8xf32>
    %c0_14 = arith.constant 0 : index
    %c0_15 = arith.constant 0 : index
    %c0_16 = arith.constant 0 : index
    %31 = vector.load %arg6[%c0_14, %c0_15, %c0_16] : memref<4x1x8xf32, #tpu.memory_space<vmem>>, vector<1x1x8xf32>
    %32 = vector.shape_cast %31 : vector<1x1x8xf32> to vector<1x8xf32>
    %33 = vector.broadcast %32 : vector<1x8xf32> to vector<8x8xf32>
    %34 = arith.addf %30, %33 : vector<8x8xf32>
    %c0_17 = arith.constant 0 : index
    %c0_18 = arith.constant 0 : index
    %c0_19 = arith.constant 0 : index
    %35 = vector.load %arg7[%c0_17, %c0_18, %c0_19] : memref<4x32x8xbf16, #tpu.memory_space<vmem>>, vector<1x32x8xbf16>
    %36 = vector.shape_cast %35 : vector<1x32x8xbf16> to vector<32x8xbf16>
    %cst_20 = arith.constant dense<0.000000e+00> : vector<8x8xf32>
    %37 = tpu.matmul %27, %36, %cst_20 {dimension_numbers = #tpu.dot_dimension_numbers<[1], [0], [0], [1], [0, 0, 1, 1], [], []>} : vector<8x32xbf16>, vector<32x8xbf16>, vector<8x8xf32> -> vector<8x8xf32>
    %c0_21 = arith.constant 0 : index
    %c0_22 = arith.constant 0 : index
    %c0_23 = arith.constant 0 : index
    %38 = vector.load %arg8[%c0_21, %c0_22, %c0_23] : memref<4x1x8xf32, #tpu.memory_space<vmem>>, vector<1x1x8xf32>
    %39 = vector.shape_cast %38 : vector<1x1x8xf32> to vector<1x8xf32>
    %40 = vector.broadcast %39 : vector<1x8xf32> to vector<8x8xf32>
    %41 = arith.addf %37, %40 : vector<8x8xf32>
    %c0_24 = arith.constant 0 : index
    %c0_25 = arith.constant 0 : index
    %c0_26 = arith.constant 0 : index
    %42 = vector.load %arg9[%c0_24, %c0_25, %c0_26] : memref<4x32x8xbf16, #tpu.memory_space<vmem>>, vector<1x32x8xbf16>
    %43 = vector.shape_cast %42 : vector<1x32x8xbf16> to vector<32x8xbf16>
    %cst_27 = arith.constant dense<0.000000e+00> : vector<8x8xf32>
    %44 = tpu.matmul %27, %43, %cst_27 {dimension_numbers = #tpu.dot_dimension_numbers<[1], [0], [0], [1], [0, 0, 1, 1], [], []>} : vector<8x32xbf16>, vector<32x8xbf16>, vector<8x8xf32> -> vector<8x8xf32>
    %c0_28 = arith.constant 0 : index
    %c0_29 = arith.constant 0 : index
    %c0_30 = arith.constant 0 : index
    %45 = vector.load %arg10[%c0_28, %c0_29, %c0_30] : memref<4x1x8xf32, #tpu.memory_space<vmem>>, vector<1x1x8xf32>
    %46 = vector.shape_cast %45 : vector<1x1x8xf32> to vector<1x8xf32>
    %47 = vector.broadcast %46 : vector<1x8xf32> to vector<8x8xf32>
    %48 = arith.addf %44, %47 : vector<8x8xf32>
    %cst_31 = arith.constant 0.353553385 : f32
    %49 = vector.broadcast %cst_31 : f32 to vector<8x8xf32>
    %50 = arith.mulf %34, %49 : vector<8x8xf32>
    %51 = arith.truncf %50 : vector<8x8xf32> to vector<8x8xbf16>
    %c0_32 = arith.constant 0 : index
    %c0_33 = arith.constant 0 : index
    %c0_34 = arith.constant 0 : index
    %c0_35 = arith.constant 0 : index
    %52 = vector.load %arg11[%c0_32, %c0_33, %c0_34, %c0_35] : memref<1x4x8x8xbf16, #tpu.memory_space<vmem>>, vector<1x1x8x8xbf16>
    %53 = vector.shape_cast %52 : vector<1x1x8x8xbf16> to vector<8x8xbf16>
    %54 = vector.shape_cast %51 : vector<8x8xbf16> to vector<1x1x8x8xbf16>
    tpu.vector_store %arg11[%c0_32, %c0_33, %c0_34, %c0_35], %54 {strides = array<i32>} : memref<1x4x8x8xbf16, #tpu.memory_space<vmem>>, vector<1x1x8x8xbf16>,
    %55 = arith.truncf %41 : vector<8x8xf32> to vector<8x8xbf16>
    %c0_36 = arith.constant 0 : index
    %c0_37 = arith.constant 0 : index
    %c0_38 = arith.constant 0 : index
    %c0_39 = arith.constant 0 : index
    %56 = vector.load %arg12[%c0_36, %c0_37, %c0_38, %c0_39] : memref<1x4x8x8xbf16, #tpu.memory_space<vmem>>, vector<1x1x8x8xbf16>
    %57 = vector.shape_cast %56 : vector<1x1x8x8xbf16> to vector<8x8xbf16>
    %58 = vector.shape_cast %55 : vector<8x8xbf16> to vector<1x1x8x8xbf16>
    tpu.vector_store %arg12[%c0_36, %c0_37, %c0_38, %c0_39], %58 {strides = array<i32>} : memref<1x4x8x8xbf16, #tpu.memory_space<vmem>>, vector<1x1x8x8xbf16>,
    %59 = arith.truncf %48 : vector<8x8xf32> to vector<8x8xbf16>
    %c0_40 = arith.constant 0 : index
    %c0_41 = arith.constant 0 : index
    %c0_42 = arith.constant 0 : index
    %c0_43 = arith.constant 0 : index
    %60 = vector.load %arg13[%c0_40, %c0_41, %c0_42, %c0_43] : memref<1x4x8x8xbf16, #tpu.memory_space<vmem>>, vector<1x1x8x8xbf16>
    %61 = vector.shape_cast %60 : vector<1x1x8x8xbf16> to vector<8x8xbf16>
    %62 = vector.shape_cast %59 : vector<8x8xbf16> to vector<1x1x8x8xbf16>
    tpu.vector_store %arg13[%c0_40, %c0_41, %c0_42, %c0_43], %62 {strides = array<i32>} : memref<1x4x8x8xbf16, #tpu.memory_space<vmem>>, vector<1x1x8x8xbf16>,
    %c1 = arith.constant 1 : index
    %c0_44 = arith.constant 0 : index
    %c0_45 = arith.constant 0 : index
    %63 = vector.load %arg5[%c1, %c0_44, %c0_45] : memref<4x32x8xbf16, #tpu.memory_space<vmem>>, vector<1x32x8xbf16>
    %64 = vector.shape_cast %63 : vector<1x32x8xbf16> to vector<32x8xbf16>
    %cst_46 = arith.constant dense<0.000000e+00> : vector<8x8xf32>
    %65 = tpu.matmul %27, %64, %cst_46 {dimension_numbers = #tpu.dot_dimension_numbers<[1], [0], [0], [1], [0, 0, 1, 1], [], []>} : vector<8x32xbf16>, vector<32x8xbf16>, vector<8x8xf32> -> vector<8x8xf32>
    %c1_47 = arith.constant 1 : index
    %c0_48 = arith.constant 0 : index
    %c0_49 = arith.constant 0 : index
    %66 = vector.load %arg6[%c1_47, %c0_48, %c0_49] : memref<4x1x8xf32, #tpu.memory_space<vmem>>, vector<1x1x8xf32>
    %67 = vector.shape_cast %66 : vector<1x1x8xf32> to vector<1x8xf32>
    %68 = vector.broadcast %67 : vector<1x8xf32> to vector<8x8xf32>
    %69 = arith.addf %65, %68 : vector<8x8xf32>
    %c1_50 = arith.constant 1 : index
    %c0_51 = arith.constant 0 : index
    %c0_52 = arith.constant 0 : index
    %70 = vector.load %arg7[%c1_50, %c0_51, %c0_52] : memref<4x32x8xbf16, #tpu.memory_space<vmem>>, vector<1x32x8xbf16>
    %71 = vector.shape_cast %70 : vector<1x32x8xbf16> to vector<32x8xbf16>
    %cst_53 = arith.constant dense<0.000000e+00> : vector<8x8xf32>
    %72 = tpu.matmul %27, %71, %cst_53 {dimension_numbers = #tpu.dot_dimension_numbers<[1], [0], [0], [1], [0, 0, 1, 1], [], []>} : vector<8x32xbf16>, vector<32x8xbf16>, vector<8x8xf32> -> vector<8x8xf32>
    %c1_54 = arith.constant 1 : index
    %c0_55 = arith.constant 0 : index
    %c0_56 = arith.constant 0 : index
    %73 = vector.load %arg8[%c1_54, %c0_55, %c0_56] : memref<4x1x8xf32, #tpu.memory_space<vmem>>, vector<1x1x8xf32>
    %74 = vector.shape_cast %73 : vector<1x1x8xf32> to vector<1x8xf32>
    %75 = vector.broadcast %74 : vector<1x8xf32> to vector<8x8xf32>
    %76 = arith.addf %72, %75 : vector<8x8xf32>
    %c1_57 = arith.constant 1 : index
    %c0_58 = arith.constant 0 : index
    %c0_59 = arith.constant 0 : index
    %77 = vector.load %arg9[%c1_57, %c0_58, %c0_59] : memref<4x32x8xbf16, #tpu.memory_space<vmem>>, vector<1x32x8xbf16>
    %78 = vector.shape_cast %77 : vector<1x32x8xbf16> to vector<32x8xbf16>
    %cst_60 = arith.constant dense<0.000000e+00> : vector<8x8xf32>
    %79 = tpu.matmul %27, %78, %cst_60 {dimension_numbers = #tpu.dot_dimension_numbers<[1], [0], [0], [1], [0, 0, 1, 1], [], []>} : vector<8x32xbf16>, vector<32x8xbf16>, vector<8x8xf32> -> vector<8x8xf32>
    %c1_61 = arith.constant 1 : index
    %c0_62 = arith.constant 0 : index
    %c0_63 = arith.constant 0 : index
    %80 = vector.load %arg10[%c1_61, %c0_62, %c0_63] : memref<4x1x8xf32, #tpu.memory_space<vmem>>, vector<1x1x8xf32>
    %81 = vector.shape_cast %80 : vector<1x1x8xf32> to vector<1x8xf32>
    %82 = vector.broadcast %81 : vector<1x8xf32> to vector<8x8xf32>
    %83 = arith.addf %79, %82 : vector<8x8xf32>
    %cst_64 = arith.constant 0.353553385 : f32
    %84 = vector.broadcast %cst_64 : f32 to vector<8x8xf32>
    %85 = arith.mulf %69, %84 : vector<8x8xf32>
    %86 = arith.truncf %85 : vector<8x8xf32> to vector<8x8xbf16>
    %c0_65 = arith.constant 0 : index
    %c1_66 = arith.constant 1 : index
    %c0_67 = arith.constant 0 : index
    %c0_68 = arith.constant 0 : index
    %87 = vector.load %arg11[%c0_65, %c1_66, %c0_67, %c0_68] : memref<1x4x8x8xbf16, #tpu.memory_space<vmem>>, vector<1x1x8x8xbf16>
    %88 = vector.shape_cast %87 : vector<1x1x8x8xbf16> to vector<8x8xbf16>
    %89 = vector.shape_cast %86 : vector<8x8xbf16> to vector<1x1x8x8xbf16>
    tpu.vector_store %arg11[%c0_65, %c1_66, %c0_67, %c0_68], %89 {strides = array<i32>} : memref<1x4x8x8xbf16, #tpu.memory_space<vmem>>, vector<1x1x8x8xbf16>,
    %90 = arith.truncf %76 : vector<8x8xf32> to vector<8x8xbf16>
    %c0_69 = arith.constant 0 : index
    %c1_70 = arith.constant 1 : index
    %c0_71 = arith.constant 0 : index
    %c0_72 = arith.constant 0 : index
    %91 = vector.load %arg12[%c0_69, %c1_70, %c0_71, %c0_72] : memref<1x4x8x8xbf16, #tpu.memory_space<vmem>>, vector<1x1x8x8xbf16>
    %92 = vector.shape_cast %91 : vector<1x1x8x8xbf16> to vector<8x8xbf16>
    %93 = vector.shape_cast %90 : vector<8x8xbf16> to vector<1x1x8x8xbf16>
    tpu.vector_store %arg12[%c0_69, %c1_70, %c0_71, %c0_72], %93 {strides = array<i32>} : memref<1x4x8x8xbf16, #tpu.memory_space<vmem>>, vector<1x1x8x8xbf16>,
    %94 = arith.truncf %83 : vector<8x8xf32> to vector<8x8xbf16>
    %c0_73 = arith.constant 0 : index
    %c1_74 = arith.constant 1 : index
    %c0_75 = arith.constant 0 : index
    %c0_76 = arith.constant 0 : index
    %95 = vector.load %arg13[%c0_73, %c1_74, %c0_75, %c0_76] : memref<1x4x8x8xbf16, #tpu.memory_space<vmem>>, vector<1x1x8x8xbf16>
    %96 = vector.shape_cast %95 : vector<1x1x8x8xbf16> to vector<8x8xbf16>
    %97 = vector.shape_cast %94 : vector<8x8xbf16> to vector<1x1x8x8xbf16>
    tpu.vector_store %arg13[%c0_73, %c1_74, %c0_75, %c0_76], %97 {strides = array<i32>} : memref<1x4x8x8xbf16, #tpu.memory_space<vmem>>, vector<1x1x8x8xbf16>,
    %c2 = arith.constant 2 : index
    %c0_77 = arith.constant 0 : index
    %c0_78 = arith.constant 0 : index
    %98 = vector.load %arg5[%c2, %c0_77, %c0_78] : memref<4x32x8xbf16, #tpu.memory_space<vmem>>, vector<1x32x8xbf16>
    %99 = vector.shape_cast %98 : vector<1x32x8xbf16> to vector<32x8xbf16>
    %cst_79 = arith.constant dense<0.000000e+00> : vector<8x8xf32>
    %100 = tpu.matmul %27, %99, %cst_79 {dimension_numbers = #tpu.dot_dimension_numbers<[1], [0], [0], [1], [0, 0, 1, 1], [], []>} : vector<8x32xbf16>, vector<32x8xbf16>, vector<8x8xf32> -> vector<8x8xf32>
    %c2_80 = arith.constant 2 : index
    %c0_81 = arith.constant 0 : index
    %c0_82 = arith.constant 0 : index
    %101 = vector.load %arg6[%c2_80, %c0_81, %c0_82] : memref<4x1x8xf32, #tpu.memory_space<vmem>>, vector<1x1x8xf32>
    %102 = vector.shape_cast %101 : vector<1x1x8xf32> to vector<1x8xf32>
    %103 = vector.broadcast %102 : vector<1x8xf32> to vector<8x8xf32>
    %104 = arith.addf %100, %103 : vector<8x8xf32>
    %c2_83 = arith.constant 2 : index
    %c0_84 = arith.constant 0 : index
    %c0_85 = arith.constant 0 : index
    %105 = vector.load %arg7[%c2_83, %c0_84, %c0_85] : memref<4x32x8xbf16, #tpu.memory_space<vmem>>, vector<1x32x8xbf16>
    %106 = vector.shape_cast %105 : vector<1x32x8xbf16> to vector<32x8xbf16>
    %cst_86 = arith.constant dense<0.000000e+00> : vector<8x8xf32>
    %107 = tpu.matmul %27, %106, %cst_86 {dimension_numbers = #tpu.dot_dimension_numbers<[1], [0], [0], [1], [0, 0, 1, 1], [], []>} : vector<8x32xbf16>, vector<32x8xbf16>, vector<8x8xf32> -> vector<8x8xf32>
    %c2_87 = arith.constant 2 : index
    %c0_88 = arith.constant 0 : index
    %c0_89 = arith.constant 0 : index
    %108 = vector.load %arg8[%c2_87, %c0_88, %c0_89] : memref<4x1x8xf32, #tpu.memory_space<vmem>>, vector<1x1x8xf32>
    %109 = vector.shape_cast %108 : vector<1x1x8xf32> to vector<1x8xf32>
    %110 = vector.broadcast %109 : vector<1x8xf32> to vector<8x8xf32>
    %111 = arith.addf %107, %110 : vector<8x8xf32>
    %c2_90 = arith.constant 2 : index
    %c0_91 = arith.constant 0 : index
    %c0_92 = arith.constant 0 : index
    %112 = vector.load %arg9[%c2_90, %c0_91, %c0_92] : memref<4x32x8xbf16, #tpu.memory_space<vmem>>, vector<1x32x8xbf16>
    %113 = vector.shape_cast %112 : vector<1x32x8xbf16> to vector<32x8xbf16>
    %cst_93 = arith.constant dense<0.000000e+00> : vector<8x8xf32>
    %114 = tpu.matmul %27, %113, %cst_93 {dimension_numbers = #tpu.dot_dimension_numbers<[1], [0], [0], [1], [0, 0, 1, 1], [], []>} : vector<8x32xbf16>, vector<32x8xbf16>, vector<8x8xf32> -> vector<8x8xf32>
    %c2_94 = arith.constant 2 : index
    %c0_95 = arith.constant 0 : index
    %c0_96 = arith.constant 0 : index
    %115 = vector.load %arg10[%c2_94, %c0_95, %c0_96] : memref<4x1x8xf32, #tpu.memory_space<vmem>>, vector<1x1x8xf32>
    %116 = vector.shape_cast %115 : vector<1x1x8xf32> to vector<1x8xf32>
    %117 = vector.broadcast %116 : vector<1x8xf32> to vector<8x8xf32>
    %118 = arith.addf %114, %117 : vector<8x8xf32>
    %cst_97 = arith.constant 0.353553385 : f32
    %119 = vector.broadcast %cst_97 : f32 to vector<8x8xf32>
    %120 = arith.mulf %104, %119 : vector<8x8xf32>
    %121 = arith.truncf %120 : vector<8x8xf32> to vector<8x8xbf16>
    %c0_98 = arith.constant 0 : index
    %c2_99 = arith.constant 2 : index
    %c0_100 = arith.constant 0 : index
    %c0_101 = arith.constant 0 : index
    %122 = vector.load %arg11[%c0_98, %c2_99, %c0_100, %c0_101] : memref<1x4x8x8xbf16, #tpu.memory_space<vmem>>, vector<1x1x8x8xbf16>
    %123 = vector.shape_cast %122 : vector<1x1x8x8xbf16> to vector<8x8xbf16>
    %124 = vector.shape_cast %121 : vector<8x8xbf16> to vector<1x1x8x8xbf16>
    tpu.vector_store %arg11[%c0_98, %c2_99, %c0_100, %c0_101], %124 {strides = array<i32>} : memref<1x4x8x8xbf16, #tpu.memory_space<vmem>>, vector<1x1x8x8xbf16>,
    %125 = arith.truncf %111 : vector<8x8xf32> to vector<8x8xbf16>
    %c0_102 = arith.constant 0 : index
    %c2_103 = arith.constant 2 : index
    %c0_104 = arith.constant 0 : index
    %c0_105 = arith.constant 0 : index
    %126 = vector.load %arg12[%c0_102, %c2_103, %c0_104, %c0_105] : memref<1x4x8x8xbf16, #tpu.memory_space<vmem>>, vector<1x1x8x8xbf16>
    %127 = vector.shape_cast %126 : vector<1x1x8x8xbf16> to vector<8x8xbf16>
    %128 = vector.shape_cast %125 : vector<8x8xbf16> to vector<1x1x8x8xbf16>
    tpu.vector_store %arg12[%c0_102, %c2_103, %c0_104, %c0_105], %128 {strides = array<i32>} : memref<1x4x8x8xbf16, #tpu.memory_space<vmem>>, vector<1x1x8x8xbf16>,
    %129 = arith.truncf %118 : vector<8x8xf32> to vector<8x8xbf16>
    %c0_106 = arith.constant 0 : index
    %c2_107 = arith.constant 2 : index
    %c0_108 = arith.constant 0 : index
    %c0_109 = arith.constant 0 : index
    %130 = vector.load %arg13[%c0_106, %c2_107, %c0_108, %c0_109] : memref<1x4x8x8xbf16, #tpu.memory_space<vmem>>, vector<1x1x8x8xbf16>
    %131 = vector.shape_cast %130 : vector<1x1x8x8xbf16> to vector<8x8xbf16>
    %132 = vector.shape_cast %129 : vector<8x8xbf16> to vector<1x1x8x8xbf16>
    tpu.vector_store %arg13[%c0_106, %c2_107, %c0_108, %c0_109], %132 {strides = array<i32>} : memref<1x4x8x8xbf16, #tpu.memory_space<vmem>>, vector<1x1x8x8xbf16>,
    %c3 = arith.constant 3 : index
    %c0_110 = arith.constant 0 : index
    %c0_111 = arith.constant 0 : index
    %133 = vector.load %arg5[%c3, %c0_110, %c0_111] : memref<4x32x8xbf16, #tpu.memory_space<vmem>>, vector<1x32x8xbf16>
    %134 = vector.shape_cast %133 : vector<1x32x8xbf16> to vector<32x8xbf16>
    %cst_112 = arith.constant dense<0.000000e+00> : vector<8x8xf32>
    %135 = tpu.matmul %27, %134, %cst_112 {dimension_numbers = #tpu.dot_dimension_numbers<[1], [0], [0], [1], [0, 0, 1, 1], [], []>} : vector<8x32xbf16>, vector<32x8xbf16>, vector<8x8xf32> -> vector<8x8xf32>
    %c3_113 = arith.constant 3 : index
    %c0_114 = arith.constant 0 : index
    %c0_115 = arith.constant 0 : index
    %136 = vector.load %arg6[%c3_113, %c0_114, %c0_115] : memref<4x1x8xf32, #tpu.memory_space<vmem>>, vector<1x1x8xf32>
    %137 = vector.shape_cast %136 : vector<1x1x8xf32> to vector<1x8xf32>
    %138 = vector.broadcast %137 : vector<1x8xf32> to vector<8x8xf32>
    %139 = arith.addf %135, %138 : vector<8x8xf32>
    %c3_116 = arith.constant 3 : index
    %c0_117 = arith.constant 0 : index
    %c0_118 = arith.constant 0 : index
    %140 = vector.load %arg7[%c3_116, %c0_117, %c0_118] : memref<4x32x8xbf16, #tpu.memory_space<vmem>>, vector<1x32x8xbf16>
    %141 = vector.shape_cast %140 : vector<1x32x8xbf16> to vector<32x8xbf16>
    %cst_119 = arith.constant dense<0.000000e+00> : vector<8x8xf32>
    %142 = tpu.matmul %27, %141, %cst_119 {dimension_numbers = #tpu.dot_dimension_numbers<[1], [0], [0], [1], [0, 0, 1, 1], [], []>} : vector<8x32xbf16>, vector<32x8xbf16>, vector<8x8xf32> -> vector<8x8xf32>
    %c3_120 = arith.constant 3 : index
    %c0_121 = arith.constant 0 : index
    %c0_122 = arith.constant 0 : index
    %143 = vector.load %arg8[%c3_120, %c0_121, %c0_122] : memref<4x1x8xf32, #tpu.memory_space<vmem>>, vector<1x1x8xf32>
    %144 = vector.shape_cast %143 : vector<1x1x8xf32> to vector<1x8xf32>
    %145 = vector.broadcast %144 : vector<1x8xf32> to vector<8x8xf32>
    %146 = arith.addf %142, %145 : vector<8x8xf32>
    %c3_123 = arith.constant 3 : index
    %c0_124 = arith.constant 0 : index
    %c0_125 = arith.constant 0 : index
    %147 = vector.load %arg9[%c3_123, %c0_124, %c0_125] : memref<4x32x8xbf16, #tpu.memory_space<vmem>>, vector<1x32x8xbf16>
    %148 = vector.shape_cast %147 : vector<1x32x8xbf16> to vector<32x8xbf16>
    %cst_126 = arith.constant dense<0.000000e+00> : vector<8x8xf32>
    %149 = tpu.matmul %27, %148, %cst_126 {dimension_numbers = #tpu.dot_dimension_numbers<[1], [0], [0], [1], [0, 0, 1, 1], [], []>} : vector<8x32xbf16>, vector<32x8xbf16>, vector<8x8xf32> -> vector<8x8xf32>
    %c3_127 = arith.constant 3 : index
    %c0_128 = arith.constant 0 : index
    %c0_129 = arith.constant 0 : index
    %150 = vector.load %arg10[%c3_127, %c0_128, %c0_129] : memref<4x1x8xf32, #tpu.memory_space<vmem>>, vector<1x1x8xf32>
    %151 = vector.shape_cast %150 : vector<1x1x8xf32> to vector<1x8xf32>
    %152 = vector.broadcast %151 : vector<1x8xf32> to vector<8x8xf32>
    %153 = arith.addf %149, %152 : vector<8x8xf32>
    %cst_130 = arith.constant 0.353553385 : f32
    %154 = vector.broadcast %cst_130 : f32 to vector<8x8xf32>
    %155 = arith.mulf %139, %154 : vector<8x8xf32>
    %156 = arith.truncf %155 : vector<8x8xf32> to vector<8x8xbf16>
    %c0_131 = arith.constant 0 : index
    %c3_132 = arith.constant 3 : index
    %c0_133 = arith.constant 0 : index
    %c0_134 = arith.constant 0 : index
    %157 = vector.load %arg11[%c0_131, %c3_132, %c0_133, %c0_134] : memref<1x4x8x8xbf16, #tpu.memory_space<vmem>>, vector<1x1x8x8xbf16>
    %158 = vector.shape_cast %157 : vector<1x1x8x8xbf16> to vector<8x8xbf16>
    %159 = vector.shape_cast %156 : vector<8x8xbf16> to vector<1x1x8x8xbf16>
    tpu.vector_store %arg11[%c0_131, %c3_132, %c0_133, %c0_134], %159 {strides = array<i32>} : memref<1x4x8x8xbf16, #tpu.memory_space<vmem>>, vector<1x1x8x8xbf16>,
    %160 = arith.truncf %146 : vector<8x8xf32> to vector<8x8xbf16>
    %c0_135 = arith.constant 0 : index
    %c3_136 = arith.constant 3 : index
    %c0_137 = arith.constant 0 : index
    %c0_138 = arith.constant 0 : index
    %161 = vector.load %arg12[%c0_135, %c3_136, %c0_137, %c0_138] : memref<1x4x8x8xbf16, #tpu.memory_space<vmem>>, vector<1x1x8x8xbf16>
    %162 = vector.shape_cast %161 : vector<1x1x8x8xbf16> to vector<8x8xbf16>
    %163 = vector.shape_cast %160 : vector<8x8xbf16> to vector<1x1x8x8xbf16>
    tpu.vector_store %arg12[%c0_135, %c3_136, %c0_137, %c0_138], %163 {strides = array<i32>} : memref<1x4x8x8xbf16, #tpu.memory_space<vmem>>, vector<1x1x8x8xbf16>,
    %164 = arith.truncf %153 : vector<8x8xf32> to vector<8x8xbf16>
    %c0_139 = arith.constant 0 : index
    %c3_140 = arith.constant 3 : index
    %c0_141 = arith.constant 0 : index
    %c0_142 = arith.constant 0 : index
    %165 = vector.load %arg13[%c0_139, %c3_140, %c0_141, %c0_142] : memref<1x4x8x8xbf16, #tpu.memory_space<vmem>>, vector<1x1x8x8xbf16>
    %166 = vector.shape_cast %165 : vector<1x1x8x8xbf16> to vector<8x8xbf16>
    %167 = vector.shape_cast %164 : vector<8x8xbf16> to vector<1x1x8x8xbf16>
    tpu.vector_store %arg13[%c0_139, %c3_140, %c0_141, %c0_142], %167 {strides = array<i32>} : memref<1x4x8x8xbf16, #tpu.memory_space<vmem>>, vector<1x1x8x8xbf16>,
    return
  }
  func.func @transform_0(%arg0: i32, %arg1: i32) -> (i32, i32, i32) {
    %c0_i32 = arith.constant 0 : i32
    %c0_i32_0 = arith.constant 0 : i32
    return %arg0, %arg1, %c0_i32 : i32, i32, i32
  }
  func.func @transform_1(%arg0: i32, %arg1: i32) -> (i32, i32) {
    %c0_i32 = arith.constant 0 : i32
    %c0_i32_0 = arith.constant 0 : i32
    %c0_i32_1 = arith.constant 0 : i32
    return %c0_i32, %c0_i32_0 : i32, i32
  }
  func.func @transform_2(%arg0: i32, %arg1: i32) -> (i32, i32) {
    %c0_i32 = arith.constant 0 : i32
    %c0_i32_0 = arith.constant 0 : i32
    %c0_i32_1 = arith.constant 0 : i32
    return %c0_i32, %c0_i32_0 : i32, i32
  }
  func.func @transform_3(%arg0: i32, %arg1: i32) -> (i32, i32, i32) {
    %c0_i32 = arith.constant 0 : i32
    %c0_i32_0 = arith.constant 0 : i32
    %c0_i32_1 = arith.constant 0 : i32
    %c0_i32_2 = arith.constant 0 : i32
    return %c0_i32, %c0_i32_0, %c0_i32_1 : i32, i32, i32
  }
  func.func @transform_4(%arg0: i32, %arg1: i32) -> (i32, i32, i32) {
    %c0_i32 = arith.constant 0 : i32
    %c0_i32_0 = arith.constant 0 : i32
    %c0_i32_1 = arith.constant 0 : i32
    %c0_i32_2 = arith.constant 0 : i32
    return %c0_i32, %c0_i32_0, %c0_i32_1 : i32, i32, i32
  }
  func.func @transform_5(%arg0: i32, %arg1: i32) -> (i32, i32, i32) {
    %c0_i32 = arith.constant 0 : i32
    %c0_i32_0 = arith.constant 0 : i32
    %c0_i32_1 = arith.constant 0 : i32
    %c0_i32_2 = arith.constant 0 : i32
    return %c0_i32, %c0_i32_0, %c0_i32_1 : i32, i32, i32
  }
  func.func @transform_6(%arg0: i32, %arg1: i32) -> (i32, i32, i32) {
    %c0_i32 = arith.constant 0 : i32
    %c0_i32_0 = arith.constant 0 : i32
    %c0_i32_1 = arith.constant 0 : i32
    %c0_i32_2 = arith.constant 0 : i32
    return %c0_i32, %c0_i32_0, %c0_i32_1 : i32, i32, i32
  }
  func.func @transform_7(%arg0: i32, %arg1: i32) -> (i32, i32, i32) {
    %c0_i32 = arith.constant 0 : i32
    %c0_i32_0 = arith.constant 0 : i32
    %c0_i32_1 = arith.constant 0 : i32
    %c0_i32_2 = arith.constant 0 : i32
    return %c0_i32, %c0_i32_0, %c0_i32_1 : i32, i32, i32
  }
  func.func @transform_8(%arg0: i32, %arg1: i32) -> (i32, i32, i32) {
    %c0_i32 = arith.constant 0 : i32
    %c0_i32_0 = arith.constant 0 : i32
    %c0_i32_1 = arith.constant 0 : i32
    %c0_i32_2 = arith.constant 0 : i32
    return %c0_i32, %c0_i32_0, %c0_i32_1 : i32, i32, i32
  }
  func.func @transform_9(%arg0: i32, %arg1: i32) -> (i32, i32, i32, i32) {
    %c0_i32 = arith.constant 0 : i32
    %c0_i32_0 = arith.constant 0 : i32
    %c0_i32_1 = arith.constant 0 : i32
    return %arg0, %c0_i32, %arg1, %c0_i32_0 : i32, i32, i32, i32
  }
  func.func @transform_10(%arg0: i32, %arg1: i32) -> (i32, i32, i32, i32) {
    %c0_i32 = arith.constant 0 : i32
    %c0_i32_0 = arith.constant 0 : i32
    %c0_i32_1 = arith.constant 0 : i32
    return %arg0, %c0_i32, %arg1, %c0_i32_0 : i32, i32, i32, i32
  }
  func.func @transform_11(%arg0: i32, %arg1: i32) -> (i32, i32, i32, i32) {
    %c0_i32 = arith.constant 0 : i32
    %c0_i32_0 = arith.constant 0 : i32
    %c0_i32_1 = arith.constant 0 : i32
    return %arg0, %c0_i32, %arg1, %c0_i32_0 : i32, i32, i32, i32
  }
}

module attributes {stable_mosaic.version = 11 : i64} {
  func.func @final_linear_kernel(%arg0: i32, %arg1: i32, %arg2: memref<16x32xbf16, #tpu.memory_space<vmem>>, %arg3: memref<32x128xbf16, #tpu.memory_space<vmem>>, %arg4: memref<1x128xf32, #tpu.memory_space<vmem>>, %arg5: memref<16x128xf32, #tpu.memory_space<vmem>>) attributes {dimension_semantics = [#tpu.dimension_semantics<parallel>, #tpu.dimension_semantics<parallel>], iteration_bounds = array<i64: 1, 1>, scalar_prefetch = 0 : i64, scratch_operands = 0 : i64, tpu.core_type = #tpu.core_type<tc>, window_params = [{transform_indices = @transform_0, window_bounds = array<i64: 16, 32>}, {transform_indices = @transform_1, window_bounds = array<i64: 32, 128>}, {transform_indices = @transform_2, window_bounds = array<i64: 1, 128>}, {transform_indices = @transform_3, window_bounds = array<i64: 16, 128>}]} {
    %c0 = arith.constant 0 : index
    %c0_0 = arith.constant 0 : index
    %0 = vector.load %arg2[%c0, %c0_0] : memref<16x32xbf16, #tpu.memory_space<vmem>>, vector<16x32xbf16>
    %c0_1 = arith.constant 0 : index
    %c0_2 = arith.constant 0 : index
    %1 = vector.load %arg3[%c0_1, %c0_2] : memref<32x128xbf16, #tpu.memory_space<vmem>>, vector<32x128xbf16>
    %cst = arith.constant dense<0.000000e+00> : vector<16x128xf32>
    %2 = tpu.matmul %0, %1, %cst {dimension_numbers = #tpu.dot_dimension_numbers<[1], [0], [0], [1], [0, 0, 1, 1], [], []>} : vector<16x32xbf16>, vector<32x128xbf16>, vector<16x128xf32> -> vector<16x128xf32>
    %c0_3 = arith.constant 0 : index
    %c0_4 = arith.constant 0 : index
    %3 = vector.load %arg4[%c0_3, %c0_4] : memref<1x128xf32, #tpu.memory_space<vmem>>, vector<1x128xf32>
    %4 = vector.broadcast %3 : vector<1x128xf32> to vector<16x128xf32>
    %5 = arith.addf %2, %4 : vector<16x128xf32>
    %c0_5 = arith.constant 0 : index
    %c0_6 = arith.constant 0 : index
    %6 = vector.load %arg5[%c0_5, %c0_6] : memref<16x128xf32, #tpu.memory_space<vmem>>, vector<16x128xf32>
    tpu.vector_store %arg5[%c0_5, %c0_6], %5 {strides = array<i32>} : memref<16x128xf32, #tpu.memory_space<vmem>>, vector<16x128xf32>,
    return
  }
  func.func @transform_0(%arg0: i32, %arg1: i32) -> (i32, i32) {
    %c0_i32 = arith.constant 0 : i32
    %c0_i32_0 = arith.constant 0 : i32
    return %arg0, %c0_i32 : i32, i32
  }
  func.func @transform_1(%arg0: i32, %arg1: i32) -> (i32, i32) {
    %c0_i32 = arith.constant 0 : i32
    %c0_i32_0 = arith.constant 0 : i32
    return %c0_i32, %arg1 : i32, i32
  }
  func.func @transform_2(%arg0: i32, %arg1: i32) -> (i32, i32) {
    %c0_i32 = arith.constant 0 : i32
    %c0_i32_0 = arith.constant 0 : i32
    return %c0_i32, %arg1 : i32, i32
  }
  func.func @transform_3(%arg0: i32, %arg1: i32) -> (i32, i32) {
    %c0_i32 = arith.constant 0 : i32
    return %arg0, %arg1 : i32, i32
  }
}

module attributes {stable_mosaic.version = 11 : i64} {
  func.func @mlp_kernel(%arg0: i32, %arg1: i32, %arg2: memref<1x8x32xbf16, #tpu.memory_space<vmem>>, %arg3: memref<1x32xf32, #tpu.memory_space<vmem>>, %arg4: memref<1x32xf32, #tpu.memory_space<vmem>>, %arg5: memref<32x128xbf16, #tpu.memory_space<vmem>>, %arg6: memref<1x128xf32, #tpu.memory_space<vmem>>, %arg7: memref<128x32xbf16, #tpu.memory_space<vmem>>, %arg8: memref<1x32xf32, #tpu.memory_space<vmem>>, %arg9: memref<1x8x32xbf16, #tpu.memory_space<vmem>>) attributes {dimension_semantics = [#tpu.dimension_semantics<parallel>, #tpu.dimension_semantics<parallel>], iteration_bounds = array<i64: 2, 1>, scalar_prefetch = 0 : i64, scratch_operands = 0 : i64, tpu.core_type = #tpu.core_type<tc>, window_params = [{transform_indices = @transform_0, window_bounds = array<i64: 1, 8, 32>}, {pipeline_mode = #tpu.pipeline_mode<synchronous>, transform_indices = @transform_1, window_bounds = array<i64: 1, 32>}, {pipeline_mode = #tpu.pipeline_mode<synchronous>, transform_indices = @transform_2, window_bounds = array<i64: 1, 32>}, {pipeline_mode = #tpu.pipeline_mode<synchronous>, transform_indices = @transform_3, window_bounds = array<i64: 32, 128>}, {pipeline_mode = #tpu.pipeline_mode<synchronous>, transform_indices = @transform_4, window_bounds = array<i64: 1, 128>}, {pipeline_mode = #tpu.pipeline_mode<synchronous>, transform_indices = @transform_5, window_bounds = array<i64: 128, 32>}, {pipeline_mode = #tpu.pipeline_mode<synchronous>, transform_indices = @transform_6, window_bounds = array<i64: 1, 32>}, {transform_indices = @transform_7, window_bounds = array<i64: 1, 8, 32>}]} {
    %c0 = arith.constant 0 : index
    %c0_0 = arith.constant 0 : index
    %c0_1 = arith.constant 0 : index
    %0 = vector.load %arg2[%c0, %c0_0, %c0_1] : memref<1x8x32xbf16, #tpu.memory_space<vmem>>, vector<1x8x32xbf16>
    %1 = vector.shape_cast %0 : vector<1x8x32xbf16> to vector<8x32xbf16>
    %2 = arith.extf %1 : vector<8x32xbf16> to vector<8x32xf32>
    %c0_2 = arith.constant 0 : index
    %c0_3 = arith.constant 0 : index
    %3 = vector.load %arg3[%c0_2, %c0_3] : memref<1x32xf32, #tpu.memory_space<vmem>>, vector<1x32xf32>
    %c0_4 = arith.constant 0 : index
    %c0_5 = arith.constant 0 : index
    %4 = vector.load %arg4[%c0_4, %c0_5] : memref<1x32xf32, #tpu.memory_space<vmem>>, vector<1x32xf32>
    %cst = arith.constant dense<0.000000e+00> : vector<8xf32>
    %5 = vector.multi_reduction <add>, %2, %cst [1] : vector<8x32xf32> to vector<8xf32>
    %6 = vector.shape_cast %5 : vector<8xf32> to vector<8x1xf32>
    %cst_6 = arith.constant 3.200000e+01 : f32
    %7 = vector.broadcast %cst_6 : f32 to vector<8x1xf32>
    %8 = arith.divf %6, %7 : vector<8x1xf32>
    %9 = vector.broadcast %8 : vector<8x1xf32> to vector<8x32xf32>
    %10 = arith.subf %2, %9 : vector<8x32xf32>
    %11 = arith.mulf %10, %10 : vector<8x32xf32>
    %cst_7 = arith.constant dense<0.000000e+00> : vector<8xf32>
    %12 = vector.multi_reduction <add>, %11, %cst_7 [1] : vector<8x32xf32> to vector<8xf32>
    %13 = vector.shape_cast %12 : vector<8xf32> to vector<8x1xf32>
    %cst_8 = arith.constant 3.200000e+01 : f32
    %14 = vector.broadcast %cst_8 : f32 to vector<8x1xf32>
    %15 = arith.divf %13, %14 : vector<8x1xf32>
    %16 = vector.broadcast %8 : vector<8x1xf32> to vector<8x32xf32>
    %17 = arith.subf %2, %16 : vector<8x32xf32>
    %cst_9 = arith.constant 9.99999974E-6 : f32
    %18 = vector.broadcast %cst_9 : f32 to vector<8x1xf32>
    %19 = arith.addf %15, %18 : vector<8x1xf32>
    %20 = math.rsqrt %19 : vector<8x1xf32>
    %21 = vector.broadcast %20 : vector<8x1xf32> to vector<8x32xf32>
    %22 = arith.mulf %17, %21 : vector<8x32xf32>
    %23 = vector.broadcast %3 : vector<1x32xf32> to vector<8x32xf32>
    %24 = arith.mulf %22, %23 : vector<8x32xf32>
    %25 = vector.broadcast %4 : vector<1x32xf32> to vector<8x32xf32>
    %26 = arith.addf %24, %25 : vector<8x32xf32>
    %27 = arith.truncf %26 : vector<8x32xf32> to vector<8x32xbf16>
    %c0_10 = arith.constant 0 : index
    %c0_11 = arith.constant 0 : index
    %28 = vector.load %arg5[%c0_10, %c0_11] : memref<32x128xbf16, #tpu.memory_space<vmem>>, vector<32x128xbf16>
    %cst_12 = arith.constant dense<0.000000e+00> : vector<8x128xf32>
    %29 = tpu.matmul %27, %28, %cst_12 {dimension_numbers = #tpu.dot_dimension_numbers<[1], [0], [0], [1], [0, 0, 1, 1], [], []>} : vector<8x32xbf16>, vector<32x128xbf16>, vector<8x128xf32> -> vector<8x128xf32>
    %c0_13 = arith.constant 0 : index
    %c0_14 = arith.constant 0 : index
    %30 = vector.load %arg6[%c0_13, %c0_14] : memref<1x128xf32, #tpu.memory_space<vmem>>, vector<1x128xf32>
    %31 = vector.broadcast %30 : vector<1x128xf32> to vector<8x128xf32>
    %32 = arith.addf %29, %31 : vector<8x128xf32>
    %cst_15 = arith.constant 0.000000e+00 : f32
    %33 = vector.broadcast %cst_15 : f32 to vector<8x128xf32>
    %34 = arith.maximumf %32, %33 : vector<8x128xf32>
    %35 = arith.truncf %34 : vector<8x128xf32> to vector<8x128xbf16>
    %c0_16 = arith.constant 0 : index
    %c0_17 = arith.constant 0 : index
    %36 = vector.load %arg7[%c0_16, %c0_17] : memref<128x32xbf16, #tpu.memory_space<vmem>>, vector<128x32xbf16>
    %cst_18 = arith.constant dense<0.000000e+00> : vector<8x32xf32>
    %37 = tpu.matmul %35, %36, %cst_18 {dimension_numbers = #tpu.dot_dimension_numbers<[1], [0], [0], [1], [0, 0, 1, 1], [], []>} : vector<8x128xbf16>, vector<128x32xbf16>, vector<8x32xf32> -> vector<8x32xf32>
    %c0_19 = arith.constant 0 : index
    %c0_20 = arith.constant 0 : index
    %38 = vector.load %arg8[%c0_19, %c0_20] : memref<1x32xf32, #tpu.memory_space<vmem>>, vector<1x32xf32>
    %39 = vector.broadcast %38 : vector<1x32xf32> to vector<8x32xf32>
    %40 = arith.addf %37, %39 : vector<8x32xf32>
    %41 = arith.addf %2, %40 : vector<8x32xf32>
    %42 = arith.truncf %41 : vector<8x32xf32> to vector<8x32xbf16>
    %c0_21 = arith.constant 0 : index
    %c0_22 = arith.constant 0 : index
    %c0_23 = arith.constant 0 : index
    %43 = vector.load %arg9[%c0_21, %c0_22, %c0_23] : memref<1x8x32xbf16, #tpu.memory_space<vmem>>, vector<1x8x32xbf16>
    %44 = vector.shape_cast %43 : vector<1x8x32xbf16> to vector<8x32xbf16>
    %45 = vector.shape_cast %42 : vector<8x32xbf16> to vector<1x8x32xbf16>
    tpu.vector_store %arg9[%c0_21, %c0_22, %c0_23], %45 {strides = array<i32>} : memref<1x8x32xbf16, #tpu.memory_space<vmem>>, vector<1x8x32xbf16>,
    return
  }
  func.func @transform_0(%arg0: i32, %arg1: i32) -> (i32, i32, i32) {
    %c0_i32 = arith.constant 0 : i32
    %c0_i32_0 = arith.constant 0 : i32
    return %arg0, %arg1, %c0_i32 : i32, i32, i32
  }
  func.func @transform_1(%arg0: i32, %arg1: i32) -> (i32, i32) {
    %c0_i32 = arith.constant 0 : i32
    %c0_i32_0 = arith.constant 0 : i32
    %c0_i32_1 = arith.constant 0 : i32
    return %c0_i32, %c0_i32_0 : i32, i32
  }
  func.func @transform_2(%arg0: i32, %arg1: i32) -> (i32, i32) {
    %c0_i32 = arith.constant 0 : i32
    %c0_i32_0 = arith.constant 0 : i32
    %c0_i32_1 = arith.constant 0 : i32
    return %c0_i32, %c0_i32_0 : i32, i32
  }
  func.func @transform_3(%arg0: i32, %arg1: i32) -> (i32, i32) {
    %c0_i32 = arith.constant 0 : i32
    %c0_i32_0 = arith.constant 0 : i32
    %c0_i32_1 = arith.constant 0 : i32
    return %c0_i32, %c0_i32_0 : i32, i32
  }
  func.func @transform_4(%arg0: i32, %arg1: i32) -> (i32, i32) {
    %c0_i32 = arith.constant 0 : i32
    %c0_i32_0 = arith.constant 0 : i32
    %c0_i32_1 = arith.constant 0 : i32
    return %c0_i32, %c0_i32_0 : i32, i32
  }
  func.func @transform_5(%arg0: i32, %arg1: i32) -> (i32, i32) {
    %c0_i32 = arith.constant 0 : i32
    %c0_i32_0 = arith.constant 0 : i32
    %c0_i32_1 = arith.constant 0 : i32
    return %c0_i32, %c0_i32_0 : i32, i32
  }
  func.func @transform_6(%arg0: i32, %arg1: i32) -> (i32, i32) {
    %c0_i32 = arith.constant 0 : i32
    %c0_i32_0 = arith.constant 0 : i32
    %c0_i32_1 = arith.constant 0 : i32
    return %c0_i32, %c0_i32_0 : i32, i32
  }
  func.func @transform_7(%arg0: i32, %arg1: i32) -> (i32, i32, i32) {
    %c0_i32 = arith.constant 0 : i32
    %c0_i32_0 = arith.constant 0 : i32
    return %arg0, %arg1, %c0_i32 : i32, i32, i32
  }
}

</mosaic_0001>

<llo_original>
// kernel: transformer_forward.13
$region0: #{transformer_forward.13}
  #allocation0 [shape = 'u32[]', space=smem, size = 0x4, offset = 0x4, fixed_abs, tag = 'smem constant byte address 0x4 - core index']
  #allocation1 [shape = 'u32[72,128]{1,0:T(1,128)}', space=vmem, size = 0x9000, scoped, tag = 'internal scratch']
  %s0 = inlined_call_operand.vmem [shape: bf16[16,32], index: 0, kind: input, shape index: {}]
  %s1 = inlined_call_operand.vmem [shape: bf16[32,128], index: 1, kind: input, shape index: {}]
  %s2 = inlined_call_operand.vmem [shape: f32[1,128], index: 2, kind: input, shape index: {}]
  %s3 = inlined_call_operand.hbm [shape: f32[16,128], index: 3, kind: output, shape index: {}]
  %s4 = sld [smem:[#allocation0]]
  $region22: #{transformer_forward.13} parent=0
    _
  %s6 = ssub.s32 1, %s4
  %s7 = scalar_select 0, %s6, %s4
  $region1: #{transformer_forward.13} parent=0
    #allocation2 [shape = 'u8[8192]{0}', space=vmem, size = 0x2000, scoped, tag = 'output window, operand 0, single buffered']
    #allocation3 [shape = 's32[1]{0}', space=sflag, size = 0x4, scoped, tag = 'scoped memory for transformer_forward.13']
    %8 = vsyncpa [#allocation3], 0
    // Predicated region
    $region2: #{transformer_forward.13} parent=1 // pred_check
      _
    $region3: #{transformer_forward.13} parent=1 // pred_check_branch
      %10 = sbr.rel (0) target = $region5
    $region4: #{transformer_forward.13} parent=1 // pred_region
      _
    $region5: #{transformer_forward.13} parent=1 // pred_fallthru
      _
    // Predicated region
    $region6: #{transformer_forward.13} parent=1 // pred_check
      _
    $region7: #{transformer_forward.13} parent=1 // pred_check_branch
      %12 = sbr.rel (0) target = $region9
    $region8: #{transformer_forward.13} parent=1 // pred_region
      _
    $region9: #{transformer_forward.13} parent=1 // pred_fallthru
      _
    // Predicated region
    $region10: #{transformer_forward.13} parent=1 // pred_check
      _
    $region11: #{transformer_forward.13} parent=1 // pred_check_branch
      %14 = sbr.rel (0) target = $region13
    $region12: #{transformer_forward.13} parent=1 // pred_region
      _
    $region13: #{transformer_forward.13} parent=1 // pred_fallthru
      _
    %v16 = vld [vmem:[%s0] sm:$0xf]
    %v17 = vld [vmem:[%s0 + $0x4] sm:$0xf]
    %v18 = vld [vmem:[%s1] sm:$0xf]
    %v19 = vld [vmem:[%s1 + $0x4] sm:$0xf]
    %v20 = vld [vmem:[%s1 + $0x8] sm:$0xf]
    %v21 = vld [vmem:[%s1 + $0xc] sm:$0xf]
    %v22 = vld [vmem:[%s2] sm:$0x1]
    %v24 = vperm.slane %v22, 0
    %v28 = vunpack.c.l.b16 %v16
    %v29 = vunpack.c.l.b16 %v17
    %v30 = vpack.c.b16 %v29, %v28
    %v35 = vunpack.c.l.b16 %v18
    %v36 = vunpack.c.l.b16 %v19
    %v37 = vunpack.c.l.b16 %v20
    %v38 = vunpack.c.l.b16 %v21
    %v39 = vpack.c.b16 %v36, %v35
    %v40 = vpack.c.b16 %v38, %v37
    %vm43 = vcmask 261120
    %v45 = vsel %vm43, %v30, 0
    %47 = vmatpush.bf16.msra.mxu0 0
    %48 = vmatpush.bf16.msra.mxu0 0
    %49 = vmatpush.bf16.msra.mxu0 0
    %50 = vmatpush.bf16.msra.mxu0 0
    %51 = vmatpush.bf16.msra.mxu0 0
    %52 = vmatpush.bf16.msra.mxu0 0
    %53 = vmatpush.bf16.msra.mxu0 %v40
    %54 = vmatpush.bf16.msra.mxu0 %v39
    %55 = vmatmul.bf16.gmra.mxu0 %v45
    %v56 = vpop.f32.mrf.mxu0
    %v57 = vadd.f32 %v24, %v56
    %v58 = vpop.f32.mrf.mxu0
    %v59 = vadd.f32 %v24, %v58
    %60 = vdwg.mxu0
    %61 = vst [vmem:[#allocation2] sm:$0xff] %v57
    %62 = vst [vmem:[#allocation2 + $0x8] sm:$0xff] %v59
    // Predicated region
    $region14: #{transformer_forward.13} parent=1 // pred_check
      _
    $region15: #{transformer_forward.13} parent=1 // pred_check_branch
      %64 = sbr.rel (0) target = $region17
    $region16: #{transformer_forward.13} parent=1 // pred_region
      %66 = vsyncadd [#allocation3], 0
      %s67 = sshll.u32 [#allocation2], 4
      %s68 = int_to_ptr.vmem [resolvable:$true] %s67
      %s69 = sshll.u32 %s3, 4
      %s70 = int_to_ptr.hbm [resolvable:$true] %s69
      %75 = dma.vmem_to_hbm [thread:$0]  %s68, 256, %s70, [#allocation3], 128, 128, 8
    $region17: #{transformer_forward.13} parent=1 // pred_fallthru
      _
    // Predicated region
    $region18: #{transformer_forward.13} parent=1 // pred_check
      _
    $region19: #{transformer_forward.13} parent=1 // pred_check_branch
      %77 = sbr.rel (0) target = $region21
    $region20: #{transformer_forward.13} parent=1 // pred_region
      %79 = dma.done [#allocation3], 256
    $region21: #{transformer_forward.13} parent=1 // pred_fallthru
      _
    %80 = vsyncpa [#allocation3], 1

// kernel: transformer_forward.9
$region0: #{transformer_forward.9}
  #allocation0 [shape = 'u32[]', space=smem, size = 0x4, offset = 0x4, fixed_abs, tag = 'smem constant byte address 0x4 - core index']
  #allocation1 [shape = 'u32[72,128]{1,0:T(1,128)}', space=vmem, size = 0x9000, scoped, tag = 'internal scratch']
  %s0 = inlined_call_operand.vmem [shape: bf16[2,8,32], index: 0, kind: input, shape index: {}]
  %s1 = inlined_call_operand.vmem [shape: f32[1,32], index: 1, kind: input, shape index: {}]
  %s2 = inlined_call_operand.vmem [shape: f32[1,32], index: 2, kind: input, shape index: {}]
  %s3 = inlined_call_operand.vmem [shape: bf16[32,128], index: 3, kind: input, shape index: {}]
  %s4 = inlined_call_operand.vmem [shape: f32[1,128], index: 4, kind: input, shape index: {}]
  %s5 = inlined_call_operand.vmem [shape: bf16[128,32], index: 5, kind: input, shape index: {}]
  %s6 = inlined_call_operand.vmem [shape: f32[1,32], index: 6, kind: input, shape index: {}]
  %s7 = inlined_call_operand.vmem [shape: bf16[2,8,32], index: 7, kind: output, shape index: {}]
  %s8 = sld [smem:[#allocation0]]
  $region61: #{transformer_forward.9} parent=0
    _
  %s10 = ssub.s32 1, %s8
  %s11 = scalar_select 0, %s10, %s8
  loop: start=0, step=1, limit=4
  $region2: #{transformer_forward.9} parent=0 // loop_pre_header
    _
  $region3: #{transformer_forward.9} parent=0 // loop_header
    %s13 = sphi 0, %s17
    %p14 = scmp.ge.s32.totalorder %s13, 4
    %s20 = sphi 0, %s32
    %s21 = sphi 0, %s28
    %s22 = sphi 0, %s20
    %s23 = sphi 0, %s21
    %s24 = sphi 0, %s22
    %s25 = sphi 0, %s23
    %s37 = sphi 0, %s39
    %s40 = sphi 0, %s37
    %s41 = sphi 0, %s40
    %s57 = sphi 0, %s41
    %s61 = sphi 0, %s61
    %s63 = sphi 0, %s61
    %s64 = sphi 0, %s63
    %s78 = sphi 0, %s64
    %s82 = sphi 0, %s82
    %s84 = sphi 0, %s82
    %s85 = sphi 0, %s84
    %s99 = sphi 0, %s85
    %s103 = sphi 0, %s103
    %s105 = sphi 0, %s103
    %s106 = sphi 0, %s105
    %s120 = sphi 0, %s106
    %s124 = sphi 0, %s124
    %s126 = sphi 0, %s124
    %s127 = sphi 0, %s126
    %s141 = sphi 0, %s127
    %s145 = sphi 0, %s145
    %s147 = sphi 0, %s145
    %s148 = sphi 0, %s147
    %s162 = sphi 0, %s148
    %s166 = sphi 0, %s166
    %s168 = sphi 0, %s166
    %s169 = sphi 0, %s168
    %s183 = sphi 0, %s169
    %s191 = sphi 0, %s193
    %s194 = sphi 0, %s191
    %s195 = sphi 0, %s194
    %s211 = sphi 0, %s195
  $region4: #{transformer_forward.9} parent=0 // loop_header_branch
    %16 = sbr.rel (%p14) target = $region8
  $region5: #{transformer_forward.9} parent=0 // loop_body
    %s18 = ssub.s32 %s13, 1
    %s19 = ssub.s32 %s13, 2
    %s26 = sadd.s32 1, %s21
    %p27 = scmp.ge.s32.totalorder %s26, 1
    %s28 = scalar_select %p27, 0, %s26
    %s29 = sadd.s32 1, %s20
    %s30 = scalar_select %p27, %s29, %s20
    %p31 = scmp.ge.s32.totalorder %s30, 2
    %s32 = scalar_select %p31, 0, %s30
    %s33 = ssub.s32 %s20, %s32
    %s34 = ssub.s32 %s21, %s28
    %s35 = sor.u32 %s33, %s34
    %p36 = scmp.eq.s32.totalorder %s35, 0
    %s38 = sadd.s32 %s37, 1
    %s39 = scalar_select %p36, %s37, %s38
    %p42 = pneg %p36
    %p43 = scmp.eq.s32.totalorder %s13, 1
    %p44 = por %p42, %p43
    %p45 = scmp.ne.s32.totalorder %s37, %s40
    %p46 = scmp.eq.s32.totalorder %s13, 0
    %p47 = por %p45, %p46
    %p48 = scmp.ne.s32.totalorder %s37, %s40
    %p49 = scmp.eq.s32.totalorder %s18, 1
    %p50 = por %p48, %p49
    %p51 = scmp.ne.s32.totalorder %s40, %s41
    %p52 = scmp.eq.s32.totalorder %s18, 0
    %p53 = por %p51, %p52
    %p54 = scmp.ne.s32.totalorder %s40, %s41
    %p55 = scmp.eq.s32.totalorder %s19, 1
    %p56 = por %p54, %p55
    %p58 = scmp.ne.s32.totalorder %s41, %s57
    %p59 = scmp.eq.s32.totalorder %s19, 0
    %p60 = por %p58, %p59
    %s62 = sadd.s32 %s61, 1
    %p65 = scmp.eq.s32.totalorder %s13, 1
    %p66 = scmp.ne.s32.totalorder %s61, %s63
    %p67 = scmp.eq.s32.totalorder %s13, 0
    %p68 = por %p66, %p67
    %p69 = scmp.ne.s32.totalorder %s61, %s63
    %p70 = scmp.eq.s32.totalorder %s18, 1
    %p71 = por %p69, %p70
    %p72 = scmp.ne.s32.totalorder %s63, %s64
    %p73 = scmp.eq.s32.totalorder %s18, 0
    %p74 = por %p72, %p73
    %p75 = scmp.ne.s32.totalorder %s63, %s64
    %p76 = scmp.eq.s32.totalorder %s19, 1
    %p77 = por %p75, %p76
    %p79 = scmp.ne.s32.totalorder %s64, %s78
    %p80 = scmp.eq.s32.totalorder %s19, 0
    %p81 = por %p79, %p80
    %s83 = sadd.s32 %s82, 1
    %p86 = scmp.eq.s32.totalorder %s13, 1
    %p87 = scmp.ne.s32.totalorder %s82, %s84
    %p88 = scmp.eq.s32.totalorder %s13, 0
    %p89 = por %p87, %p88
    %p90 = scmp.ne.s32.totalorder %s82, %s84
    %p91 = scmp.eq.s32.totalorder %s18, 1
    %p92 = por %p90, %p91
    %p93 = scmp.ne.s32.totalorder %s84, %s85
    %p94 = scmp.eq.s32.totalorder %s18, 0
    %p95 = por %p93, %p94
    %p96 = scmp.ne.s32.totalorder %s84, %s85
    %p97 = scmp.eq.s32.totalorder %s19, 1
    %p98 = por %p96, %p97
    %p100 = scmp.ne.s32.totalorder %s85, %s99
    %p101 = scmp.eq.s32.totalorder %s19, 0
    %p102 = por %p100, %p101
    %s104 = sadd.s32 %s103, 1
    %p107 = scmp.eq.s32.totalorder %s13, 1
    %p108 = scmp.ne.s32.totalorder %s103, %s105
    %p109 = scmp.eq.s32.totalorder %s13, 0
    %p110 = por %p108, %p109
    %p111 = scmp.ne.s32.totalorder %s103, %s105
    %p112 = scmp.eq.s32.totalorder %s18, 1
    %p113 = por %p111, %p112
    %p114 = scmp.ne.s32.totalorder %s105, %s106
    %p115 = scmp.eq.s32.totalorder %s18, 0
    %p116 = por %p114, %p115
    %p117 = scmp.ne.s32.totalorder %s105, %s106
    %p118 = scmp.eq.s32.totalorder %s19, 1
    %p119 = por %p117, %p118
    %p121 = scmp.ne.s32.totalorder %s106, %s120
    %p122 = scmp.eq.s32.totalorder %s19, 0
    %p123 = por %p121, %p122
    %s125 = sadd.s32 %s124, 1
    %p128 = scmp.eq.s32.totalorder %s13, 1
    %p129 = scmp.ne.s32.totalorder %s124, %s126
    %p130 = scmp.eq.s32.totalorder %s13, 0
    %p131 = por %p129, %p130
    %p132 = scmp.ne.s32.totalorder %s124, %s126
    %p133 = scmp.eq.s32.totalorder %s18, 1
    %p134 = por %p132, %p133
    %p135 = scmp.ne.s32.totalorder %s126, %s127
    %p136 = scmp.eq.s32.totalorder %s18, 0
    %p137 = por %p135, %p136
    %p138 = scmp.ne.s32.totalorder %s126, %s127
    %p139 = scmp.eq.s32.totalorder %s19, 1
    %p140 = por %p138, %p139
    %p142 = scmp.ne.s32.totalorder %s127, %s141
    %p143 = scmp.eq.s32.totalorder %s19, 0
    %p144 = por %p142, %p143
    %s146 = sadd.s32 %s145, 1
    %p149 = scmp.eq.s32.totalorder %s13, 1
    %p150 = scmp.ne.s32.totalorder %s145, %s147
    %p151 = scmp.eq.s32.totalorder %s13, 0
    %p152 = por %p150, %p151
    %p153 = scmp.ne.s32.totalorder %s145, %s147
    %p154 = scmp.eq.s32.totalorder %s18, 1
    %p155 = por %p153, %p154
    %p156 = scmp.ne.s32.totalorder %s147, %s148
    %p157 = scmp.eq.s32.totalorder %s18, 0
    %p158 = por %p156, %p157
    %p159 = scmp.ne.s32.totalorder %s147, %s148
    %p160 = scmp.eq.s32.totalorder %s19, 1
    %p161 = por %p159, %p160
    %p163 = scmp.ne.s32.totalorder %s148, %s162
    %p164 = scmp.eq.s32.totalorder %s19, 0
    %p165 = por %p163, %p164
    %s167 = sadd.s32 %s166, 1
    %p170 = scmp.eq.s32.totalorder %s13, 1
    %p171 = scmp.ne.s32.totalorder %s166, %s168
    %p172 = scmp.eq.s32.totalorder %s13, 0
    %p173 = por %p171, %p172
    %p174 = scmp.ne.s32.totalorder %s166, %s168
    %p175 = scmp.eq.s32.totalorder %s18, 1
    %p176 = por %p174, %p175
    %p177 = scmp.ne.s32.totalorder %s168, %s169
    %p178 = scmp.eq.s32.totalorder %s18, 0
    %p179 = por %p177, %p178
    %p180 = scmp.ne.s32.totalorder %s168, %s169
    %p181 = scmp.eq.s32.totalorder %s19, 1
    %p182 = por %p180, %p181
    %p184 = scmp.ne.s32.totalorder %s169, %s183
    %p185 = scmp.eq.s32.totalorder %s19, 0
    %p186 = por %p184, %p185
    %s187 = ssub.s32 %s20, %s32
    %s188 = ssub.s32 %s21, %s28
    %s189 = sor.u32 %s187, %s188
    %p190 = scmp.eq.s32.totalorder %s189, 0
    %s192 = sadd.s32 %s191, 1
    %s193 = scalar_select %p190, %s191, %s192
    %p196 = pneg %p190
    %p197 = scmp.eq.s32.totalorder %s13, 1
    %p198 = por %p196, %p197
    %p199 = scmp.ne.s32.totalorder %s191, %s194
    %p200 = scmp.eq.s32.totalorder %s13, 0
    %p201 = por %p199, %p200
    %p202 = scmp.ne.s32.totalorder %s191, %s194
    %p203 = scmp.eq.s32.totalorder %s18, 1
    %p204 = por %p202, %p203
    %p205 = scmp.ne.s32.totalorder %s194, %s195
    %p206 = scmp.eq.s32.totalorder %s18, 0
    %p207 = por %p205, %p206
    %p208 = scmp.ne.s32.totalorder %s194, %s195
    %p209 = scmp.eq.s32.totalorder %s19, 1
    %p210 = por %p208, %p209
    %p212 = scmp.ne.s32.totalorder %s195, %s211
    %p213 = scmp.eq.s32.totalorder %s19, 0
    %p214 = por %p212, %p213
    %p215 = scmp.le.s32.totalorder 1, %s13
    %p216 = scmp.lt.s32.totalorder %s13, 3
    %p217 = pnand %p215, %p216
    %p218 = pneg %p217
    // Predicated region
    $region9: #{transformer_forward.9} parent=5 // pred_check
      _
    $region10: #{transformer_forward.9} parent=5 // pred_check_branch
      %220 = sbr.rel (%p217) target = $region12
    $region11: #{transformer_forward.9} parent=5 // pred_region
      %s221 = ssub.s32 %s13, 1
      // Predicated region
      $region13: #{transformer_forward.9} parent=11 // pred_check
        %p222 = pneg %p74
      $region14: #{transformer_forward.9} parent=11 // pred_check_branch
        %224 = sbr.rel (%p222) target = $region16
      $region15: #{transformer_forward.9} parent=11 // pred_region
        _
      $region16: #{transformer_forward.9} parent=11 // pred_fallthru
        _
      // Predicated region
      $region17: #{transformer_forward.9} parent=11 // pred_check
        %p225 = pneg %p95
      $region18: #{transformer_forward.9} parent=11 // pred_check_branch
        %227 = sbr.rel (%p225) target = $region20
      $region19: #{transformer_forward.9} parent=11 // pred_region
        _
      $region20: #{transformer_forward.9} parent=11 // pred_fallthru
        _
      // Predicated region
      $region21: #{transformer_forward.9} parent=11 // pred_check
        %p228 = pneg %p116
      $region22: #{transformer_forward.9} parent=11 // pred_check_branch
        %230 = sbr.rel (%p228) target = $region24
      $region23: #{transformer_forward.9} parent=11 // pred_region
        _
      $region24: #{transformer_forward.9} parent=11 // pred_fallthru
        _
      // Predicated region
      $region25: #{transformer_forward.9} parent=11 // pred_check
        %p231 = pneg %p137
      $region26: #{transformer_forward.9} parent=11 // pred_check_branch
        %233 = sbr.rel (%p231) target = $region28
      $region27: #{transformer_forward.9} parent=11 // pred_region
        _
      $region28: #{transformer_forward.9} parent=11 // pred_fallthru
        _
      // Predicated region
      $region29: #{transformer_forward.9} parent=11 // pred_check
        %p234 = pneg %p158
      $region30: #{transformer_forward.9} parent=11 // pred_check_branch
        %236 = sbr.rel (%p234) target = $region32
      $region31: #{transformer_forward.9} parent=11 // pred_region
        _
      $region32: #{transformer_forward.9} parent=11 // pred_fallthru
        _
      // Predicated region
      $region33: #{transformer_forward.9} parent=11 // pred_check
        %p237 = pneg %p179
      $region34: #{transformer_forward.9} parent=11 // pred_check_branch
        %239 = sbr.rel (%p237) target = $region36
      $region35: #{transformer_forward.9} parent=11 // pred_region
        _
      $region36: #{transformer_forward.9} parent=11 // pred_fallthru
        _
    $region12: #{transformer_forward.9} parent=5 // pred_fallthru
      _
    %p240 = scmp.lt.s32.totalorder %s13, 2
    // Predicated region
    $region37: #{transformer_forward.9} parent=5 // pred_check
      %p241 = pneg %p240
    $region38: #{transformer_forward.9} parent=5 // pred_check_branch
      %243 = sbr.rel (%p241) target = $region40
    $region39: #{transformer_forward.9} parent=5 // pred_region
      // Predicated region
      $region41: #{transformer_forward.9} parent=39 // pred_check
        %p244 = pneg %p47
      $region42: #{transformer_forward.9} parent=39 // pred_check_branch
        %246 = sbr.rel (%p244) target = $region44
      $region43: #{transformer_forward.9} parent=39 // pred_region
        %p247 = scmp.lt.s32.totalorder %s20, 1
        %s248 = scalar_select %p247, %s20, 1
        %p249 = scmp.lt.s32.totalorder %s21, 0
        %s250 = scalar_select %p249, %s21, 0
        %s251 = sadd.s32 %s250, %s248
        %s252 = smul.addr %s251, 4
        %s253 = scalar_lea.vmem %s0, %s252
      $region44: #{transformer_forward.9} parent=39 // pred_fallthru
        _
    $region40: #{transformer_forward.9} parent=5 // pred_fallthru
      _
    %p254 = scmp.le.s32.totalorder 1, %s13
    %p255 = scmp.lt.s32.totalorder %s13, 3
    %p256 = pnand %p254, %p255
    %p257 = pneg %p256
    // Predicated region
    $region45: #{transformer_forward.9} parent=5 // pred_check
      _
    $region46: #{transformer_forward.9} parent=5 // pred_check_branch
      %259 = sbr.rel (%p256) target = $region48
    $region47: #{transformer_forward.9} parent=5 // pred_region
      %s260 = ssub.s32 %s13, 1
      %p261 = scmp.lt.s32.totalorder %s22, 1
      %s262 = scalar_select %p261, %s22, 1
      %p263 = scmp.lt.s32.totalorder %s23, 0
      %s264 = scalar_select %p263, %s23, 0
      %s265 = sadd.s32 %s264, %s262
      %s266 = smul.addr %s265, 4
      %s267 = scalar_lea.vmem %s0, %s266
      %p268 = pneg %p53
      %p269 = pneg %p50
      %p270 = pneg %p74
      %p271 = pneg %p71
      %p272 = pneg %p95
      %p273 = pneg %p92
      %p274 = pneg %p116
      %p275 = pneg %p113
      %p276 = pneg %p137
      %p277 = pneg %p134
      %p278 = pneg %p158
      %p279 = pneg %p155
      %p280 = pneg %p179
      %p281 = pneg %p176
      %p282 = pneg %p207
      %p283 = pneg %p204
      %p284 = scmp.lt.s32.totalorder %s22, 1
      %s285 = scalar_select %p284, %s22, 1
      %p286 = scmp.lt.s32.totalorder %s23, 0
      %s287 = scalar_select %p286, %s23, 0
      %s288 = sadd.s32 %s287, %s285
      %s289 = smul.addr %s288, 4
      %s290 = scalar_lea.vmem %s7, %s289
      %p291 = scmp.lt.s32.totalorder %s22, 1
      %s292 = scalar_select %p291, %s22, 1
      %p293 = scmp.lt.s32.totalorder %s23, 0
      %s294 = scalar_select %p293, %s23, 0
      %s295 = sadd.s32 %s294, %s292
      %s296 = smul.addr %s295, 4
      %s297 = scalar_lea.vmem %s0, %s296
      %p298 = scmp.lt.s32.totalorder %s22, 1
      %s299 = scalar_select %p298, %s22, 1
      %p300 = scmp.lt.s32.totalorder %s23, 0
      %s301 = scalar_select %p300, %s23, 0
      %s302 = sadd.s32 %s301, %s299
      %s303 = smul.addr %s302, 4
      %s304 = scalar_lea.vmem %s7, %s303
      %v306 = vld [vmem:[%s297] sm:$0xf]
      %v307 = vunpack.c.l.bf16 %v306
      %v308 = vld [vmem:[%s1] sm:$0x1]
      %v309 = vld [vmem:[%s2] sm:$0x1]
      %vm310 = vcmask 261120
      %v311 = vsel %vm310, %v307, 0.0
      %312 = vadd.xlane.f32.xlu0 %v311
      %v313 = vpop.xlane.xlu0 %312
      %v314 = vrcp.pop 32.0
      %v315 = vmul.f32 32.0, %v314
      %v316 = vsub.f32 1.0, %v315
      %v317 = vmul.f32 %v314, %v316
      %v318 = vadd.f32 %v314, %v317
      %vm319 = vweird.f32 %v314
      %v320 = vsel %vm319, %v314, %v318
      %v321 = vmul.f32 %v313, %v320
      %v322 = vsub.f32 %v307, %v321
      %v323 = vmul.f32 %v322, %v322
      %v324 = vsel %vm310, %v323, 0.0
      %325 = vadd.xlane.f32.xlu0 %v324
      %v326 = vpop.xlane.xlu0 %325
      %v327 = vmul.f32 %v326, %v320
      %v328 = vadd.f32 %v327, 1e-05
      %v329 = vrsqrt.pop %v328
      %v330 = vmul.f32 %v329, %v328
      %v331 = vmul.f32 %v330, %v329
      %v332 = vmul.f32 0.5, %v331
      %v333 = vsub.f32 1.5, %v332
      %v334 = vmul.f32 %v329, %v333
      %vm335 = vweird.f32 %v328
      %vm336 = vweird.f32 %v329
      %vm337 = vmor %vm335, %vm336
      %v338 = vsel %vm337, %v329, %v334
      %v339 = vmul.f32 %v322, %v338
      %v341 = vperm.slane %v308, 0
      %v343 = vmul.f32 %v339, %v341
      %v345 = vperm.slane %v309, 0
      %v347 = vadd.f32 %v343, %v345
      %v348 = vpack.c.bf16 %v347, %v347
      %v349 = vld [vmem:[%s3] sm:$0xf]
      %v350 = vld [vmem:[%s3 + $0x4] sm:$0xf]
      %v351 = vld [vmem:[%s3 + $0x8] sm:$0xf]
      %v352 = vld [vmem:[%s3 + $0xc] sm:$0xf]
      %v353 = vld [vmem:[%s4] sm:$0x1]
      %v355 = vperm.slane %v353, 0
      %v361 = vunpack.c.l.b16 %v349
      %v362 = vunpack.c.l.b16 %v350
      %v363 = vunpack.c.l.b16 %v351
      %v364 = vunpack.c.l.b16 %v352
      %v365 = vpack.c.b16 %v362, %v361
      %v366 = vpack.c.b16 %v364, %v363
      %v370 = vsel %vm310, %v348, 0
      %372 = vmatpush.bf16.msra.mxu0 0
      %373 = vmatpush.bf16.msra.mxu0 0
      %374 = vmatpush.bf16.msra.mxu0 0
      %375 = vmatpush.bf16.msra.mxu0 0
      %376 = vmatpush.bf16.msra.mxu0 0
      %377 = vmatpush.bf16.msra.mxu0 0
      %378 = vmatpush.bf16.msra.mxu0 %v366
      %379 = vmatpush.bf16.msra.mxu0 %v365
      %380 = vmatmul.bf16.gmra.mxu0 %v370
      %v381 = vpop.f32.mrf.mxu0
      %v382 = vadd.f32 %v355, %v381
      %v383 = vpop.f32.mrf.mxu0
      %384 = vdwg.mxu0
      %v385 = vmax.f32 %v382, 0.0
      %v386 = vpack.c.bf16 %v385, %v385
      %v387 = vld [vmem:[%s5] sm:$0xf]
      %v388 = vld [vmem:[%s5 + $0x4] sm:$0xf]
      %v389 = vld [vmem:[%s5 + $0x8] sm:$0xf]
      %v390 = vld [vmem:[%s5 + $0xc] sm:$0xf]
      %v391 = vld [vmem:[%s5 + $0x10] sm:$0xf]
      %v392 = vld [vmem:[%s5 + $0x14] sm:$0xf]
      %v393 = vld [vmem:[%s5 + $0x18] sm:$0xf]
      %v394 = vld [vmem:[%s5 + $0x1c] sm:$0xf]
      %v395 = vld [vmem:[%s5 + $0x20] sm:$0xf]
      %v396 = vld [vmem:[%s5 + $0x24] sm:$0xf]
      %v397 = vld [vmem:[%s5 + $0x28] sm:$0xf]
      %v398 = vld [vmem:[%s5 + $0x2c] sm:$0xf]
      %v399 = vld [vmem:[%s5 + $0x30] sm:$0xf]
      %v400 = vld [vmem:[%s5 + $0x34] sm:$0xf]
      %v401 = vld [vmem:[%s5 + $0x38] sm:$0xf]
      %v402 = vld [vmem:[%s5 + $0x3c] sm:$0xf]
      %v403 = vld [vmem:[%s6] sm:$0x1]
      %v405 = vperm.slane %v403, 0
      %v423 = vunpack.c.l.b16 %v387
      %v424 = vunpack.c.l.b16 %v388
      %v425 = vunpack.c.l.b16 %v389
      %v426 = vunpack.c.l.b16 %v390
      %v427 = vunpack.c.l.b16 %v391
      %v428 = vunpack.c.l.b16 %v392
      %v429 = vunpack.c.l.b16 %v393
      %v430 = vunpack.c.l.b16 %v394
      %v431 = vunpack.c.l.b16 %v395
      %v432 = vunpack.c.l.b16 %v396
      %v433 = vunpack.c.l.b16 %v397
      %v434 = vunpack.c.l.b16 %v398
      %v435 = vunpack.c.l.b16 %v399
      %v436 = vunpack.c.l.b16 %v400
      %v437 = vunpack.c.l.b16 %v401
      %v438 = vunpack.c.l.b16 %v402
      %v439 = vpack.c.b16 %v424, %v423
      %v440 = vpack.c.b16 %v426, %v425
      %v441 = vpack.c.b16 %v428, %v427
      %v442 = vpack.c.b16 %v430, %v429
      %v443 = vpack.c.b16 %v432, %v431
      %v444 = vpack.c.b16 %v434, %v433
      %v445 = vpack.c.b16 %v436, %v435
      %v446 = vpack.c.b16 %v438, %v437
      %455 = vmatpush.bf16.msra.mxu0 %v446
      %456 = vmatpush.bf16.msra.mxu0 %v445
      %457 = vmatpush.bf16.msra.mxu0 %v444
      %458 = vmatpush.bf16.msra.mxu0 %v443
      %459 = vmatpush.bf16.msra.mxu0 %v442
      %460 = vmatpush.bf16.msra.mxu0 %v441
      %461 = vmatpush.bf16.msra.mxu0 %v440
      %462 = vmatpush.bf16.msra.mxu0 %v439
      %463 = vmatmul.bf16.gmra.mxu0 %v386
      %v464 = vpop.f32.mrf.mxu0
      %v465 = vadd.f32 %v405, %v464
      %v466 = vpop.f32.mrf.mxu0
      %467 = vdwg.mxu0
      %v468 = vadd.f32 %v307, %v465
      %v469 = vpack.c.bf16 %v468, %v468
      %vm470 = vcmask 257024
      %471 = vst.msk [vmem:[%s304] sm:$0xf] %vm470, %v469
      %p472 = scmp.lt.s32.totalorder %s22, 1
      %s473 = scalar_select %p472, %s22, 1
      %p474 = scmp.lt.s32.totalorder %s23, 0
      %s475 = scalar_select %p474, %s23, 0
      %s476 = sadd.s32 %s475, %s473
      %s477 = smul.addr %s476, 4
      %s478 = scalar_lea.vmem %s7, %s477
      // Predicated region
      $region49: #{transformer_forward.9} parent=47 // pred_check
        %p479 = pneg %p204
      $region50: #{transformer_forward.9} parent=47 // pred_check_branch
        %481 = sbr.rel (%p479) target = $region52
      $region51: #{transformer_forward.9} parent=47 // pred_region
        _
      $region52: #{transformer_forward.9} parent=47 // pred_fallthru
        _
    $region48: #{transformer_forward.9} parent=5 // pred_fallthru
      _
    %p482 = scmp.le.s32.totalorder 2, %s13
    // Predicated region
    $region53: #{transformer_forward.9} parent=5 // pred_check
      %p483 = pneg %p482
    $region54: #{transformer_forward.9} parent=5 // pred_check_branch
      %485 = sbr.rel (%p483) target = $region56
    $region55: #{transformer_forward.9} parent=5 // pred_region
      %s486 = ssub.s32 %s13, 2
      // Predicated region
      $region57: #{transformer_forward.9} parent=55 // pred_check
        %p487 = pneg %p210
      $region58: #{transformer_forward.9} parent=55 // pred_check_branch
        %489 = sbr.rel (%p487) target = $region60
      $region59: #{transformer_forward.9} parent=55 // pred_region
        %p490 = scmp.lt.s32.totalorder %s24, 1
        %s491 = scalar_select %p490, %s24, 1
        %p492 = scmp.lt.s32.totalorder %s25, 0
        %s493 = scalar_select %p492, %s25, 0
        %s494 = sadd.s32 %s493, %s491
        %s495 = smul.addr %s494, 4
        %s496 = scalar_lea.vmem %s7, %s495
      $region60: #{transformer_forward.9} parent=55 // pred_fallthru
        _
    $region56: #{transformer_forward.9} parent=5 // pred_fallthru
      _
  $region6: #{transformer_forward.9} parent=0 // loop_footer
    %s17 = sadd.s32 1, %s13
  $region7: #{transformer_forward.9} parent=0 // loop_footer_branch
    %12 = sbr.rel target = $region3
  $region8: #{transformer_forward.9} parent=0 // loop_exit
    _

// kernel: transformer_forward.8
$region0: #{transformer_forward.8}
  #allocation0 [shape = 'u32[]', space=smem, size = 0x4, offset = 0x4, fixed_abs, tag = 'smem constant byte address 0x4 - core index']
  #allocation1 [shape = 'u32[72,128]{1,0:T(1,128)}', space=vmem, size = 0x9000, scoped, tag = 'internal scratch']
  #allocation2 [shape = 'f32[4,8,1]{2,1,0:T(8,128)}', space=vmem, size = 0x4000, scoped, tag = 'scratch operand']
  #allocation3 [shape = 'f32[4,8,1]{2,1,0:T(8,128)}', space=vmem, size = 0x4000, scoped, tag = 'scratch operand']
  #allocation4 [shape = 'f32[4,8,8]{2,1,0:T(8,128)}', space=vmem, size = 0x4000, scoped, tag = 'scratch operand']
  %s0 = inlined_call_operand.vmem [shape: bf16[2,4,8,8], index: 0, kind: input, shape index: {}]
  %s1 = inlined_call_operand.vmem [shape: bf16[2,4,8,8], index: 1, kind: input, shape index: {}]
  %s2 = inlined_call_operand.vmem [shape: bf16[2,4,8,8], index: 2, kind: input, shape index: {}]
  %s3 = inlined_call_operand.vmem [shape: bf16[4,8,8], index: 3, kind: input, shape index: {}]
  %s4 = inlined_call_operand.vmem [shape: bf16[2,8,32], index: 4, kind: input, shape index: {}]
  %s5 = inlined_call_operand.vmem [shape: bf16[4,8,32], index: 5, kind: input, shape index: {}]
  %s6 = inlined_call_operand.vmem [shape: f32[1,32], index: 6, kind: input, shape index: {}]
  %s7 = inlined_call_operand.vmem [shape: bf16[2,8,32], index: 7, kind: output, shape index: {}]
  %s8 = sld [smem:[#allocation0]]
  $region73: #{transformer_forward.8} parent=0
    _
  %s10 = ssub.s32 1, %s8
  %s11 = scalar_select 0, %s10, %s8
  loop: start=0, step=1, limit=4
  $region2: #{transformer_forward.8} parent=0 // loop_pre_header
    _
  $region3: #{transformer_forward.8} parent=0 // loop_header
    %s13 = sphi 0, %s17
    %p14 = scmp.ge.s32.totalorder %s13, 4
    %s20 = sphi 0, %s39
    %s21 = sphi 0, %s35
    %s22 = sphi 0, %s31
    %s23 = sphi 0, %s20
    %s24 = sphi 0, %s21
    %s25 = sphi 0, %s22
    %s26 = sphi 0, %s23
    %s27 = sphi 0, %s24
    %s28 = sphi 0, %s25
    %s44 = sphi 0, %s46
    %s47 = sphi 0, %s44
    %s48 = sphi 0, %s47
    %s64 = sphi 0, %s48
    %s72 = sphi 0, %s74
    %s75 = sphi 0, %s72
    %s76 = sphi 0, %s75
    %s92 = sphi 0, %s76
    %s100 = sphi 0, %s102
    %s103 = sphi 0, %s100
    %s104 = sphi 0, %s103
    %s120 = sphi 0, %s104
    %s128 = sphi 0, %s130
    %s131 = sphi 0, %s128
    %s132 = sphi 0, %s131
    %s148 = sphi 0, %s132
    %s156 = sphi 0, %s158
    %s159 = sphi 0, %s156
    %s160 = sphi 0, %s159
    %s176 = sphi 0, %s160
    %s180 = sphi 0, %s180
    %s182 = sphi 0, %s180
    %s183 = sphi 0, %s182
    %s197 = sphi 0, %s183
    %s201 = sphi 0, %s201
    %s203 = sphi 0, %s201
    %s204 = sphi 0, %s203
    %s218 = sphi 0, %s204
    %s226 = sphi 0, %s228
    %s229 = sphi 0, %s226
    %s230 = sphi 0, %s229
    %s246 = sphi 0, %s230
  $region4: #{transformer_forward.8} parent=0 // loop_header_branch
    %16 = sbr.rel (%p14) target = $region8
  $region5: #{transformer_forward.8} parent=0 // loop_body
    %s18 = ssub.s32 %s13, 1
    %s19 = ssub.s32 %s13, 2
    %s29 = sadd.s32 1, %s22
    %p30 = scmp.ge.s32.totalorder %s29, 1
    %s31 = scalar_select %p30, 0, %s29
    %s32 = sadd.s32 1, %s21
    %s33 = scalar_select %p30, %s32, %s21
    %p34 = scmp.ge.s32.totalorder %s33, 1
    %s35 = scalar_select %p34, 0, %s33
    %s36 = sadd.s32 1, %s20
    %s37 = scalar_select %p34, %s36, %s20
    %p38 = scmp.ge.s32.totalorder %s37, 2
    %s39 = scalar_select %p38, 0, %s37
    %s40 = ssub.s32 %s20, %s39
    %s41 = ssub.s32 %s21, %s35
    %s42 = sor.u32 %s40, %s41
    %p43 = scmp.eq.s32.totalorder %s42, 0
    %s45 = sadd.s32 %s44, 1
    %s46 = scalar_select %p43, %s44, %s45
    %p49 = pneg %p43
    %p50 = scmp.eq.s32.totalorder %s13, 1
    %p51 = por %p49, %p50
    %p52 = scmp.ne.s32.totalorder %s44, %s47
    %p53 = scmp.eq.s32.totalorder %s13, 0
    %p54 = por %p52, %p53
    %p55 = scmp.ne.s32.totalorder %s44, %s47
    %p56 = scmp.eq.s32.totalorder %s18, 1
    %p57 = por %p55, %p56
    %p58 = scmp.ne.s32.totalorder %s47, %s48
    %p59 = scmp.eq.s32.totalorder %s18, 0
    %p60 = por %p58, %p59
    %p61 = scmp.ne.s32.totalorder %s47, %s48
    %p62 = scmp.eq.s32.totalorder %s19, 1
    %p63 = por %p61, %p62
    %p65 = scmp.ne.s32.totalorder %s48, %s64
    %p66 = scmp.eq.s32.totalorder %s19, 0
    %p67 = por %p65, %p66
    %s68 = ssub.s32 %s20, %s39
    %s69 = ssub.s32 %s22, %s31
    %s70 = sor.u32 %s68, %s69
    %p71 = scmp.eq.s32.totalorder %s70, 0
    %s73 = sadd.s32 %s72, 1
    %s74 = scalar_select %p71, %s72, %s73
    %p77 = pneg %p71
    %p78 = scmp.eq.s32.totalorder %s13, 1
    %p79 = por %p77, %p78
    %p80 = scmp.ne.s32.totalorder %s72, %s75
    %p81 = scmp.eq.s32.totalorder %s13, 0
    %p82 = por %p80, %p81
    %p83 = scmp.ne.s32.totalorder %s72, %s75
    %p84 = scmp.eq.s32.totalorder %s18, 1
    %p85 = por %p83, %p84
    %p86 = scmp.ne.s32.totalorder %s75, %s76
    %p87 = scmp.eq.s32.totalorder %s18, 0
    %p88 = por %p86, %p87
    %p89 = scmp.ne.s32.totalorder %s75, %s76
    %p90 = scmp.eq.s32.totalorder %s19, 1
    %p91 = por %p89, %p90
    %p93 = scmp.ne.s32.totalorder %s76, %s92
    %p94 = scmp.eq.s32.totalorder %s19, 0
    %p95 = por %p93, %p94
    %s96 = ssub.s32 %s20, %s39
    %s97 = ssub.s32 %s22, %s31
    %s98 = sor.u32 %s96, %s97
    %p99 = scmp.eq.s32.totalorder %s98, 0
    %s101 = sadd.s32 %s100, 1
    %s102 = scalar_select %p99, %s100, %s101
    %p105 = pneg %p99
    %p106 = scmp.eq.s32.totalorder %s13, 1
    %p107 = por %p105, %p106
    %p108 = scmp.ne.s32.totalorder %s100, %s103
    %p109 = scmp.eq.s32.totalorder %s13, 0
    %p110 = por %p108, %p109
    %p111 = scmp.ne.s32.totalorder %s100, %s103
    %p112 = scmp.eq.s32.totalorder %s18, 1
    %p113 = por %p111, %p112
    %p114 = scmp.ne.s32.totalorder %s103, %s104
    %p115 = scmp.eq.s32.totalorder %s18, 0
    %p116 = por %p114, %p115
    %p117 = scmp.ne.s32.totalorder %s103, %s104
    %p118 = scmp.eq.s32.totalorder %s19, 1
    %p119 = por %p117, %p118
    %p121 = scmp.ne.s32.totalorder %s104, %s120
    %p122 = scmp.eq.s32.totalorder %s19, 0
    %p123 = por %p121, %p122
    %s124 = ssub.s32 %s21, %s35
    %s125 = ssub.s32 %s22, %s31
    %s126 = sor.u32 %s124, %s125
    %p127 = scmp.eq.s32.totalorder %s126, 0
    %s129 = sadd.s32 %s128, 1
    %s130 = scalar_select %p127, %s128, %s129
    %p133 = pneg %p127
    %p134 = scmp.eq.s32.totalorder %s13, 1
    %p135 = por %p133, %p134
    %p136 = scmp.ne.s32.totalorder %s128, %s131
    %p137 = scmp.eq.s32.totalorder %s13, 0
    %p138 = por %p136, %p137
    %p139 = scmp.ne.s32.totalorder %s128, %s131
    %p140 = scmp.eq.s32.totalorder %s18, 1
    %p141 = por %p139, %p140
    %p142 = scmp.ne.s32.totalorder %s131, %s132
    %p143 = scmp.eq.s32.totalorder %s18, 0
    %p144 = por %p142, %p143
    %p145 = scmp.ne.s32.totalorder %s131, %s132
    %p146 = scmp.eq.s32.totalorder %s19, 1
    %p147 = por %p145, %p146
    %p149 = scmp.ne.s32.totalorder %s132, %s148
    %p150 = scmp.eq.s32.totalorder %s19, 0
    %p151 = por %p149, %p150
    %s152 = ssub.s32 %s20, %s39
    %s153 = ssub.s32 %s21, %s35
    %s154 = sor.u32 %s152, %s153
    %p155 = scmp.eq.s32.totalorder %s154, 0
    %s157 = sadd.s32 %s156, 1
    %s158 = scalar_select %p155, %s156, %s157
    %p161 = pneg %p155
    %p162 = scmp.eq.s32.totalorder %s13, 1
    %p163 = por %p161, %p162
    %p164 = scmp.ne.s32.totalorder %s156, %s159
    %p165 = scmp.eq.s32.totalorder %s13, 0
    %p166 = por %p164, %p165
    %p167 = scmp.ne.s32.totalorder %s156, %s159
    %p168 = scmp.eq.s32.totalorder %s18, 1
    %p169 = por %p167, %p168
    %p170 = scmp.ne.s32.totalorder %s159, %s160
    %p171 = scmp.eq.s32.totalorder %s18, 0
    %p172 = por %p170, %p171
    %p173 = scmp.ne.s32.totalorder %s159, %s160
    %p174 = scmp.eq.s32.totalorder %s19, 1
    %p175 = por %p173, %p174
    %p177 = scmp.ne.s32.totalorder %s160, %s176
    %p178 = scmp.eq.s32.totalorder %s19, 0
    %p179 = por %p177, %p178
    %s181 = sadd.s32 %s180, 1
    %p184 = scmp.eq.s32.totalorder %s13, 1
    %p185 = scmp.ne.s32.totalorder %s180, %s182
    %p186 = scmp.eq.s32.totalorder %s13, 0
    %p187 = por %p185, %p186
    %p188 = scmp.ne.s32.totalorder %s180, %s182
    %p189 = scmp.eq.s32.totalorder %s18, 1
    %p190 = por %p188, %p189
    %p191 = scmp.ne.s32.totalorder %s182, %s183
    %p192 = scmp.eq.s32.totalorder %s18, 0
    %p193 = por %p191, %p192
    %p194 = scmp.ne.s32.totalorder %s182, %s183
    %p195 = scmp.eq.s32.totalorder %s19, 1
    %p196 = por %p194, %p195
    %p198 = scmp.ne.s32.totalorder %s183, %s197
    %p199 = scmp.eq.s32.totalorder %s19, 0
    %p200 = por %p198, %p199
    %s202 = sadd.s32 %s201, 1
    %p205 = scmp.eq.s32.totalorder %s13, 1
    %p206 = scmp.ne.s32.totalorder %s201, %s203
    %p207 = scmp.eq.s32.totalorder %s13, 0
    %p208 = por %p206, %p207
    %p209 = scmp.ne.s32.totalorder %s201, %s203
    %p210 = scmp.eq.s32.totalorder %s18, 1
    %p211 = por %p209, %p210
    %p212 = scmp.ne.s32.totalorder %s203, %s204
    %p213 = scmp.eq.s32.totalorder %s18, 0
    %p214 = por %p212, %p213
    %p215 = scmp.ne.s32.totalorder %s203, %s204
    %p216 = scmp.eq.s32.totalorder %s19, 1
    %p217 = por %p215, %p216
    %p219 = scmp.ne.s32.totalorder %s204, %s218
    %p220 = scmp.eq.s32.totalorder %s19, 0
    %p221 = por %p219, %p220
    %s222 = ssub.s32 %s20, %s39
    %s223 = ssub.s32 %s21, %s35
    %s224 = sor.u32 %s222, %s223
    %p225 = scmp.eq.s32.totalorder %s224, 0
    %s227 = sadd.s32 %s226, 1
    %s228 = scalar_select %p225, %s226, %s227
    %p231 = pneg %p225
    %p232 = scmp.eq.s32.totalorder %s13, 1
    %p233 = por %p231, %p232
    %p234 = scmp.ne.s32.totalorder %s226, %s229
    %p235 = scmp.eq.s32.totalorder %s13, 0
    %p236 = por %p234, %p235
    %p237 = scmp.ne.s32.totalorder %s226, %s229
    %p238 = scmp.eq.s32.totalorder %s18, 1
    %p239 = por %p237, %p238
    %p240 = scmp.ne.s32.totalorder %s229, %s230
    %p241 = scmp.eq.s32.totalorder %s18, 0
    %p242 = por %p240, %p241
    %p243 = scmp.ne.s32.totalorder %s229, %s230
    %p244 = scmp.eq.s32.totalorder %s19, 1
    %p245 = por %p243, %p244
    %p247 = scmp.ne.s32.totalorder %s230, %s246
    %p248 = scmp.eq.s32.totalorder %s19, 0
    %p249 = por %p247, %p248
    %p250 = scmp.le.s32.totalorder 1, %s13
    %p251 = scmp.lt.s32.totalorder %s13, 3
    %p252 = pnand %p250, %p251
    %p253 = pneg %p252
    // Predicated region
    $region9: #{transformer_forward.8} parent=5 // pred_check
      _
    $region10: #{transformer_forward.8} parent=5 // pred_check_branch
      %255 = sbr.rel (%p252) target = $region12
    $region11: #{transformer_forward.8} parent=5 // pred_region
      %s256 = ssub.s32 %s13, 1
      // Predicated region
      $region13: #{transformer_forward.8} parent=11 // pred_check
        %p257 = pneg %p144
      $region14: #{transformer_forward.8} parent=11 // pred_check_branch
        %259 = sbr.rel (%p257) target = $region16
      $region15: #{transformer_forward.8} parent=11 // pred_region
        %p260 = scmp.lt.s32.totalorder %s24, 0
        %s261 = scalar_select %p260, %s24, 0
        %p262 = scmp.lt.s32.totalorder %s25, 0
        %s263 = scalar_select %p262, %s25, 0
        %s264 = sadd.s32 %s263, %s261
        %s265 = smul.addr %s264, 4
        %s266 = scalar_lea.vmem %s3, %s265
      $region16: #{transformer_forward.8} parent=11 // pred_fallthru
        _
      // Predicated region
      $region17: #{transformer_forward.8} parent=11 // pred_check
        %p267 = pneg %p193
      $region18: #{transformer_forward.8} parent=11 // pred_check_branch
        %269 = sbr.rel (%p267) target = $region20
      $region19: #{transformer_forward.8} parent=11 // pred_region
        _
      $region20: #{transformer_forward.8} parent=11 // pred_fallthru
        _
      // Predicated region
      $region21: #{transformer_forward.8} parent=11 // pred_check
        %p270 = pneg %p214
      $region22: #{transformer_forward.8} parent=11 // pred_check_branch
        %272 = sbr.rel (%p270) target = $region24
      $region23: #{transformer_forward.8} parent=11 // pred_region
        _
      $region24: #{transformer_forward.8} parent=11 // pred_fallthru
        _
    $region12: #{transformer_forward.8} parent=5 // pred_fallthru
      _
    %p273 = scmp.lt.s32.totalorder %s13, 2
    // Predicated region
    $region25: #{transformer_forward.8} parent=5 // pred_check
      %p274 = pneg %p273
    $region26: #{transformer_forward.8} parent=5 // pred_check_branch
      %276 = sbr.rel (%p274) target = $region28
    $region27: #{transformer_forward.8} parent=5 // pred_region
      // Predicated region
      $region29: #{transformer_forward.8} parent=27 // pred_check
        %p277 = pneg %p54
      $region30: #{transformer_forward.8} parent=27 // pred_check_branch
        %279 = sbr.rel (%p277) target = $region32
      $region31: #{transformer_forward.8} parent=27 // pred_region
        %p280 = scmp.lt.s32.totalorder %s20, 1
        %s281 = scalar_select %p280, %s20, 1
        %p282 = scmp.lt.s32.totalorder %s21, 0
        %s283 = scalar_select %p282, %s21, 0
        %s284 = smul.addr %s281, 4
        %s285 = sadd.s32 %s283, %s284
        %s286 = smul.addr %s285, 4
        %s287 = scalar_lea.vmem %s0, %s286
      $region32: #{transformer_forward.8} parent=27 // pred_fallthru
        _
      // Predicated region
      $region33: #{transformer_forward.8} parent=27 // pred_check
        %p288 = pneg %p82
      $region34: #{transformer_forward.8} parent=27 // pred_check_branch
        %290 = sbr.rel (%p288) target = $region36
      $region35: #{transformer_forward.8} parent=27 // pred_region
        %p291 = scmp.lt.s32.totalorder %s20, 1
        %s292 = scalar_select %p291, %s20, 1
        %p293 = scmp.lt.s32.totalorder %s22, 0
        %s294 = scalar_select %p293, %s22, 0
        %s295 = smul.addr %s292, 4
        %s296 = sadd.s32 %s294, %s295
        %s297 = smul.addr %s296, 4
        %s298 = scalar_lea.vmem %s1, %s297
      $region36: #{transformer_forward.8} parent=27 // pred_fallthru
        _
      // Predicated region
      $region37: #{transformer_forward.8} parent=27 // pred_check
        %p299 = pneg %p110
      $region38: #{transformer_forward.8} parent=27 // pred_check_branch
        %301 = sbr.rel (%p299) target = $region40
      $region39: #{transformer_forward.8} parent=27 // pred_region
        %p302 = scmp.lt.s32.totalorder %s20, 1
        %s303 = scalar_select %p302, %s20, 1
        %p304 = scmp.lt.s32.totalorder %s22, 0
        %s305 = scalar_select %p304, %s22, 0
        %s306 = smul.addr %s303, 4
        %s307 = sadd.s32 %s305, %s306
        %s308 = smul.addr %s307, 4
        %s309 = scalar_lea.vmem %s2, %s308
      $region40: #{transformer_forward.8} parent=27 // pred_fallthru
        _
      // Predicated region
      $region41: #{transformer_forward.8} parent=27 // pred_check
        %p310 = pneg %p166
      $region42: #{transformer_forward.8} parent=27 // pred_check_branch
        %312 = sbr.rel (%p310) target = $region44
      $region43: #{transformer_forward.8} parent=27 // pred_region
        %p313 = scmp.lt.s32.totalorder %s20, 1
        %s314 = scalar_select %p313, %s20, 1
        %p315 = scmp.lt.s32.totalorder %s21, 0
        %s316 = scalar_select %p315, %s21, 0
        %s317 = sadd.s32 %s316, %s314
        %s318 = smul.addr %s317, 4
        %s319 = scalar_lea.vmem %s4, %s318
      $region44: #{transformer_forward.8} parent=27 // pred_fallthru
        _
    $region28: #{transformer_forward.8} parent=5 // pred_fallthru
      _
    %p320 = scmp.le.s32.totalorder 1, %s13
    %p321 = scmp.lt.s32.totalorder %s13, 3
    %p322 = pnand %p320, %p321
    %p323 = pneg %p322
    // Predicated region
    $region45: #{transformer_forward.8} parent=5 // pred_check
      _
    $region46: #{transformer_forward.8} parent=5 // pred_check_branch
      %325 = sbr.rel (%p322) target = $region48
    $region47: #{transformer_forward.8} parent=5 // pred_region
      %s326 = ssub.s32 %s13, 1
      %p327 = scmp.lt.s32.totalorder %s23, 1
      %s328 = scalar_select %p327, %s23, 1
      %p329 = scmp.lt.s32.totalorder %s24, 0
      %s330 = scalar_select %p329, %s24, 0
      %s331 = smul.addr %s328, 4
      %s332 = sadd.s32 %s330, %s331
      %s333 = smul.addr %s332, 4
      %s334 = scalar_lea.vmem %s0, %s333
      %p335 = pneg %p60
      %p336 = pneg %p57
      %p337 = scmp.lt.s32.totalorder %s23, 1
      %s338 = scalar_select %p337, %s23, 1
      %p339 = scmp.lt.s32.totalorder %s25, 0
      %s340 = scalar_select %p339, %s25, 0
      %s341 = smul.addr %s338, 4
      %s342 = sadd.s32 %s340, %s341
      %s343 = smul.addr %s342, 4
      %s344 = scalar_lea.vmem %s1, %s343
      %p345 = pneg %p88
      %p346 = pneg %p85
      %p347 = scmp.lt.s32.totalorder %s23, 1
      %s348 = scalar_select %p347, %s23, 1
      %p349 = scmp.lt.s32.totalorder %s25, 0
      %s350 = scalar_select %p349, %s25, 0
      %s351 = smul.addr %s348, 4
      %s352 = sadd.s32 %s350, %s351
      %s353 = smul.addr %s352, 4
      %s354 = scalar_lea.vmem %s2, %s353
      %p355 = pneg %p116
      %p356 = pneg %p113
      %p357 = scmp.lt.s32.totalorder %s24, 0
      %s358 = scalar_select %p357, %s24, 0
      %p359 = scmp.lt.s32.totalorder %s25, 0
      %s360 = scalar_select %p359, %s25, 0
      %s361 = sadd.s32 %s360, %s358
      %s362 = smul.addr %s361, 4
      %s363 = scalar_lea.vmem %s3, %s362
      %p364 = pneg %p144
      %p365 = pneg %p141
      %p366 = scmp.lt.s32.totalorder %s23, 1
      %s367 = scalar_select %p366, %s23, 1
      %p368 = scmp.lt.s32.totalorder %s24, 0
      %s369 = scalar_select %p368, %s24, 0
      %s370 = sadd.s32 %s369, %s367
      %s371 = smul.addr %s370, 4
      %s372 = scalar_lea.vmem %s4, %s371
      %p373 = pneg %p172
      %p374 = pneg %p169
      %p375 = pneg %p193
      %p376 = pneg %p190
      %p377 = pneg %p214
      %p378 = pneg %p211
      %p379 = pneg %p242
      %p380 = pneg %p239
      %p381 = scmp.lt.s32.totalorder %s23, 1
      %s382 = scalar_select %p381, %s23, 1
      %p383 = scmp.lt.s32.totalorder %s24, 0
      %s384 = scalar_select %p383, %s24, 0
      %s385 = sadd.s32 %s384, %s382
      %s386 = smul.addr %s385, 4
      %s387 = scalar_lea.vmem %s7, %s386
      %p388 = scmp.lt.s32.totalorder %s23, 1
      %s389 = scalar_select %p388, %s23, 1
      %p390 = scmp.lt.s32.totalorder %s24, 0
      %s391 = scalar_select %p390, %s24, 0
      %s392 = smul.addr %s389, 4
      %s393 = sadd.s32 %s391, %s392
      %s394 = smul.addr %s393, 4
      %s395 = scalar_lea.vmem %s0, %s394
      %p396 = scmp.lt.s32.totalorder %s23, 1
      %s397 = scalar_select %p396, %s23, 1
      %p398 = scmp.lt.s32.totalorder %s25, 0
      %s399 = scalar_select %p398, %s25, 0
      %s400 = smul.addr %s397, 4
      %s401 = sadd.s32 %s399, %s400
      %s402 = smul.addr %s401, 4
      %s403 = scalar_lea.vmem %s1, %s402
      %p404 = scmp.lt.s32.totalorder %s23, 1
      %s405 = scalar_select %p404, %s23, 1
      %p406 = scmp.lt.s32.totalorder %s25, 0
      %s407 = scalar_select %p406, %s25, 0
      %s408 = smul.addr %s405, 4
      %s409 = sadd.s32 %s407, %s408
      %s410 = smul.addr %s409, 4
      %s411 = scalar_lea.vmem %s2, %s410
      %p412 = scmp.lt.s32.totalorder %s24, 0
      %s413 = scalar_select %p412, %s24, 0
      %p414 = scmp.lt.s32.totalorder %s25, 0
      %s415 = scalar_select %p414, %s25, 0
      %s416 = sadd.s32 %s415, %s413
      %s417 = smul.addr %s416, 4
      %s418 = scalar_lea.vmem %s3, %s417
      %p419 = scmp.lt.s32.totalorder %s23, 1
      %s420 = scalar_select %p419, %s23, 1
      %p421 = scmp.lt.s32.totalorder %s24, 0
      %s422 = scalar_select %p421, %s24, 0
      %s423 = sadd.s32 %s422, %s420
      %s424 = smul.addr %s423, 4
      %s425 = scalar_lea.vmem %s4, %s424
      %p426 = scmp.lt.s32.totalorder %s23, 1
      %s427 = scalar_select %p426, %s23, 1
      %p428 = scmp.lt.s32.totalorder %s24, 0
      %s429 = scalar_select %p428, %s24, 0
      %s430 = sadd.s32 %s429, %s427
      %s431 = smul.addr %s430, 4
      %s432 = scalar_lea.vmem %s7, %s431
      %p434 = scmp.eq.s32.totalorder %s25, 0
      // Predicated region
      $region49: #{transformer_forward.8} parent=47 // pred_check
        %p435 = pneg %p434
      $region50: #{transformer_forward.8} parent=47 // pred_check_branch
        %437 = sbr.rel (%p435) target = $region52
      $region51: #{transformer_forward.8} parent=47 // pred_region
        %vm438 = vcmask 7168
        %439 = vst.msk [vmem:[#allocation2] sm:$0xff] %vm438, -inf
        %440 = vst.msk [vmem:[#allocation2 + $0x8] sm:$0xff] %vm438, -inf
        %441 = vst.msk [vmem:[#allocation2 + $0x10] sm:$0xff] %vm438, -inf
        %442 = vst.msk [vmem:[#allocation2 + $0x18] sm:$0xff] %vm438, -inf
        %443 = vst.msk [vmem:[#allocation3] sm:$0xff] %vm438, 0.0
        %444 = vst.msk [vmem:[#allocation3 + $0x8] sm:$0xff] %vm438, 0.0
        %445 = vst.msk [vmem:[#allocation3 + $0x10] sm:$0xff] %vm438, 0.0
        %446 = vst.msk [vmem:[#allocation3 + $0x18] sm:$0xff] %vm438, 0.0
        %vm447 = vcmask 64512
        %448 = vst.msk [vmem:[#allocation4] sm:$0xff] %vm447, 0.0
        %449 = vst.msk [vmem:[#allocation4 + $0x8] sm:$0xff] %vm447, 0.0
        %450 = vst.msk [vmem:[#allocation4 + $0x10] sm:$0xff] %vm447, 0.0
        %451 = vst.msk [vmem:[#allocation4 + $0x18] sm:$0xff] %vm447, 0.0
      $region52: #{transformer_forward.8} parent=47 // pred_fallthru
        _
      %s452 = smul.u32 %s24, 8
      %s453 = smul.u32 %s25, 8
      %s454 = sadd.s32 %s452, 7
      %p455 = scmp.le.s32.totalorder %s453, %s454
      %s456 = sadd.s32 %s453, 7
      %s457 = ssub.s32 %s452, 511
      %p458 = scmp.ge.s32.totalorder %s456, %s457
      %p459 = pnand %p455, %p458
      %p460 = pneg %p459
      // Predicated region
      $region53: #{transformer_forward.8} parent=47 // pred_check
        _
      $region54: #{transformer_forward.8} parent=47 // pred_check_branch
        %462 = sbr.rel (%p459) target = $region56
      $region55: #{transformer_forward.8} parent=47 // pred_region
        %v463 = vld [vmem:[%s395] sm:$0xf]
        %v464 = vld [vmem:[%s395 + $0x4] sm:$0xf]
        %v465 = vld [vmem:[%s395 + $0x8] sm:$0xf]
        %v466 = vld [vmem:[%s395 + $0xc] sm:$0xf]
        %v467 = vld [vmem:[%s403] sm:$0xf]
        %v468 = vld [vmem:[%s403 + $0x4] sm:$0xf]
        %v469 = vld [vmem:[%s403 + $0x8] sm:$0xf]
        %v470 = vld [vmem:[%s403 + $0xc] sm:$0xf]
        %v471 = vld [vmem:[%s418] sm:$0xf]
        %v472 = vld [vmem:[%s418 + $0x4] sm:$0xf]
        %v473 = vld [vmem:[%s418 + $0x8] sm:$0xf]
        %v474 = vld [vmem:[%s418 + $0xc] sm:$0xf]
        %v475 = vunpack.c.l.bf16 %v471
        %v476 = vunpack.c.l.bf16 %v472
        %v477 = vunpack.c.l.bf16 %v473
        %v478 = vunpack.c.l.bf16 %v474
        %vm479 = vcmask 64512
        %v481 = vsel %vm479, %v463, 0
        %v484 = vsel %vm479, %v467, 0
        %486 = vmatpush.bf16.xpose.msra.mxu0 0
        %487 = vmatpush.bf16.xpose.msra.mxu0 0
        %488 = vmatpush.bf16.xpose.msra.mxu0 0
        %489 = vmatpush.bf16.xpose.msra.mxu0 0
        %490 = vmatpush.bf16.xpose.msra.mxu0 0
        %491 = vmatpush.bf16.xpose.msra.mxu0 0
        %492 = vmatpush.bf16.xpose.msra.mxu0 0
        %493 = vmatpush.bf16.xpose.msra.mxu0 %v484
        %494 = vmatmul.bf16.gmra.mxu0 %v481
        %v495 = vpop.f32.mrf.mxu0
        %v496 = vadd.f32 %v475, %v495
        %v497 = vpop.f32.mrf.mxu0
        %498 = vdwg.mxu0
        %v500 = vsel %vm479, %v464, 0
        %v503 = vsel %vm479, %v468, 0
        %505 = vmatpush.bf16.xpose.msra.mxu0 0
        %506 = vmatpush.bf16.xpose.msra.mxu0 0
        %507 = vmatpush.bf16.xpose.msra.mxu0 0
        %508 = vmatpush.bf16.xpose.msra.mxu0 0
        %509 = vmatpush.bf16.xpose.msra.mxu0 0
        %510 = vmatpush.bf16.xpose.msra.mxu0 0
        %511 = vmatpush.bf16.xpose.msra.mxu0 0
        %512 = vmatpush.bf16.xpose.msra.mxu0 %v503
        %513 = vmatmul.bf16.gmra.mxu0 %v500
        %v514 = vpop.f32.mrf.mxu0
        %v515 = vadd.f32 %v476, %v514
        %v516 = vpop.f32.mrf.mxu0
        %517 = vdwg.mxu0
        %v519 = vsel %vm479, %v465, 0
        %v522 = vsel %vm479, %v469, 0
        %524 = vmatpush.bf16.xpose.msra.mxu0 0
        %525 = vmatpush.bf16.xpose.msra.mxu0 0
        %526 = vmatpush.bf16.xpose.msra.mxu0 0
        %527 = vmatpush.bf16.xpose.msra.mxu0 0
        %528 = vmatpush.bf16.xpose.msra.mxu0 0
        %529 = vmatpush.bf16.xpose.msra.mxu0 0
        %530 = vmatpush.bf16.xpose.msra.mxu0 0
        %531 = vmatpush.bf16.xpose.msra.mxu0 %v522
        %532 = vmatmul.bf16.gmra.mxu0 %v519
        %v533 = vpop.f32.mrf.mxu0
        %v534 = vadd.f32 %v477, %v533
        %v535 = vpop.f32.mrf.mxu0
        %536 = vdwg.mxu0
        %v538 = vsel %vm479, %v466, 0
        %v541 = vsel %vm479, %v470, 0
        %543 = vmatpush.bf16.xpose.msra.mxu0 0
        %544 = vmatpush.bf16.xpose.msra.mxu0 0
        %545 = vmatpush.bf16.xpose.msra.mxu0 0
        %546 = vmatpush.bf16.xpose.msra.mxu0 0
        %547 = vmatpush.bf16.xpose.msra.mxu0 0
        %548 = vmatpush.bf16.xpose.msra.mxu0 0
        %549 = vmatpush.bf16.xpose.msra.mxu0 0
        %550 = vmatpush.bf16.xpose.msra.mxu0 %v541
        %551 = vmatmul.bf16.gmra.mxu0 %v538
        %v552 = vpop.f32.mrf.mxu0
        %v553 = vadd.f32 %v478, %v552
        %v554 = vpop.f32.mrf.mxu0
        %555 = vdwg.mxu0
        %v556 = vld [vmem:[#allocation2] sm:$0xff]
        %v557 = vld [vmem:[#allocation2 + $0x8] sm:$0xff]
        %v558 = vld [vmem:[#allocation2 + $0x10] sm:$0xff]
        %v559 = vld [vmem:[#allocation2 + $0x18] sm:$0xff]
        %v560 = vsel %vm479, %v496, -inf
        %561 = vmax.xlane.f32.xlu0 %v560
        %v562 = vpop.xlane.xlu0 %561
        %v563 = vsel %vm479, %v515, -inf
        %564 = vmax.xlane.f32.xlu0 %v563
        %v565 = vpop.xlane.xlu0 %564
        %v566 = vsel %vm479, %v534, -inf
        %567 = vmax.xlane.f32.xlu0 %v566
        %v568 = vpop.xlane.xlu0 %567
        %v569 = vsel %vm479, %v553, -inf
        %570 = vmax.xlane.f32.xlu0 %v569
        %v571 = vpop.xlane.xlu0 %570
        %v572 = vmax.f32 %v556, %v562
        %v573 = vmax.f32 %v557, %v565
        %v574 = vmax.f32 %v558, %v568
        %v575 = vmax.f32 %v559, %v571
        %v576 = vsub.f32 %v556, %v572
        %v577 = vsub.f32 %v557, %v573
        %v578 = vsub.f32 %v558, %v574
        %v579 = vsub.f32 %v559, %v575
        %v580 = vmul.f32 %v576, 1.442695
        %v581 = vpow.pop %v580
        %v582 = vmul.f32 %v577, 1.442695
        %v583 = vpow.pop %v582
        %v584 = vmul.f32 %v578, 1.442695
        %v585 = vpow.pop %v584
        %v586 = vmul.f32 %v579, 1.442695
        %v587 = vpow.pop %v586
        %589 = vset.pattern.permute.xlu0 0
        %590 = vperm.xlu0 %589, %v572
        %v591 = vpop.permute.xlu0 %590
        %594 = vset.pattern.permute.xlu0 0
        %595 = vperm.xlu0 %594, %v573
        %v596 = vpop.permute.xlu0 %595
        %599 = vset.pattern.permute.xlu0 0
        %600 = vperm.xlu0 %599, %v574
        %v601 = vpop.permute.xlu0 %600
        %604 = vset.pattern.permute.xlu0 0
        %605 = vperm.xlu0 %604, %v575
        %v606 = vpop.permute.xlu0 %605
        %v608 = vsub.f32 %v496, %v591
        %v609 = vsub.f32 %v515, %v596
        %v610 = vsub.f32 %v534, %v601
        %v611 = vsub.f32 %v553, %v606
        %v612 = vmul.f32 %v608, 1.442695
        %v613 = vpow.pop %v612
        %v614 = vmul.f32 %v609, 1.442695
        %v615 = vpow.pop %v614
        %v616 = vmul.f32 %v610, 1.442695
        %v617 = vpow.pop %v616
        %v618 = vmul.f32 %v611, 1.442695
        %v619 = vpow.pop %v618
        %v620 = vld [vmem:[#allocation3] sm:$0xff]
        %v621 = vld [vmem:[#allocation3 + $0x8] sm:$0xff]
        %v622 = vld [vmem:[#allocation3 + $0x10] sm:$0xff]
        %v623 = vld [vmem:[#allocation3 + $0x18] sm:$0xff]
        %v624 = vmul.f32 %v581, %v620
        %v625 = vmul.f32 %v583, %v621
        %v626 = vmul.f32 %v585, %v622
        %v627 = vmul.f32 %v587, %v623
        %v628 = vsel %vm479, %v613, 0.0
        %629 = vadd.xlane.f32.xlu0 %v628
        %v630 = vpop.xlane.xlu0 %629
        %v631 = vsel %vm479, %v615, 0.0
        %632 = vadd.xlane.f32.xlu0 %v631
        %v633 = vpop.xlane.xlu0 %632
        %v634 = vsel %vm479, %v617, 0.0
        %635 = vadd.xlane.f32.xlu0 %v634
        %v636 = vpop.xlane.xlu0 %635
        %v637 = vsel %vm479, %v619, 0.0
        %638 = vadd.xlane.f32.xlu0 %v637
        %v639 = vpop.xlane.xlu0 %638
        %v640 = vadd.f32 %v624, %v630
        %v641 = vadd.f32 %v625, %v633
        %v642 = vadd.f32 %v626, %v636
        %v643 = vadd.f32 %v627, %v639
        %vm644 = vcmask 7168
        %645 = vst.msk [vmem:[#allocation3] sm:$0xff] %vm644, %v640
        %646 = vst.msk [vmem:[#allocation3 + $0x8] sm:$0xff] %vm644, %v641
        %647 = vst.msk [vmem:[#allocation3 + $0x10] sm:$0xff] %vm644, %v642
        %648 = vst.msk [vmem:[#allocation3 + $0x18] sm:$0xff] %vm644, %v643
        %v649 = vld [vmem:[#allocation4] sm:$0xff]
        %v650 = vld [vmem:[#allocation4 + $0x8] sm:$0xff]
        %v651 = vld [vmem:[#allocation4 + $0x10] sm:$0xff]
        %v652 = vld [vmem:[#allocation4 + $0x18] sm:$0xff]
        %654 = vset.pattern.permute.xlu0 0
        %655 = vperm.xlu0 %654, %v581
        %v656 = vpop.permute.xlu0 %655
        %659 = vset.pattern.permute.xlu0 0
        %660 = vperm.xlu0 %659, %v583
        %v661 = vpop.permute.xlu0 %660
        %664 = vset.pattern.permute.xlu0 0
        %665 = vperm.xlu0 %664, %v585
        %v666 = vpop.permute.xlu0 %665
        %669 = vset.pattern.permute.xlu0 0
        %670 = vperm.xlu0 %669, %v587
        %v671 = vpop.permute.xlu0 %670
        %v673 = vmul.f32 %v656, %v649
        %v674 = vmul.f32 %v661, %v650
        %v675 = vmul.f32 %v666, %v651
        %v676 = vmul.f32 %v671, %v652
        %v677 = vpack.c.bf16 %v613, %v613
        %v678 = vpack.c.bf16 %v615, %v615
        %v679 = vpack.c.bf16 %v617, %v617
        %v680 = vpack.c.bf16 %v619, %v619
        %v681 = vld [vmem:[%s411] sm:$0xf]
        %v682 = vld [vmem:[%s411 + $0x4] sm:$0xf]
        %v683 = vld [vmem:[%s411 + $0x8] sm:$0xf]
        %v684 = vld [vmem:[%s411 + $0xc] sm:$0xf]
        %v686 = vsel %vm479, %v677, 0
        %vm688 = vcmask 1043456
        %v690 = vsel %vm688, %v681, 0
        %692 = vmatpush.bf16.msra.mxu0 0
        %693 = vmatpush.bf16.msra.mxu0 0
        %694 = vmatpush.bf16.msra.mxu0 0
        %695 = vmatpush.bf16.msra.mxu0 0
        %696 = vmatpush.bf16.msra.mxu0 0
        %697 = vmatpush.bf16.msra.mxu0 0
        %698 = vmatpush.bf16.msra.mxu0 0
        %699 = vmatpush.bf16.msra.mxu0 %v690
        %700 = vmatmul.bf16.gmra.mxu0 %v686
        %v701 = vpop.f32.mrf.mxu0
        %v702 = vadd.f32 0.0, %v701
        %v703 = vpop.f32.mrf.mxu0
        %704 = vdwg.mxu0
        %v706 = vsel %vm479, %v678, 0
        %v709 = vsel %vm688, %v682, 0
        %711 = vmatpush.bf16.msra.mxu0 0
        %712 = vmatpush.bf16.msra.mxu0 0
        %713 = vmatpush.bf16.msra.mxu0 0
        %714 = vmatpush.bf16.msra.mxu0 0
        %715 = vmatpush.bf16.msra.mxu0 0
        %716 = vmatpush.bf16.msra.mxu0 0
        %717 = vmatpush.bf16.msra.mxu0 0
        %718 = vmatpush.bf16.msra.mxu0 %v709
        %719 = vmatmul.bf16.gmra.mxu0 %v706
        %v720 = vpop.f32.mrf.mxu0
        %v721 = vadd.f32 0.0, %v720
        %v722 = vpop.f32.mrf.mxu0
        %723 = vdwg.mxu0
        %v725 = vsel %vm479, %v679, 0
        %v728 = vsel %vm688, %v683, 0
        %730 = vmatpush.bf16.msra.mxu0 0
        %731 = vmatpush.bf16.msra.mxu0 0
        %732 = vmatpush.bf16.msra.mxu0 0
        %733 = vmatpush.bf16.msra.mxu0 0
        %734 = vmatpush.bf16.msra.mxu0 0
        %735 = vmatpush.bf16.msra.mxu0 0
        %736 = vmatpush.bf16.msra.mxu0 0
        %737 = vmatpush.bf16.msra.mxu0 %v728
        %738 = vmatmul.bf16.gmra.mxu0 %v725
        %v739 = vpop.f32.mrf.mxu0
        %v740 = vadd.f32 0.0, %v739
        %v741 = vpop.f32.mrf.mxu0
        %742 = vdwg.mxu0
        %v744 = vsel %vm479, %v680, 0
        %v747 = vsel %vm688, %v684, 0
        %749 = vmatpush.bf16.msra.mxu0 0
        %750 = vmatpush.bf16.msra.mxu0 0
        %751 = vmatpush.bf16.msra.mxu0 0
        %752 = vmatpush.bf16.msra.mxu0 0
        %753 = vmatpush.bf16.msra.mxu0 0
        %754 = vmatpush.bf16.msra.mxu0 0
        %755 = vmatpush.bf16.msra.mxu0 0
        %756 = vmatpush.bf16.msra.mxu0 %v747
        %757 = vmatmul.bf16.gmra.mxu0 %v744
        %v758 = vpop.f32.mrf.mxu0
        %v759 = vadd.f32 0.0, %v758
        %v760 = vpop.f32.mrf.mxu0
        %761 = vdwg.mxu0
        %v762 = vadd.f32 %v673, %v702
        %v763 = vadd.f32 %v674, %v721
        %v764 = vadd.f32 %v675, %v740
        %v765 = vadd.f32 %v676, %v759
        %766 = vst.msk [vmem:[#allocation4] sm:$0xff] %vm479, %v762
        %767 = vst.msk [vmem:[#allocation4 + $0x8] sm:$0xff] %vm479, %v763
        %768 = vst.msk [vmem:[#allocation4 + $0x10] sm:$0xff] %vm479, %v764
        %769 = vst.msk [vmem:[#allocation4 + $0x18] sm:$0xff] %vm479, %v765
        %770 = vst.msk [vmem:[#allocation2] sm:$0xff] %vm644, %v572
        %771 = vst.msk [vmem:[#allocation2 + $0x8] sm:$0xff] %vm644, %v573
        %772 = vst.msk [vmem:[#allocation2 + $0x10] sm:$0xff] %vm644, %v574
        %773 = vst.msk [vmem:[#allocation2 + $0x18] sm:$0xff] %vm644, %v575
      $region56: #{transformer_forward.8} parent=47 // pred_fallthru
        _
      // Predicated region
      $region57: #{transformer_forward.8} parent=47 // pred_check
        %p774 = pneg %p434
      $region58: #{transformer_forward.8} parent=47 // pred_check_branch
        %776 = sbr.rel (%p774) target = $region60
      $region59: #{transformer_forward.8} parent=47 // pred_region
        %v777 = vld [vmem:[#allocation4] sm:$0xff]
        %v778 = vld [vmem:[#allocation4 + $0x8] sm:$0xff]
        %v779 = vld [vmem:[#allocation4 + $0x10] sm:$0xff]
        %v780 = vld [vmem:[#allocation4 + $0x18] sm:$0xff]
        %v781 = vld [vmem:[#allocation3] sm:$0xff]
        %v782 = vld [vmem:[#allocation3 + $0x8] sm:$0xff]
        %v783 = vld [vmem:[#allocation3 + $0x10] sm:$0xff]
        %v784 = vld [vmem:[#allocation3 + $0x18] sm:$0xff]
        %786 = vset.pattern.permute.xlu0 0
        %787 = vperm.xlu0 %786, %v781
        %v788 = vpop.permute.xlu0 %787
        %791 = vset.pattern.permute.xlu0 0
        %792 = vperm.xlu0 %791, %v782
        %v793 = vpop.permute.xlu0 %792
        %796 = vset.pattern.permute.xlu0 0
        %797 = vperm.xlu0 %796, %v783
        %v798 = vpop.permute.xlu0 %797
        %801 = vset.pattern.permute.xlu0 0
        %802 = vperm.xlu0 %801, %v784
        %v803 = vpop.permute.xlu0 %802
        %v805 = vrcp.pop %v788
        %v806 = vmul.f32 %v788, %v805
        %v807 = vsub.f32 1.0, %v806
        %v808 = vmul.f32 %v805, %v807
        %v809 = vadd.f32 %v805, %v808
        %vm810 = vweird.f32 %v788
        %vm811 = vweird.f32 %v805
        %vm812 = vmor %vm810, %vm811
        %v813 = vsel %vm812, %v805, %v809
        %v814 = vand.u32 2147483647, %v788
        %vm815 = vcmp.eq.f32.partialorder %v814, 8.507059e+37
        %v816 = vand.u32 %v788, 2147483648
        %v817 = vor.u32 1.1754944e-38, %v816
        %v818 = vsel %vm815, %v817, %v813
        %v819 = vmul.f32 %v777, %v818
        %v820 = vrcp.pop %v793
        %v821 = vmul.f32 %v793, %v820
        %v822 = vsub.f32 1.0, %v821
        %v823 = vmul.f32 %v820, %v822
        %v824 = vadd.f32 %v820, %v823
        %vm825 = vweird.f32 %v793
        %vm826 = vweird.f32 %v820
        %vm827 = vmor %vm825, %vm826
        %v828 = vsel %vm827, %v820, %v824
        %v829 = vand.u32 2147483647, %v793
        %vm830 = vcmp.eq.f32.partialorder %v829, 8.507059e+37
        %v831 = vand.u32 %v793, 2147483648
        %v832 = vor.u32 1.1754944e-38, %v831
        %v833 = vsel %vm830, %v832, %v828
        %v834 = vmul.f32 %v778, %v833
        %v835 = vrcp.pop %v798
        %v836 = vmul.f32 %v798, %v835
        %v837 = vsub.f32 1.0, %v836
        %v838 = vmul.f32 %v835, %v837
        %v839 = vadd.f32 %v835, %v838
        %vm840 = vweird.f32 %v798
        %vm841 = vweird.f32 %v835
        %vm842 = vmor %vm840, %vm841
        %v843 = vsel %vm842, %v835, %v839
        %v844 = vand.u32 2147483647, %v798
        %vm845 = vcmp.eq.f32.partialorder %v844, 8.507059e+37
        %v846 = vand.u32 %v798, 2147483648
        %v847 = vor.u32 1.1754944e-38, %v846
        %v848 = vsel %vm845, %v847, %v843
        %v849 = vmul.f32 %v779, %v848
        %v850 = vrcp.pop %v803
        %v851 = vmul.f32 %v803, %v850
        %v852 = vsub.f32 1.0, %v851
        %v853 = vmul.f32 %v850, %v852
        %v854 = vadd.f32 %v850, %v853
        %vm855 = vweird.f32 %v803
        %vm856 = vweird.f32 %v850
        %vm857 = vmor %vm855, %vm856
        %v858 = vsel %vm857, %v850, %v854
        %v859 = vand.u32 2147483647, %v803
        %vm860 = vcmp.eq.f32.partialorder %v859, 8.507059e+37
        %v861 = vand.u32 %v803, 2147483648
        %v862 = vor.u32 1.1754944e-38, %v861
        %v863 = vsel %vm860, %v862, %v858
        %v864 = vmul.f32 %v780, %v863
        %v865 = vpack.c.bf16 %v819, %v819
        %v866 = vpack.c.bf16 %v834, %v834
        %v867 = vpack.c.bf16 %v849, %v849
        %v868 = vpack.c.bf16 %v864, %v864
        %v869 = vld [vmem:[%s6] sm:$0x1]
        %v870 = vld [vmem:[%s5] sm:$0xf]
        %vm871 = vcmask 64512
        %v873 = vsel %vm871, %v865, 0
        %vm875 = vcmask 1043456
        %v877 = vsel %vm875, %v870, 0
        %879 = vmatpush.bf16.msra.mxu0 0
        %880 = vmatpush.bf16.msra.mxu0 0
        %881 = vmatpush.bf16.msra.mxu0 0
        %882 = vmatpush.bf16.msra.mxu0 0
        %883 = vmatpush.bf16.msra.mxu0 0
        %884 = vmatpush.bf16.msra.mxu0 0
        %885 = vmatpush.bf16.msra.mxu0 0
        %886 = vmatpush.bf16.msra.mxu0 %v877
        %887 = vmatmul.bf16.gmra.mxu0 %v873
        %v888 = vpop.f32.mrf.mxu0
        %v889 = vadd.f32 0.0, %v888
        %v890 = vpop.f32.mrf.mxu0
        %891 = vdwg.mxu0
        %v893 = vperm.slane %v869, 0
        %v895 = vadd.f32 %v893, %v889
        %s896 = scalar_lea.vmem %s5, 4
        %v897 = vld [vmem:[%s896] sm:$0xf]
        %v899 = vsel %vm871, %v866, 0
        %v902 = vsel %vm875, %v897, 0
        %904 = vmatpush.bf16.msra.mxu0 0
        %905 = vmatpush.bf16.msra.mxu0 0
        %906 = vmatpush.bf16.msra.mxu0 0
        %907 = vmatpush.bf16.msra.mxu0 0
        %908 = vmatpush.bf16.msra.mxu0 0
        %909 = vmatpush.bf16.msra.mxu0 0
        %910 = vmatpush.bf16.msra.mxu0 0
        %911 = vmatpush.bf16.msra.mxu0 %v902
        %912 = vmatmul.bf16.gmra.mxu0 %v899
        %v913 = vpop.f32.mrf.mxu0
        %v914 = vadd.f32 0.0, %v913
        %v915 = vpop.f32.mrf.mxu0
        %916 = vdwg.mxu0
        %v917 = vadd.f32 %v895, %v914
        %s918 = scalar_lea.vmem %s5, 8
        %v919 = vld [vmem:[%s918] sm:$0xf]
        %v921 = vsel %vm871, %v867, 0
        %v924 = vsel %vm875, %v919, 0
        %926 = vmatpush.bf16.msra.mxu0 0
        %927 = vmatpush.bf16.msra.mxu0 0
        %928 = vmatpush.bf16.msra.mxu0 0
        %929 = vmatpush.bf16.msra.mxu0 0
        %930 = vmatpush.bf16.msra.mxu0 0
        %931 = vmatpush.bf16.msra.mxu0 0
        %932 = vmatpush.bf16.msra.mxu0 0
        %933 = vmatpush.bf16.msra.mxu0 %v924
        %934 = vmatmul.bf16.gmra.mxu0 %v921
        %v935 = vpop.f32.mrf.mxu0
        %v936 = vadd.f32 0.0, %v935
        %v937 = vpop.f32.mrf.mxu0
        %938 = vdwg.mxu0
        %v939 = vadd.f32 %v917, %v936
        %s940 = scalar_lea.vmem %s5, 12
        %v941 = vld [vmem:[%s940] sm:$0xf]
        %v943 = vsel %vm871, %v868, 0
        %v946 = vsel %vm875, %v941, 0
        %948 = vmatpush.bf16.msra.mxu0 0
        %949 = vmatpush.bf16.msra.mxu0 0
        %950 = vmatpush.bf16.msra.mxu0 0
        %951 = vmatpush.bf16.msra.mxu0 0
        %952 = vmatpush.bf16.msra.mxu0 0
        %953 = vmatpush.bf16.msra.mxu0 0
        %954 = vmatpush.bf16.msra.mxu0 0
        %955 = vmatpush.bf16.msra.mxu0 %v946
        %956 = vmatmul.bf16.gmra.mxu0 %v943
        %v957 = vpop.f32.mrf.mxu0
        %v958 = vadd.f32 0.0, %v957
        %v959 = vpop.f32.mrf.mxu0
        %960 = vdwg.mxu0
        %v961 = vadd.f32 %v939, %v958
        %v962 = vld [vmem:[%s425] sm:$0xf]
        %v963 = vunpack.c.l.bf16 %v962
        %v964 = vadd.f32 %v963, %v961
        %v965 = vpack.c.bf16 %v964, %v964
        %vm966 = vcmask 257024
        %967 = vst.msk [vmem:[%s432] sm:$0xf] %vm966, %v965
      $region60: #{transformer_forward.8} parent=47 // pred_fallthru
        _
      %p968 = scmp.lt.s32.totalorder %s23, 1
      %s969 = scalar_select %p968, %s23, 1
      %p970 = scmp.lt.s32.totalorder %s24, 0
      %s971 = scalar_select %p970, %s24, 0
      %s972 = sadd.s32 %s971, %s969
      %s973 = smul.addr %s972, 4
      %s974 = scalar_lea.vmem %s7, %s973
      // Predicated region
      $region61: #{transformer_forward.8} parent=47 // pred_check
        %p975 = pneg %p239
      $region62: #{transformer_forward.8} parent=47 // pred_check_branch
        %977 = sbr.rel (%p975) target = $region64
      $region63: #{transformer_forward.8} parent=47 // pred_region
        _
      $region64: #{transformer_forward.8} parent=47 // pred_fallthru
        _
    $region48: #{transformer_forward.8} parent=5 // pred_fallthru
      _
    %p978 = scmp.le.s32.totalorder 2, %s13
    // Predicated region
    $region65: #{transformer_forward.8} parent=5 // pred_check
      %p979 = pneg %p978
    $region66: #{transformer_forward.8} parent=5 // pred_check_branch
      %981 = sbr.rel (%p979) target = $region68
    $region67: #{transformer_forward.8} parent=5 // pred_region
      %s982 = ssub.s32 %s13, 2
      // Predicated region
      $region69: #{transformer_forward.8} parent=67 // pred_check
        %p983 = pneg %p245
      $region70: #{transformer_forward.8} parent=67 // pred_check_branch
        %985 = sbr.rel (%p983) target = $region72
      $region71: #{transformer_forward.8} parent=67 // pred_region
        %p986 = scmp.lt.s32.totalorder %s26, 1
        %s987 = scalar_select %p986, %s26, 1
        %p988 = scmp.lt.s32.totalorder %s27, 0
        %s989 = scalar_select %p988, %s27, 0
        %s990 = sadd.s32 %s989, %s987
        %s991 = smul.addr %s990, 4
        %s992 = scalar_lea.vmem %s7, %s991
      $region72: #{transformer_forward.8} parent=67 // pred_fallthru
        _
    $region68: #{transformer_forward.8} parent=5 // pred_fallthru
      _
  $region6: #{transformer_forward.8} parent=0 // loop_footer
    %s17 = sadd.s32 1, %s13
  $region7: #{transformer_forward.8} parent=0 // loop_footer_branch
    %12 = sbr.rel target = $region3
  $region8: #{transformer_forward.8} parent=0 // loop_exit
    _

// kernel: transformer_forward.7
$region0: #{transformer_forward.7}
  #allocation0 [shape = 'u32[]', space=smem, size = 0x4, offset = 0x4, fixed_abs, tag = 'smem constant byte address 0x4 - core index']
  #allocation1 [shape = 'u32[72,128]{1,0:T(1,128)}', space=vmem, size = 0x9000, scoped, tag = 'internal scratch']
  %s0 = inlined_call_operand.vmem [shape: bf16[2,8,32], index: 0, kind: input, shape index: {}]
  %s1 = inlined_call_operand.vmem [shape: f32[1,32], index: 1, kind: input, shape index: {}]
  %s2 = inlined_call_operand.vmem [shape: f32[1,32], index: 2, kind: input, shape index: {}]
  %s3 = inlined_call_operand.vmem [shape: bf16[4,32,8], index: 3, kind: input, shape index: {}]
  %s4 = inlined_call_operand.vmem [shape: f32[4,1,8], index: 4, kind: input, shape index: {}]
  %s5 = inlined_call_operand.vmem [shape: bf16[4,32,8], index: 5, kind: input, shape index: {}]
  %s6 = inlined_call_operand.vmem [shape: f32[4,1,8], index: 6, kind: input, shape index: {}]
  %s7 = inlined_call_operand.vmem [shape: bf16[4,32,8], index: 7, kind: input, shape index: {}]
  %s8 = inlined_call_operand.vmem [shape: f32[4,1,8], index: 8, kind: input, shape index: {}]
  %s9 = inlined_call_operand.vmem [shape: bf16[2,4,8,8], index: 9, kind: output, shape index: {0}]
  %s10 = inlined_call_operand.vmem [shape: bf16[2,4,8,8], index: 10, kind: output, shape index: {1}]
  %s11 = inlined_call_operand.vmem [shape: bf16[2,4,8,8], index: 11, kind: output, shape index: {2}]
  %12 = xla_tuple %s9, %s10, %s11
  %s13 = sld [smem:[#allocation0]]
  $region85: #{transformer_forward.7} parent=0
    _
  %s15 = ssub.s32 1, %s13
  %s16 = scalar_select 0, %s15, %s13
  loop: start=0, step=1, limit=4
  $region2: #{transformer_forward.7} parent=0 // loop_pre_header
    _
  $region3: #{transformer_forward.7} parent=0 // loop_header
    %s18 = sphi 0, %s22
    %p19 = scmp.ge.s32.totalorder %s18, 4
    %s25 = sphi 0, %s37
    %s26 = sphi 0, %s33
    %s27 = sphi 0, %s25
    %s28 = sphi 0, %s26
    %s29 = sphi 0, %s27
    %s30 = sphi 0, %s28
    %s42 = sphi 0, %s44
    %s45 = sphi 0, %s42
    %s46 = sphi 0, %s45
    %s62 = sphi 0, %s46
    %s66 = sphi 0, %s66
    %s68 = sphi 0, %s66
    %s69 = sphi 0, %s68
    %s83 = sphi 0, %s69
    %s87 = sphi 0, %s87
    %s89 = sphi 0, %s87
    %s90 = sphi 0, %s89
    %s104 = sphi 0, %s90
    %s108 = sphi 0, %s108
    %s110 = sphi 0, %s108
    %s111 = sphi 0, %s110
    %s125 = sphi 0, %s111
    %s129 = sphi 0, %s129
    %s131 = sphi 0, %s129
    %s132 = sphi 0, %s131
    %s146 = sphi 0, %s132
    %s150 = sphi 0, %s150
    %s152 = sphi 0, %s150
    %s153 = sphi 0, %s152
    %s167 = sphi 0, %s153
    %s171 = sphi 0, %s171
    %s173 = sphi 0, %s171
    %s174 = sphi 0, %s173
    %s188 = sphi 0, %s174
    %s192 = sphi 0, %s192
    %s194 = sphi 0, %s192
    %s195 = sphi 0, %s194
    %s209 = sphi 0, %s195
    %s213 = sphi 0, %s213
    %s215 = sphi 0, %s213
    %s216 = sphi 0, %s215
    %s230 = sphi 0, %s216
    %s238 = sphi 0, %s240
    %s241 = sphi 0, %s238
    %s242 = sphi 0, %s241
    %s258 = sphi 0, %s242
    %s266 = sphi 0, %s268
    %s269 = sphi 0, %s266
    %s270 = sphi 0, %s269
    %s286 = sphi 0, %s270
    %s294 = sphi 0, %s296
    %s297 = sphi 0, %s294
    %s298 = sphi 0, %s297
    %s314 = sphi 0, %s298
  $region4: #{transformer_forward.7} parent=0 // loop_header_branch
    %21 = sbr.rel (%p19) target = $region8
  $region5: #{transformer_forward.7} parent=0 // loop_body
    %s23 = ssub.s32 %s18, 1
    %s24 = ssub.s32 %s18, 2
    %s31 = sadd.s32 1, %s26
    %p32 = scmp.ge.s32.totalorder %s31, 1
    %s33 = scalar_select %p32, 0, %s31
    %s34 = sadd.s32 1, %s25
    %s35 = scalar_select %p32, %s34, %s25
    %p36 = scmp.ge.s32.totalorder %s35, 2
    %s37 = scalar_select %p36, 0, %s35
    %s38 = ssub.s32 %s25, %s37
    %s39 = ssub.s32 %s26, %s33
    %s40 = sor.u32 %s38, %s39
    %p41 = scmp.eq.s32.totalorder %s40, 0
    %s43 = sadd.s32 %s42, 1
    %s44 = scalar_select %p41, %s42, %s43
    %p47 = pneg %p41
    %p48 = scmp.eq.s32.totalorder %s18, 1
    %p49 = por %p47, %p48
    %p50 = scmp.ne.s32.totalorder %s42, %s45
    %p51 = scmp.eq.s32.totalorder %s18, 0
    %p52 = por %p50, %p51
    %p53 = scmp.ne.s32.totalorder %s42, %s45
    %p54 = scmp.eq.s32.totalorder %s23, 1
    %p55 = por %p53, %p54
    %p56 = scmp.ne.s32.totalorder %s45, %s46
    %p57 = scmp.eq.s32.totalorder %s23, 0
    %p58 = por %p56, %p57
    %p59 = scmp.ne.s32.totalorder %s45, %s46
    %p60 = scmp.eq.s32.totalorder %s24, 1
    %p61 = por %p59, %p60
    %p63 = scmp.ne.s32.totalorder %s46, %s62
    %p64 = scmp.eq.s32.totalorder %s24, 0
    %p65 = por %p63, %p64
    %s67 = sadd.s32 %s66, 1
    %p70 = scmp.eq.s32.totalorder %s18, 1
    %p71 = scmp.ne.s32.totalorder %s66, %s68
    %p72 = scmp.eq.s32.totalorder %s18, 0
    %p73 = por %p71, %p72
    %p74 = scmp.ne.s32.totalorder %s66, %s68
    %p75 = scmp.eq.s32.totalorder %s23, 1
    %p76 = por %p74, %p75
    %p77 = scmp.ne.s32.totalorder %s68, %s69
    %p78 = scmp.eq.s32.totalorder %s23, 0
    %p79 = por %p77, %p78
    %p80 = scmp.ne.s32.totalorder %s68, %s69
    %p81 = scmp.eq.s32.totalorder %s24, 1
    %p82 = por %p80, %p81
    %p84 = scmp.ne.s32.totalorder %s69, %s83
    %p85 = scmp.eq.s32.totalorder %s24, 0
    %p86 = por %p84, %p85
    %s88 = sadd.s32 %s87, 1
    %p91 = scmp.eq.s32.totalorder %s18, 1
    %p92 = scmp.ne.s32.totalorder %s87, %s89
    %p93 = scmp.eq.s32.totalorder %s18, 0
    %p94 = por %p92, %p93
    %p95 = scmp.ne.s32.totalorder %s87, %s89
    %p96 = scmp.eq.s32.totalorder %s23, 1
    %p97 = por %p95, %p96
    %p98 = scmp.ne.s32.totalorder %s89, %s90
    %p99 = scmp.eq.s32.totalorder %s23, 0
    %p100 = por %p98, %p99
    %p101 = scmp.ne.s32.totalorder %s89, %s90
    %p102 = scmp.eq.s32.totalorder %s24, 1
    %p103 = por %p101, %p102
    %p105 = scmp.ne.s32.totalorder %s90, %s104
    %p106 = scmp.eq.s32.totalorder %s24, 0
    %p107 = por %p105, %p106
    %s109 = sadd.s32 %s108, 1
    %p112 = scmp.eq.s32.totalorder %s18, 1
    %p113 = scmp.ne.s32.totalorder %s108, %s110
    %p114 = scmp.eq.s32.totalorder %s18, 0
    %p115 = por %p113, %p114
    %p116 = scmp.ne.s32.totalorder %s108, %s110
    %p117 = scmp.eq.s32.totalorder %s23, 1
    %p118 = por %p116, %p117
    %p119 = scmp.ne.s32.totalorder %s110, %s111
    %p120 = scmp.eq.s32.totalorder %s23, 0
    %p121 = por %p119, %p120
    %p122 = scmp.ne.s32.totalorder %s110, %s111
    %p123 = scmp.eq.s32.totalorder %s24, 1
    %p124 = por %p122, %p123
    %p126 = scmp.ne.s32.totalorder %s111, %s125
    %p127 = scmp.eq.s32.totalorder %s24, 0
    %p128 = por %p126, %p127
    %s130 = sadd.s32 %s129, 1
    %p133 = scmp.eq.s32.totalorder %s18, 1
    %p134 = scmp.ne.s32.totalorder %s129, %s131
    %p135 = scmp.eq.s32.totalorder %s18, 0
    %p136 = por %p134, %p135
    %p137 = scmp.ne.s32.totalorder %s129, %s131
    %p138 = scmp.eq.s32.totalorder %s23, 1
    %p139 = por %p137, %p138
    %p140 = scmp.ne.s32.totalorder %s131, %s132
    %p141 = scmp.eq.s32.totalorder %s23, 0
    %p142 = por %p140, %p141
    %p143 = scmp.ne.s32.totalorder %s131, %s132
    %p144 = scmp.eq.s32.totalorder %s24, 1
    %p145 = por %p143, %p144
    %p147 = scmp.ne.s32.totalorder %s132, %s146
    %p148 = scmp.eq.s32.totalorder %s24, 0
    %p149 = por %p147, %p148
    %s151 = sadd.s32 %s150, 1
    %p154 = scmp.eq.s32.totalorder %s18, 1
    %p155 = scmp.ne.s32.totalorder %s150, %s152
    %p156 = scmp.eq.s32.totalorder %s18, 0
    %p157 = por %p155, %p156
    %p158 = scmp.ne.s32.totalorder %s150, %s152
    %p159 = scmp.eq.s32.totalorder %s23, 1
    %p160 = por %p158, %p159
    %p161 = scmp.ne.s32.totalorder %s152, %s153
    %p162 = scmp.eq.s32.totalorder %s23, 0
    %p163 = por %p161, %p162
    %p164 = scmp.ne.s32.totalorder %s152, %s153
    %p165 = scmp.eq.s32.totalorder %s24, 1
    %p166 = por %p164, %p165
    %p168 = scmp.ne.s32.totalorder %s153, %s167
    %p169 = scmp.eq.s32.totalorder %s24, 0
    %p170 = por %p168, %p169
    %s172 = sadd.s32 %s171, 1
    %p175 = scmp.eq.s32.totalorder %s18, 1
    %p176 = scmp.ne.s32.totalorder %s171, %s173
    %p177 = scmp.eq.s32.totalorder %s18, 0
    %p178 = por %p176, %p177
    %p179 = scmp.ne.s32.totalorder %s171, %s173
    %p180 = scmp.eq.s32.totalorder %s23, 1
    %p181 = por %p179, %p180
    %p182 = scmp.ne.s32.totalorder %s173, %s174
    %p183 = scmp.eq.s32.totalorder %s23, 0
    %p184 = por %p182, %p183
    %p185 = scmp.ne.s32.totalorder %s173, %s174
    %p186 = scmp.eq.s32.totalorder %s24, 1
    %p187 = por %p185, %p186
    %p189 = scmp.ne.s32.totalorder %s174, %s188
    %p190 = scmp.eq.s32.totalorder %s24, 0
    %p191 = por %p189, %p190
    %s193 = sadd.s32 %s192, 1
    %p196 = scmp.eq.s32.totalorder %s18, 1
    %p197 = scmp.ne.s32.totalorder %s192, %s194
    %p198 = scmp.eq.s32.totalorder %s18, 0
    %p199 = por %p197, %p198
    %p200 = scmp.ne.s32.totalorder %s192, %s194
    %p201 = scmp.eq.s32.totalorder %s23, 1
    %p202 = por %p200, %p201
    %p203 = scmp.ne.s32.totalorder %s194, %s195
    %p204 = scmp.eq.s32.totalorder %s23, 0
    %p205 = por %p203, %p204
    %p206 = scmp.ne.s32.totalorder %s194, %s195
    %p207 = scmp.eq.s32.totalorder %s24, 1
    %p208 = por %p206, %p207
    %p210 = scmp.ne.s32.totalorder %s195, %s209
    %p211 = scmp.eq.s32.totalorder %s24, 0
    %p212 = por %p210, %p211
    %s214 = sadd.s32 %s213, 1
    %p217 = scmp.eq.s32.totalorder %s18, 1
    %p218 = scmp.ne.s32.totalorder %s213, %s215
    %p219 = scmp.eq.s32.totalorder %s18, 0
    %p220 = por %p218, %p219
    %p221 = scmp.ne.s32.totalorder %s213, %s215
    %p222 = scmp.eq.s32.totalorder %s23, 1
    %p223 = por %p221, %p222
    %p224 = scmp.ne.s32.totalorder %s215, %s216
    %p225 = scmp.eq.s32.totalorder %s23, 0
    %p226 = por %p224, %p225
    %p227 = scmp.ne.s32.totalorder %s215, %s216
    %p228 = scmp.eq.s32.totalorder %s24, 1
    %p229 = por %p227, %p228
    %p231 = scmp.ne.s32.totalorder %s216, %s230
    %p232 = scmp.eq.s32.totalorder %s24, 0
    %p233 = por %p231, %p232
    %s234 = ssub.s32 %s25, %s37
    %s235 = ssub.s32 %s26, %s33
    %s236 = sor.u32 %s234, %s235
    %p237 = scmp.eq.s32.totalorder %s236, 0
    %s239 = sadd.s32 %s238, 1
    %s240 = scalar_select %p237, %s238, %s239
    %p243 = pneg %p237
    %p244 = scmp.eq.s32.totalorder %s18, 1
    %p245 = por %p243, %p244
    %p246 = scmp.ne.s32.totalorder %s238, %s241
    %p247 = scmp.eq.s32.totalorder %s18, 0
    %p248 = por %p246, %p247
    %p249 = scmp.ne.s32.totalorder %s238, %s241
    %p250 = scmp.eq.s32.totalorder %s23, 1
    %p251 = por %p249, %p250
    %p252 = scmp.ne.s32.totalorder %s241, %s242
    %p253 = scmp.eq.s32.totalorder %s23, 0
    %p254 = por %p252, %p253
    %p255 = scmp.ne.s32.totalorder %s241, %s242
    %p256 = scmp.eq.s32.totalorder %s24, 1
    %p257 = por %p255, %p256
    %p259 = scmp.ne.s32.totalorder %s242, %s258
    %p260 = scmp.eq.s32.totalorder %s24, 0
    %p261 = por %p259, %p260
    %s262 = ssub.s32 %s25, %s37
    %s263 = ssub.s32 %s26, %s33
    %s264 = sor.u32 %s262, %s263
    %p265 = scmp.eq.s32.totalorder %s264, 0
    %s267 = sadd.s32 %s266, 1
    %s268 = scalar_select %p265, %s266, %s267
    %p271 = pneg %p265
    %p272 = scmp.eq.s32.totalorder %s18, 1
    %p273 = por %p271, %p272
    %p274 = scmp.ne.s32.totalorder %s266, %s269
    %p275 = scmp.eq.s32.totalorder %s18, 0
    %p276 = por %p274, %p275
    %p277 = scmp.ne.s32.totalorder %s266, %s269
    %p278 = scmp.eq.s32.totalorder %s23, 1
    %p279 = por %p277, %p278
    %p280 = scmp.ne.s32.totalorder %s269, %s270
    %p281 = scmp.eq.s32.totalorder %s23, 0
    %p282 = por %p280, %p281
    %p283 = scmp.ne.s32.totalorder %s269, %s270
    %p284 = scmp.eq.s32.totalorder %s24, 1
    %p285 = por %p283, %p284
    %p287 = scmp.ne.s32.totalorder %s270, %s286
    %p288 = scmp.eq.s32.totalorder %s24, 0
    %p289 = por %p287, %p288
    %s290 = ssub.s32 %s25, %s37
    %s291 = ssub.s32 %s26, %s33
    %s292 = sor.u32 %s290, %s291
    %p293 = scmp.eq.s32.totalorder %s292, 0
    %s295 = sadd.s32 %s294, 1
    %s296 = scalar_select %p293, %s294, %s295
    %p299 = pneg %p293
    %p300 = scmp.eq.s32.totalorder %s18, 1
    %p301 = por %p299, %p300
    %p302 = scmp.ne.s32.totalorder %s294, %s297
    %p303 = scmp.eq.s32.totalorder %s18, 0
    %p304 = por %p302, %p303
    %p305 = scmp.ne.s32.totalorder %s294, %s297
    %p306 = scmp.eq.s32.totalorder %s23, 1
    %p307 = por %p305, %p306
    %p308 = scmp.ne.s32.totalorder %s297, %s298
    %p309 = scmp.eq.s32.totalorder %s23, 0
    %p310 = por %p308, %p309
    %p311 = scmp.ne.s32.totalorder %s297, %s298
    %p312 = scmp.eq.s32.totalorder %s24, 1
    %p313 = por %p311, %p312
    %p315 = scmp.ne.s32.totalorder %s298, %s314
    %p316 = scmp.eq.s32.totalorder %s24, 0
    %p317 = por %p315, %p316
    %p318 = scmp.le.s32.totalorder 1, %s18
    %p319 = scmp.lt.s32.totalorder %s18, 3
    %p320 = pnand %p318, %p319
    %p321 = pneg %p320
    // Predicated region
    $region9: #{transformer_forward.7} parent=5 // pred_check
      _
    $region10: #{transformer_forward.7} parent=5 // pred_check_branch
      %323 = sbr.rel (%p320) target = $region12
    $region11: #{transformer_forward.7} parent=5 // pred_region
      %s324 = ssub.s32 %s18, 1
      // Predicated region
      $region13: #{transformer_forward.7} parent=11 // pred_check
        %p325 = pneg %p79
      $region14: #{transformer_forward.7} parent=11 // pred_check_branch
        %327 = sbr.rel (%p325) target = $region16
      $region15: #{transformer_forward.7} parent=11 // pred_region
        _
      $region16: #{transformer_forward.7} parent=11 // pred_fallthru
        _
      // Predicated region
      $region17: #{transformer_forward.7} parent=11 // pred_check
        %p328 = pneg %p100
      $region18: #{transformer_forward.7} parent=11 // pred_check_branch
        %330 = sbr.rel (%p328) target = $region20
      $region19: #{transformer_forward.7} parent=11 // pred_region
        _
      $region20: #{transformer_forward.7} parent=11 // pred_fallthru
        _
      // Predicated region
      $region21: #{transformer_forward.7} parent=11 // pred_check
        %p331 = pneg %p121
      $region22: #{transformer_forward.7} parent=11 // pred_check_branch
        %333 = sbr.rel (%p331) target = $region24
      $region23: #{transformer_forward.7} parent=11 // pred_region
        _
      $region24: #{transformer_forward.7} parent=11 // pred_fallthru
        _
      // Predicated region
      $region25: #{transformer_forward.7} parent=11 // pred_check
        %p334 = pneg %p142
      $region26: #{transformer_forward.7} parent=11 // pred_check_branch
        %336 = sbr.rel (%p334) target = $region28
      $region27: #{transformer_forward.7} parent=11 // pred_region
        _
      $region28: #{transformer_forward.7} parent=11 // pred_fallthru
        _
      // Predicated region
      $region29: #{transformer_forward.7} parent=11 // pred_check
        %p337 = pneg %p163
      $region30: #{transformer_forward.7} parent=11 // pred_check_branch
        %339 = sbr.rel (%p337) target = $region32
      $region31: #{transformer_forward.7} parent=11 // pred_region
        _
      $region32: #{transformer_forward.7} parent=11 // pred_fallthru
        _
      // Predicated region
      $region33: #{transformer_forward.7} parent=11 // pred_check
        %p340 = pneg %p184
      $region34: #{transformer_forward.7} parent=11 // pred_check_branch
        %342 = sbr.rel (%p340) target = $region36
      $region35: #{transformer_forward.7} parent=11 // pred_region
        _
      $region36: #{transformer_forward.7} parent=11 // pred_fallthru
        _
      // Predicated region
      $region37: #{transformer_forward.7} parent=11 // pred_check
        %p343 = pneg %p205
      $region38: #{transformer_forward.7} parent=11 // pred_check_branch
        %345 = sbr.rel (%p343) target = $region40
      $region39: #{transformer_forward.7} parent=11 // pred_region
        _
      $region40: #{transformer_forward.7} parent=11 // pred_fallthru
        _
      // Predicated region
      $region41: #{transformer_forward.7} parent=11 // pred_check
        %p346 = pneg %p226
      $region42: #{transformer_forward.7} parent=11 // pred_check_branch
        %348 = sbr.rel (%p346) target = $region44
      $region43: #{transformer_forward.7} parent=11 // pred_region
        _
      $region44: #{transformer_forward.7} parent=11 // pred_fallthru
        _
    $region12: #{transformer_forward.7} parent=5 // pred_fallthru
      _
    %p349 = scmp.lt.s32.totalorder %s18, 2
    // Predicated region
    $region45: #{transformer_forward.7} parent=5 // pred_check
      %p350 = pneg %p349
    $region46: #{transformer_forward.7} parent=5 // pred_check_branch
      %352 = sbr.rel (%p350) target = $region48
    $region47: #{transformer_forward.7} parent=5 // pred_region
      // Predicated region
      $region49: #{transformer_forward.7} parent=47 // pred_check
        %p353 = pneg %p52
      $region50: #{transformer_forward.7} parent=47 // pred_check_branch
        %355 = sbr.rel (%p353) target = $region52
      $region51: #{transformer_forward.7} parent=47 // pred_region
        %p356 = scmp.lt.s32.totalorder %s25, 1
        %s357 = scalar_select %p356, %s25, 1
        %p358 = scmp.lt.s32.totalorder %s26, 0
        %s359 = scalar_select %p358, %s26, 0
        %s360 = sadd.s32 %s359, %s357
        %s361 = smul.addr %s360, 4
        %s362 = scalar_lea.vmem %s0, %s361
      $region52: #{transformer_forward.7} parent=47 // pred_fallthru
        _
    $region48: #{transformer_forward.7} parent=5 // pred_fallthru
      _
    %p363 = scmp.le.s32.totalorder 1, %s18
    %p364 = scmp.lt.s32.totalorder %s18, 3
    %p365 = pnand %p363, %p364
    %p366 = pneg %p365
    // Predicated region
    $region53: #{transformer_forward.7} parent=5 // pred_check
      _
    $region54: #{transformer_forward.7} parent=5 // pred_check_branch
      %368 = sbr.rel (%p365) target = $region56
    $region55: #{transformer_forward.7} parent=5 // pred_region
      %s369 = ssub.s32 %s18, 1
      %p370 = scmp.lt.s32.totalorder %s27, 1
      %s371 = scalar_select %p370, %s27, 1
      %p372 = scmp.lt.s32.totalorder %s28, 0
      %s373 = scalar_select %p372, %s28, 0
      %s374 = sadd.s32 %s373, %s371
      %s375 = smul.addr %s374, 4
      %s376 = scalar_lea.vmem %s0, %s375
      %p377 = pneg %p58
      %p378 = pneg %p55
      %p379 = pneg %p79
      %p380 = pneg %p76
      %p381 = pneg %p100
      %p382 = pneg %p97
      %p383 = pneg %p121
      %p384 = pneg %p118
      %p385 = pneg %p142
      %p386 = pneg %p139
      %p387 = pneg %p163
      %p388 = pneg %p160
      %p389 = pneg %p184
      %p390 = pneg %p181
      %p391 = pneg %p205
      %p392 = pneg %p202
      %p393 = pneg %p226
      %p394 = pneg %p223
      %p395 = pneg %p254
      %p396 = pneg %p251
      %p397 = scmp.lt.s32.totalorder %s27, 1
      %s398 = scalar_select %p397, %s27, 1
      %p399 = scmp.lt.s32.totalorder %s28, 0
      %s400 = scalar_select %p399, %s28, 0
      %s401 = smul.addr %s398, 4
      %s402 = sadd.s32 %s400, %s401
      %s403 = smul.addr %s402, 4
      %s404 = scalar_lea.vmem %s9, %s403
      %p405 = pneg %p282
      %p406 = pneg %p279
      %p407 = scmp.lt.s32.totalorder %s27, 1
      %s408 = scalar_select %p407, %s27, 1
      %p409 = scmp.lt.s32.totalorder %s28, 0
      %s410 = scalar_select %p409, %s28, 0
      %s411 = smul.addr %s408, 4
      %s412 = sadd.s32 %s410, %s411
      %s413 = smul.addr %s412, 4
      %s414 = scalar_lea.vmem %s10, %s413
      %p415 = pneg %p310
      %p416 = pneg %p307
      %p417 = scmp.lt.s32.totalorder %s27, 1
      %s418 = scalar_select %p417, %s27, 1
      %p419 = scmp.lt.s32.totalorder %s28, 0
      %s420 = scalar_select %p419, %s28, 0
      %s421 = smul.addr %s418, 4
      %s422 = sadd.s32 %s420, %s421
      %s423 = smul.addr %s422, 4
      %s424 = scalar_lea.vmem %s11, %s423
      %p425 = scmp.lt.s32.totalorder %s27, 1
      %s426 = scalar_select %p425, %s27, 1
      %p427 = scmp.lt.s32.totalorder %s28, 0
      %s428 = scalar_select %p427, %s28, 0
      %s429 = sadd.s32 %s428, %s426
      %s430 = smul.addr %s429, 4
      %s431 = scalar_lea.vmem %s0, %s430
      %p432 = scmp.lt.s32.totalorder %s27, 1
      %s433 = scalar_select %p432, %s27, 1
      %p434 = scmp.lt.s32.totalorder %s28, 0
      %s435 = scalar_select %p434, %s28, 0
      %s436 = smul.addr %s433, 4
      %s437 = sadd.s32 %s435, %s436
      %s438 = smul.addr %s437, 4
      %s439 = scalar_lea.vmem %s9, %s438
      %p440 = scmp.lt.s32.totalorder %s27, 1
      %s441 = scalar_select %p440, %s27, 1
      %p442 = scmp.lt.s32.totalorder %s28, 0
      %s443 = scalar_select %p442, %s28, 0
      %s444 = smul.addr %s441, 4
      %s445 = sadd.s32 %s443, %s444
      %s446 = smul.addr %s445, 4
      %s447 = scalar_lea.vmem %s10, %s446
      %p448 = scmp.lt.s32.totalorder %s27, 1
      %s449 = scalar_select %p448, %s27, 1
      %p450 = scmp.lt.s32.totalorder %s28, 0
      %s451 = scalar_select %p450, %s28, 0
      %s452 = smul.addr %s449, 4
      %s453 = sadd.s32 %s451, %s452
      %s454 = smul.addr %s453, 4
      %s455 = scalar_lea.vmem %s11, %s454
      %v457 = vld [vmem:[%s431] sm:$0xf]
      %v458 = vunpack.c.l.bf16 %v457
      %v459 = vld [vmem:[%s1] sm:$0x1]
      %v460 = vld [vmem:[%s2] sm:$0x1]
      %vm461 = vcmask 261120
      %v462 = vsel %vm461, %v458, 0.0
      %463 = vadd.xlane.f32.xlu0 %v462
      %v464 = vpop.xlane.xlu0 %463
      %v465 = vrcp.pop 32.0
      %v466 = vmul.f32 32.0, %v465
      %v467 = vsub.f32 1.0, %v466
      %v468 = vmul.f32 %v465, %v467
      %v469 = vadd.f32 %v465, %v468
      %vm470 = vweird.f32 %v465
      %v471 = vsel %vm470, %v465, %v469
      %v472 = vmul.f32 %v464, %v471
      %v473 = vsub.f32 %v458, %v472
      %v474 = vmul.f32 %v473, %v473
      %v475 = vsel %vm461, %v474, 0.0
      %476 = vadd.xlane.f32.xlu0 %v475
      %v477 = vpop.xlane.xlu0 %476
      %v478 = vmul.f32 %v477, %v471
      %v479 = vadd.f32 %v478, 1e-05
      %v480 = vrsqrt.pop %v479
      %v481 = vmul.f32 %v480, %v479
      %v482 = vmul.f32 %v481, %v480
      %v483 = vmul.f32 0.5, %v482
      %v484 = vsub.f32 1.5, %v483
      %v485 = vmul.f32 %v480, %v484
      %vm486 = vweird.f32 %v479
      %vm487 = vweird.f32 %v480
      %vm488 = vmor %vm486, %vm487
      %v489 = vsel %vm488, %v480, %v485
      %v490 = vmul.f32 %v473, %v489
      %v492 = vperm.slane %v459, 0
      %v494 = vmul.f32 %v490, %v492
      %v496 = vperm.slane %v460, 0
      %v498 = vadd.f32 %v494, %v496
      %v499 = vpack.c.bf16 %v498, %v498
      %v500 = vld [vmem:[%s3] sm:$0xf]
      %v501 = vld [vmem:[%s3 + $0x4] sm:$0xf]
      %v502 = vld [vmem:[%s3 + $0x8] sm:$0xf]
      %v503 = vld [vmem:[%s3 + $0xc] sm:$0xf]
      %v504 = vld [vmem:[%s4] sm:$0x1]
      %v506 = vperm.slane %v504, 0
      %v512 = vunpack.c.l.b16 %v500
      %v513 = vunpack.c.l.b16 %v501
      %v514 = vunpack.c.l.b16 %v502
      %v515 = vunpack.c.l.b16 %v503
      %v516 = vpack.c.b16 %v513, %v512
      %v517 = vpack.c.b16 %v515, %v514
      %v521 = vsel %vm461, %v499, 0
      %523 = vmatpush.bf16.msra.mxu0 0
      %524 = vmatpush.bf16.msra.mxu0 0
      %525 = vmatpush.bf16.msra.mxu0 0
      %526 = vmatpush.bf16.msra.mxu0 0
      %527 = vmatpush.bf16.msra.mxu0 0
      %528 = vmatpush.bf16.msra.mxu0 0
      %529 = vmatpush.bf16.msra.mxu0 %v517
      %530 = vmatpush.bf16.msra.mxu0 %v516
      %531 = vmatmul.bf16.gmra.mxu0 %v521
      %v532 = vpop.f32.mrf.mxu0
      %v533 = vadd.f32 %v506, %v532
      %v534 = vpop.f32.mrf.mxu0
      %535 = vdwg.mxu0
      %v536 = vld [vmem:[%s5] sm:$0xf]
      %v537 = vld [vmem:[%s5 + $0x4] sm:$0xf]
      %v538 = vld [vmem:[%s5 + $0x8] sm:$0xf]
      %v539 = vld [vmem:[%s5 + $0xc] sm:$0xf]
      %v540 = vld [vmem:[%s6] sm:$0x1]
      %v542 = vperm.slane %v540, 0
      %v548 = vunpack.c.l.b16 %v536
      %v549 = vunpack.c.l.b16 %v537
      %v550 = vunpack.c.l.b16 %v538
      %v551 = vunpack.c.l.b16 %v539
      %v552 = vpack.c.b16 %v549, %v548
      %v553 = vpack.c.b16 %v551, %v550
      %556 = vmatpush.bf16.msra.mxu0 0
      %557 = vmatpush.bf16.msra.mxu0 0
      %558 = vmatpush.bf16.msra.mxu0 0
      %559 = vmatpush.bf16.msra.mxu0 0
      %560 = vmatpush.bf16.msra.mxu0 0
      %561 = vmatpush.bf16.msra.mxu0 0
      %562 = vmatpush.bf16.msra.mxu0 %v553
      %563 = vmatpush.bf16.msra.mxu0 %v552
      %564 = vmatmul.bf16.gmra.mxu0 %v521
      %v565 = vpop.f32.mrf.mxu0
      %v566 = vadd.f32 %v542, %v565
      %v567 = vpop.f32.mrf.mxu0
      %568 = vdwg.mxu0
      %v569 = vld [vmem:[%s7] sm:$0xf]
      %v570 = vld [vmem:[%s7 + $0x4] sm:$0xf]
      %v571 = vld [vmem:[%s7 + $0x8] sm:$0xf]
      %v572 = vld [vmem:[%s7 + $0xc] sm:$0xf]
      %v573 = vld [vmem:[%s8] sm:$0x1]
      %v575 = vperm.slane %v573, 0
      %v581 = vunpack.c.l.b16 %v569
      %v582 = vunpack.c.l.b16 %v570
      %v583 = vunpack.c.l.b16 %v571
      %v584 = vunpack.c.l.b16 %v572
      %v585 = vpack.c.b16 %v582, %v581
      %v586 = vpack.c.b16 %v584, %v583
      %589 = vmatpush.bf16.msra.mxu0 0
      %590 = vmatpush.bf16.msra.mxu0 0
      %591 = vmatpush.bf16.msra.mxu0 0
      %592 = vmatpush.bf16.msra.mxu0 0
      %593 = vmatpush.bf16.msra.mxu0 0
      %594 = vmatpush.bf16.msra.mxu0 0
      %595 = vmatpush.bf16.msra.mxu0 %v586
      %596 = vmatpush.bf16.msra.mxu0 %v585
      %597 = vmatmul.bf16.gmra.mxu0 %v521
      %v598 = vpop.f32.mrf.mxu0
      %v599 = vadd.f32 %v575, %v598
      %v600 = vpop.f32.mrf.mxu0
      %601 = vdwg.mxu0
      %v602 = vmul.f32 %v533, 0.35355338
      %v603 = vpack.c.bf16 %v602, %v602
      %vm604 = vcmask 60416
      %605 = vst.msk [vmem:[%s439] sm:$0xf] %vm604, %v603
      %v606 = vpack.c.bf16 %v566, %v566
      %607 = vst.msk [vmem:[%s447] sm:$0xf] %vm604, %v606
      %v608 = vpack.c.bf16 %v599, %v599
      %609 = vst.msk [vmem:[%s455] sm:$0xf] %vm604, %v608
      %s610 = scalar_lea.vmem %s3, 16
      %v611 = vld [vmem:[%s610] sm:$0xf]
      %v612 = vld [vmem:[%s610 + $0x4] sm:$0xf]
      %v613 = vld [vmem:[%s610 + $0x8] sm:$0xf]
      %v614 = vld [vmem:[%s610 + $0xc] sm:$0xf]
      %s615 = scalar_lea.vmem %s4, 1
      %v616 = vld [vmem:[%s615] sm:$0x1]
      %v618 = vperm.slane %v616, 0
      %v624 = vunpack.c.l.b16 %v611
      %v625 = vunpack.c.l.b16 %v612
      %v626 = vunpack.c.l.b16 %v613
      %v627 = vunpack.c.l.b16 %v614
      %v628 = vpack.c.b16 %v625, %v624
      %v629 = vpack.c.b16 %v627, %v626
      %632 = vmatpush.bf16.msra.mxu0 0
      %633 = vmatpush.bf16.msra.mxu0 0
      %634 = vmatpush.bf16.msra.mxu0 0
      %635 = vmatpush.bf16.msra.mxu0 0
      %636 = vmatpush.bf16.msra.mxu0 0
      %637 = vmatpush.bf16.msra.mxu0 0
      %638 = vmatpush.bf16.msra.mxu0 %v629
      %639 = vmatpush.bf16.msra.mxu0 %v628
      %640 = vmatmul.bf16.gmra.mxu0 %v521
      %v641 = vpop.f32.mrf.mxu0
      %v642 = vadd.f32 %v618, %v641
      %v643 = vpop.f32.mrf.mxu0
      %644 = vdwg.mxu0
      %s645 = scalar_lea.vmem %s5, 16
      %v646 = vld [vmem:[%s645] sm:$0xf]
      %v647 = vld [vmem:[%s645 + $0x4] sm:$0xf]
      %v648 = vld [vmem:[%s645 + $0x8] sm:$0xf]
      %v649 = vld [vmem:[%s645 + $0xc] sm:$0xf]
      %s650 = scalar_lea.vmem %s6, 1
      %v651 = vld [vmem:[%s650] sm:$0x1]
      %v653 = vperm.slane %v651, 0
      %v659 = vunpack.c.l.b16 %v646
      %v660 = vunpack.c.l.b16 %v647
      %v661 = vunpack.c.l.b16 %v648
      %v662 = vunpack.c.l.b16 %v649
      %v663 = vpack.c.b16 %v660, %v659
      %v664 = vpack.c.b16 %v662, %v661
      %667 = vmatpush.bf16.msra.mxu0 0
      %668 = vmatpush.bf16.msra.mxu0 0
      %669 = vmatpush.bf16.msra.mxu0 0
      %670 = vmatpush.bf16.msra.mxu0 0
      %671 = vmatpush.bf16.msra.mxu0 0
      %672 = vmatpush.bf16.msra.mxu0 0
      %673 = vmatpush.bf16.msra.mxu0 %v664
      %674 = vmatpush.bf16.msra.mxu0 %v663
      %675 = vmatmul.bf16.gmra.mxu0 %v521
      %v676 = vpop.f32.mrf.mxu0
      %v677 = vadd.f32 %v653, %v676
      %v678 = vpop.f32.mrf.mxu0
      %679 = vdwg.mxu0
      %s680 = scalar_lea.vmem %s7, 16
      %v681 = vld [vmem:[%s680] sm:$0xf]
      %v682 = vld [vmem:[%s680 + $0x4] sm:$0xf]
      %v683 = vld [vmem:[%s680 + $0x8] sm:$0xf]
      %v684 = vld [vmem:[%s680 + $0xc] sm:$0xf]
      %s685 = scalar_lea.vmem %s8, 1
      %v686 = vld [vmem:[%s685] sm:$0x1]
      %v688 = vperm.slane %v686, 0
      %v694 = vunpack.c.l.b16 %v681
      %v695 = vunpack.c.l.b16 %v682
      %v696 = vunpack.c.l.b16 %v683
      %v697 = vunpack.c.l.b16 %v684
      %v698 = vpack.c.b16 %v695, %v694
      %v699 = vpack.c.b16 %v697, %v696
      %702 = vmatpush.bf16.msra.mxu0 0
      %703 = vmatpush.bf16.msra.mxu0 0
      %704 = vmatpush.bf16.msra.mxu0 0
      %705 = vmatpush.bf16.msra.mxu0 0
      %706 = vmatpush.bf16.msra.mxu0 0
      %707 = vmatpush.bf16.msra.mxu0 0
      %708 = vmatpush.bf16.msra.mxu0 %v699
      %709 = vmatpush.bf16.msra.mxu0 %v698
      %710 = vmatmul.bf16.gmra.mxu0 %v521
      %v711 = vpop.f32.mrf.mxu0
      %v712 = vadd.f32 %v688, %v711
      %v713 = vpop.f32.mrf.mxu0
      %714 = vdwg.mxu0
      %v715 = vmul.f32 %v642, 0.35355338
      %v716 = vpack.c.bf16 %v715, %v715
      %s717 = scalar_lea.vmem %s439, 4
      %718 = vst.msk [vmem:[%s717] sm:$0xf] %vm604, %v716
      %v719 = vpack.c.bf16 %v677, %v677
      %s720 = scalar_lea.vmem %s447, 4
      %721 = vst.msk [vmem:[%s720] sm:$0xf] %vm604, %v719
      %v722 = vpack.c.bf16 %v712, %v712
      %s723 = scalar_lea.vmem %s455, 4
      %724 = vst.msk [vmem:[%s723] sm:$0xf] %vm604, %v722
      %s725 = scalar_lea.vmem %s3, 32
      %v726 = vld [vmem:[%s725] sm:$0xf]
      %v727 = vld [vmem:[%s725 + $0x4] sm:$0xf]
      %v728 = vld [vmem:[%s725 + $0x8] sm:$0xf]
      %v729 = vld [vmem:[%s725 + $0xc] sm:$0xf]
      %s730 = scalar_lea.vmem %s4, 2
      %v731 = vld [vmem:[%s730] sm:$0x1]
      %v733 = vperm.slane %v731, 0
      %v739 = vunpack.c.l.b16 %v726
      %v740 = vunpack.c.l.b16 %v727
      %v741 = vunpack.c.l.b16 %v728
      %v742 = vunpack.c.l.b16 %v729
      %v743 = vpack.c.b16 %v740, %v739
      %v744 = vpack.c.b16 %v742, %v741
      %747 = vmatpush.bf16.msra.mxu0 0
      %748 = vmatpush.bf16.msra.mxu0 0
      %749 = vmatpush.bf16.msra.mxu0 0
      %750 = vmatpush.bf16.msra.mxu0 0
      %751 = vmatpush.bf16.msra.mxu0 0
      %752 = vmatpush.bf16.msra.mxu0 0
      %753 = vmatpush.bf16.msra.mxu0 %v744
      %754 = vmatpush.bf16.msra.mxu0 %v743
      %755 = vmatmul.bf16.gmra.mxu0 %v521
      %v756 = vpop.f32.mrf.mxu0
      %v757 = vadd.f32 %v733, %v756
      %v758 = vpop.f32.mrf.mxu0
      %759 = vdwg.mxu0
      %s760 = scalar_lea.vmem %s5, 32
      %v761 = vld [vmem:[%s760] sm:$0xf]
      %v762 = vld [vmem:[%s760 + $0x4] sm:$0xf]
      %v763 = vld [vmem:[%s760 + $0x8] sm:$0xf]
      %v764 = vld [vmem:[%s760 + $0xc] sm:$0xf]
      %s765 = scalar_lea.vmem %s6, 2
      %v766 = vld [vmem:[%s765] sm:$0x1]
      %v768 = vperm.slane %v766, 0
      %v774 = vunpack.c.l.b16 %v761
      %v775 = vunpack.c.l.b16 %v762
      %v776 = vunpack.c.l.b16 %v763
      %v777 = vunpack.c.l.b16 %v764
      %v778 = vpack.c.b16 %v775, %v774
      %v779 = vpack.c.b16 %v777, %v776
      %782 = vmatpush.bf16.msra.mxu0 0
      %783 = vmatpush.bf16.msra.mxu0 0
      %784 = vmatpush.bf16.msra.mxu0 0
      %785 = vmatpush.bf16.msra.mxu0 0
      %786 = vmatpush.bf16.msra.mxu0 0
      %787 = vmatpush.bf16.msra.mxu0 0
      %788 = vmatpush.bf16.msra.mxu0 %v779
      %789 = vmatpush.bf16.msra.mxu0 %v778
      %790 = vmatmul.bf16.gmra.mxu0 %v521
      %v791 = vpop.f32.mrf.mxu0
      %v792 = vadd.f32 %v768, %v791
      %v793 = vpop.f32.mrf.mxu0
      %794 = vdwg.mxu0
      %s795 = scalar_lea.vmem %s7, 32
      %v796 = vld [vmem:[%s795] sm:$0xf]
      %v797 = vld [vmem:[%s795 + $0x4] sm:$0xf]
      %v798 = vld [vmem:[%s795 + $0x8] sm:$0xf]
      %v799 = vld [vmem:[%s795 + $0xc] sm:$0xf]
      %s800 = scalar_lea.vmem %s8, 2
      %v801 = vld [vmem:[%s800] sm:$0x1]
      %v803 = vperm.slane %v801, 0
      %v809 = vunpack.c.l.b16 %v796
      %v810 = vunpack.c.l.b16 %v797
      %v811 = vunpack.c.l.b16 %v798
      %v812 = vunpack.c.l.b16 %v799
      %v813 = vpack.c.b16 %v810, %v809
      %v814 = vpack.c.b16 %v812, %v811
      %817 = vmatpush.bf16.msra.mxu0 0
      %818 = vmatpush.bf16.msra.mxu0 0
      %819 = vmatpush.bf16.msra.mxu0 0
      %820 = vmatpush.bf16.msra.mxu0 0
      %821 = vmatpush.bf16.msra.mxu0 0
      %822 = vmatpush.bf16.msra.mxu0 0
      %823 = vmatpush.bf16.msra.mxu0 %v814
      %824 = vmatpush.bf16.msra.mxu0 %v813
      %825 = vmatmul.bf16.gmra.mxu0 %v521
      %v826 = vpop.f32.mrf.mxu0
      %v827 = vadd.f32 %v803, %v826
      %v828 = vpop.f32.mrf.mxu0
      %829 = vdwg.mxu0
      %v830 = vmul.f32 %v757, 0.35355338
      %v831 = vpack.c.bf16 %v830, %v830
      %s832 = scalar_lea.vmem %s439, 8
      %833 = vst.msk [vmem:[%s832] sm:$0xf] %vm604, %v831
      %v834 = vpack.c.bf16 %v792, %v792
      %s835 = scalar_lea.vmem %s447, 8
      %836 = vst.msk [vmem:[%s835] sm:$0xf] %vm604, %v834
      %v837 = vpack.c.bf16 %v827, %v827
      %s838 = scalar_lea.vmem %s455, 8
      %839 = vst.msk [vmem:[%s838] sm:$0xf] %vm604, %v837
      %s840 = scalar_lea.vmem %s3, 48
      %v841 = vld [vmem:[%s840] sm:$0xf]
      %v842 = vld [vmem:[%s840 + $0x4] sm:$0xf]
      %v843 = vld [vmem:[%s840 + $0x8] sm:$0xf]
      %v844 = vld [vmem:[%s840 + $0xc] sm:$0xf]
      %s845 = scalar_lea.vmem %s4, 3
      %v846 = vld [vmem:[%s845] sm:$0x1]
      %v848 = vperm.slane %v846, 0
      %v854 = vunpack.c.l.b16 %v841
      %v855 = vunpack.c.l.b16 %v842
      %v856 = vunpack.c.l.b16 %v843
      %v857 = vunpack.c.l.b16 %v844
      %v858 = vpack.c.b16 %v855, %v854
      %v859 = vpack.c.b16 %v857, %v856
      %862 = vmatpush.bf16.msra.mxu0 0
      %863 = vmatpush.bf16.msra.mxu0 0
      %864 = vmatpush.bf16.msra.mxu0 0
      %865 = vmatpush.bf16.msra.mxu0 0
      %866 = vmatpush.bf16.msra.mxu0 0
      %867 = vmatpush.bf16.msra.mxu0 0
      %868 = vmatpush.bf16.msra.mxu0 %v859
      %869 = vmatpush.bf16.msra.mxu0 %v858
      %870 = vmatmul.bf16.gmra.mxu0 %v521
      %v871 = vpop.f32.mrf.mxu0
      %v872 = vadd.f32 %v848, %v871
      %v873 = vpop.f32.mrf.mxu0
      %874 = vdwg.mxu0
      %s875 = scalar_lea.vmem %s5, 48
      %v876 = vld [vmem:[%s875] sm:$0xf]
      %v877 = vld [vmem:[%s875 + $0x4] sm:$0xf]
      %v878 = vld [vmem:[%s875 + $0x8] sm:$0xf]
      %v879 = vld [vmem:[%s875 + $0xc] sm:$0xf]
      %s880 = scalar_lea.vmem %s6, 3
      %v881 = vld [vmem:[%s880] sm:$0x1]
      %v883 = vperm.slane %v881, 0
      %v889 = vunpack.c.l.b16 %v876
      %v890 = vunpack.c.l.b16 %v877
      %v891 = vunpack.c.l.b16 %v878
      %v892 = vunpack.c.l.b16 %v879
      %v893 = vpack.c.b16 %v890, %v889
      %v894 = vpack.c.b16 %v892, %v891
      %897 = vmatpush.bf16.msra.mxu0 0
      %898 = vmatpush.bf16.msra.mxu0 0
      %899 = vmatpush.bf16.msra.mxu0 0
      %900 = vmatpush.bf16.msra.mxu0 0
      %901 = vmatpush.bf16.msra.mxu0 0
      %902 = vmatpush.bf16.msra.mxu0 0
      %903 = vmatpush.bf16.msra.mxu0 %v894
      %904 = vmatpush.bf16.msra.mxu0 %v893
      %905 = vmatmul.bf16.gmra.mxu0 %v521
      %v906 = vpop.f32.mrf.mxu0
      %v907 = vadd.f32 %v883, %v906
      %v908 = vpop.f32.mrf.mxu0
      %909 = vdwg.mxu0
      %s910 = scalar_lea.vmem %s7, 48
      %v911 = vld [vmem:[%s910] sm:$0xf]
      %v912 = vld [vmem:[%s910 + $0x4] sm:$0xf]
      %v913 = vld [vmem:[%s910 + $0x8] sm:$0xf]
      %v914 = vld [vmem:[%s910 + $0xc] sm:$0xf]
      %s915 = scalar_lea.vmem %s8, 3
      %v916 = vld [vmem:[%s915] sm:$0x1]
      %v918 = vperm.slane %v916, 0
      %v924 = vunpack.c.l.b16 %v911
      %v925 = vunpack.c.l.b16 %v912
      %v926 = vunpack.c.l.b16 %v913
      %v927 = vunpack.c.l.b16 %v914
      %v928 = vpack.c.b16 %v925, %v924
      %v929 = vpack.c.b16 %v927, %v926
      %932 = vmatpush.bf16.msra.mxu0 0
      %933 = vmatpush.bf16.msra.mxu0 0
      %934 = vmatpush.bf16.msra.mxu0 0
      %935 = vmatpush.bf16.msra.mxu0 0
      %936 = vmatpush.bf16.msra.mxu0 0
      %937 = vmatpush.bf16.msra.mxu0 0
      %938 = vmatpush.bf16.msra.mxu0 %v929
      %939 = vmatpush.bf16.msra.mxu0 %v928
      %940 = vmatmul.bf16.gmra.mxu0 %v521
      %v941 = vpop.f32.mrf.mxu0
      %v942 = vadd.f32 %v918, %v941
      %v943 = vpop.f32.mrf.mxu0
      %944 = vdwg.mxu0
      %v945 = vmul.f32 %v872, 0.35355338
      %v946 = vpack.c.bf16 %v945, %v945
      %s947 = scalar_lea.vmem %s439, 12
      %948 = vst.msk [vmem:[%s947] sm:$0xf] %vm604, %v946
      %v949 = vpack.c.bf16 %v907, %v907
      %s950 = scalar_lea.vmem %s447, 12
      %951 = vst.msk [vmem:[%s950] sm:$0xf] %vm604, %v949
      %v952 = vpack.c.bf16 %v942, %v942
      %s953 = scalar_lea.vmem %s455, 12
      %954 = vst.msk [vmem:[%s953] sm:$0xf] %vm604, %v952
      %p955 = scmp.lt.s32.totalorder %s27, 1
      %s956 = scalar_select %p955, %s27, 1
      %p957 = scmp.lt.s32.totalorder %s28, 0
      %s958 = scalar_select %p957, %s28, 0
      %s959 = smul.addr %s956, 4
      %s960 = sadd.s32 %s958, %s959
      %s961 = smul.addr %s960, 4
      %s962 = scalar_lea.vmem %s9, %s961
      %p963 = scmp.lt.s32.totalorder %s27, 1
      %s964 = scalar_select %p963, %s27, 1
      %p965 = scmp.lt.s32.totalorder %s28, 0
      %s966 = scalar_select %p965, %s28, 0
      %s967 = smul.addr %s964, 4
      %s968 = sadd.s32 %s966, %s967
      %s969 = smul.addr %s968, 4
      %s970 = scalar_lea.vmem %s10, %s969
      %p971 = scmp.lt.s32.totalorder %s27, 1
      %s972 = scalar_select %p971, %s27, 1
      %p973 = scmp.lt.s32.totalorder %s28, 0
      %s974 = scalar_select %p973, %s28, 0
      %s975 = smul.addr %s972, 4
      %s976 = sadd.s32 %s974, %s975
      %s977 = smul.addr %s976, 4
      %s978 = scalar_lea.vmem %s11, %s977
      // Predicated region
      $region57: #{transformer_forward.7} parent=55 // pred_check
        %p979 = pneg %p251
      $region58: #{transformer_forward.7} parent=55 // pred_check_branch
        %981 = sbr.rel (%p979) target = $region60
      $region59: #{transformer_forward.7} parent=55 // pred_region
        _
      $region60: #{transformer_forward.7} parent=55 // pred_fallthru
        _
      // Predicated region
      $region61: #{transformer_forward.7} parent=55 // pred_check
        %p982 = pneg %p279
      $region62: #{transformer_forward.7} parent=55 // pred_check_branch
        %984 = sbr.rel (%p982) target = $region64
      $region63: #{transformer_forward.7} parent=55 // pred_region
        _
      $region64: #{transformer_forward.7} parent=55 // pred_fallthru
        _
      // Predicated region
      $region65: #{transformer_forward.7} parent=55 // pred_check
        %p985 = pneg %p307
      $region66: #{transformer_forward.7} parent=55 // pred_check_branch
        %987 = sbr.rel (%p985) target = $region68
      $region67: #{transformer_forward.7} parent=55 // pred_region
        _
      $region68: #{transformer_forward.7} parent=55 // pred_fallthru
        _
    $region56: #{transformer_forward.7} parent=5 // pred_fallthru
      _
    %p988 = scmp.le.s32.totalorder 2, %s18
    // Predicated region
    $region69: #{transformer_forward.7} parent=5 // pred_check
      %p989 = pneg %p988
    $region70: #{transformer_forward.7} parent=5 // pred_check_branch
      %991 = sbr.rel (%p989) target = $region72
    $region71: #{transformer_forward.7} parent=5 // pred_region
      %s992 = ssub.s32 %s18, 2
      // Predicated region
      $region73: #{transformer_forward.7} parent=71 // pred_check
        %p993 = pneg %p257
      $region74: #{transformer_forward.7} parent=71 // pred_check_branch
        %995 = sbr.rel (%p993) target = $region76
      $region75: #{transformer_forward.7} parent=71 // pred_region
        %p996 = scmp.lt.s32.totalorder %s29, 1
        %s997 = scalar_select %p996, %s29, 1
        %p998 = scmp.lt.s32.totalorder %s30, 0
        %s999 = scalar_select %p998, %s30, 0
        %s1000 = smul.addr %s997, 4
        %s1001 = sadd.s32 %s999, %s1000
        %s1002 = smul.addr %s1001, 4
        %s1003 = scalar_lea.vmem %s9, %s1002
      $region76: #{transformer_forward.7} parent=71 // pred_fallthru
        _
      // Predicated region
      $region77: #{transformer_forward.7} parent=71 // pred_check
        %p1004 = pneg %p285
      $region78: #{transformer_forward.7} parent=71 // pred_check_branch
        %1006 = sbr.rel (%p1004) target = $region80
      $region79: #{transformer_forward.7} parent=71 // pred_region
        %p1007 = scmp.lt.s32.totalorder %s29, 1
        %s1008 = scalar_select %p1007, %s29, 1
        %p1009 = scmp.lt.s32.totalorder %s30, 0
        %s1010 = scalar_select %p1009, %s30, 0
        %s1011 = smul.addr %s1008, 4
        %s1012 = sadd.s32 %s1010, %s1011
        %s1013 = smul.addr %s1012, 4
        %s1014 = scalar_lea.vmem %s10, %s1013
      $region80: #{transformer_forward.7} parent=71 // pred_fallthru
        _
      // Predicated region
      $region81: #{transformer_forward.7} parent=71 // pred_check
        %p1015 = pneg %p313
      $region82: #{transformer_forward.7} parent=71 // pred_check_branch
        %1017 = sbr.rel (%p1015) target = $region84
      $region83: #{transformer_forward.7} parent=71 // pred_region
        %p1018 = scmp.lt.s32.totalorder %s29, 1
        %s1019 = scalar_select %p1018, %s29, 1
        %p1020 = scmp.lt.s32.totalorder %s30, 0
        %s1021 = scalar_select %p1020, %s30, 0
        %s1022 = smul.addr %s1019, 4
        %s1023 = sadd.s32 %s1021, %s1022
        %s1024 = smul.addr %s1023, 4
        %s1025 = scalar_lea.vmem %s11, %s1024
      $region84: #{transformer_forward.7} parent=71 // pred_fallthru
        _
    $region72: #{transformer_forward.7} parent=5 // pred_fallthru
      _
  $region6: #{transformer_forward.7} parent=0 // loop_footer
    %s22 = sadd.s32 1, %s18
  $region7: #{transformer_forward.7} parent=0 // loop_footer_branch
    %17 = sbr.rel target = $region3
  $region8: #{transformer_forward.7} parent=0 // loop_exit
    _

</llo_original>
